<compile_context>
chip_gen: v7x
topology: tpu7x:2x2x1
jax: 0.10.0
libtpu: 0.0.40
codegen_flags: <defaults>
</compile_context>

<pallas_src>
import math
import functools

import jax
import jax.numpy as jnp
from jax.experimental import pallas as pl
from jax.experimental.pallas import tpu as pltpu


def bert_attention_kernel(
    x_ref,        # (1, S, H)        f32 input hidden states for this batch element
    mask_ref,     # (1, 1, S)        f32 additive attention mask
    wqkv_ref,     # (H, 3H)          bf16 fused Wq|Wk|Wv (Wq pre-scaled by 1/sqrt(d))
    bqkv_ref,     # (1, 3H)          f32  fused bq|bk|bv (bq pre-scaled)
    wo_ref,       # (NH, d, H)       bf16 output dense weight, split per head
    bo_ref,       # (1, H)           f32  output dense bias
    gamma_ref,    # (1, H)           f32  LayerNorm weight
    beta_ref,     # (1, H)           f32  LayerNorm bias
    o_ref,        # (1, TQ, H)       f32  output tile
    qkv_scr,      # (S, 3H)          bf16 scratch (persists across q tiles of one batch)
    *, num_heads, head_size, q_tile, eps,
):
    H = num_heads * head_size

    # ---- once per batch element: fused QKV projection for the full sequence ----
    # One MXU pass + a single lane-dense bf16 store (scale already folded into Wq).
    @pl.when(pl.program_id(1) == 0)
    def _project_qkv():
        x_full = x_ref[0]                                            # (S, H) f32
        qkv = jnp.dot(x_full.astype(jnp.bfloat16), wqkv_ref[...],
                      preferred_element_type=jnp.float32)            # (S, 3H) f32
        qkv_scr[...] = (qkv + bqkv_ref[...]).astype(jnp.bfloat16)

    # ---- per query tile: attention over the full key/value sequence ----
    qi = pl.program_id(1)
    q_start = pl.multiple_of(qi * q_tile, q_tile)

    mask = mask_ref[0]                                               # (1, S) f32

    out = None
    for h in range(num_heads):                                       # NH is small & static
        col = h * head_size
        q_h = qkv_scr[pl.ds(q_start, q_tile), col:col + head_size]   # (TQ, d) bf16
        k_h = qkv_scr[:, H + col:H + col + head_size]                # (S, d)  bf16
        v_h = qkv_scr[:, 2 * H + col:2 * H + col + head_size]        # (S, d)  bf16

        # scores = q_h @ k_h^T : contract d on the last axis of both (MXU NT form)
        s = jax.lax.dot_general(q_h, k_h, (((1,), (1,)), ((), ())),
                                preferred_element_type=jnp.float32)  # (TQ, S) f32
        s = s + mask                                                 # broadcast (1, S)

        # numerically stable softmax; normalization folded after the PV matmul
        m = jnp.max(s, axis=-1, keepdims=True)
        e = jnp.exp(s - m)                                           # (TQ, S) f32
        denom = jnp.sum(e, axis=-1, keepdims=True)                   # (TQ, 1) f32

        ctx = jnp.dot(e.astype(jnp.bfloat16), v_h,
                      preferred_element_type=jnp.float32)            # (TQ, d) f32
        ctx = ctx * pl.reciprocal(denom, approx=True)                # cheap (TQ, d) scale

        # output dense, accumulated per head: ctx_h @ Wo[h*d:(h+1)*d, :]
        head_out = jnp.dot(ctx.astype(jnp.bfloat16), wo_ref[h],
                           preferred_element_type=jnp.float32)       # (TQ, H) f32
        out = head_out if out is None else out + head_out

    out = out + bo_ref[...]

    # ---- residual + LayerNorm (f32) ----
    x_tile = x_ref[0, pl.ds(q_start, q_tile), :]                     # (TQ, H) f32
    y = out + x_tile
    mu = jnp.mean(y, axis=-1, keepdims=True)
    var = jnp.mean((y - mu) * (y - mu), axis=-1, keepdims=True)
    y_hat = (y - mu) * jax.lax.rsqrt(var + eps)
    o_ref[0] = y_hat * gamma_ref[...] + beta_ref[...]


def bert_attention(x, mask, params, *, num_heads, eps=1e-12, q_tile=128):
    B, S, H = x.shape
    head_size = H // num_heads
    TQ = min(q_tile, S)
    assert S % TQ == 0, "sequence length must be divisible by the query tile"
    num_q_tiles = S // TQ

    # host-side fusion, 1/sqrt(d) folding into the Q columns, and bf16 cast
    inv_sqrt_d = 1.0 / math.sqrt(head_size)
    wqkv = jnp.concatenate(
        [params["wq"] * inv_sqrt_d, params["wk"], params["wv"]],
        axis=1).astype(jnp.bfloat16)                                 # (H, 3H)
    bqkv = jnp.concatenate(
        [params["bq"] * inv_sqrt_d, params["bk"], params["bv"]], axis=1)  # (1, 3H)
    # output dense weight split per head (rows of Wo are head-major like the context)
    wo = params["wo"].reshape(num_heads, head_size, H).astype(jnp.bfloat16)

    kernel = functools.partial(
        bert_attention_kernel,
        num_heads=num_heads, head_size=head_size, q_tile=TQ, eps=eps,
    )

    # grid-invariant operands (constant index_map -> fetched once, stay resident)
    wqkv_spec = pl.BlockSpec((H, 3 * H), lambda b, qi: (0, 0))
    bqkv_spec = pl.BlockSpec((1, 3 * H), lambda b, qi: (0, 0))
    wo_spec = pl.BlockSpec((num_heads, head_size, H), lambda b, qi: (0, 0, 0))
    vec_spec = pl.BlockSpec((1, H), lambda b, qi: (0, 0))

    return pl.pallas_call(
        kernel,
        out_shape=jax.ShapeDtypeStruct((B, S, H), jnp.float32),
        grid=(B, num_q_tiles),
        in_specs=[
            pl.BlockSpec((1, S, H), lambda b, qi: (b, 0, 0)),        # x (full seq, per batch)
            pl.BlockSpec((1, 1, S), lambda b, qi: (b, 0, 0)),        # additive mask
            wqkv_spec, bqkv_spec,                                    # fused QKV
            wo_spec, vec_spec,                                       # output dense
            vec_spec, vec_spec,                                      # gamma, beta
        ],
        out_specs=pl.BlockSpec((1, TQ, H), lambda b, qi: (b, qi, 0)),
        scratch_shapes=[
            pltpu.VMEM((S, 3 * H), jnp.bfloat16),                    # lane-dense QKV slab
        ],
        compiler_params=pltpu.CompilerParams(
            dimension_semantics=("parallel", "arbitrary"),
            vmem_limit_bytes=64 * 1024 * 1024,
        ),
    )(
        x, mask,
        wqkv, bqkv,
        wo, params["bo"],
        params["gamma"], params["beta"],
    )


def init_params(key, hidden):
    # deterministic synthetic parameters; linear weights stored as (in, out)
    ks = jax.random.split(key, 8)
    scale = 0.02
    return {
        "wq": scale * jax.random.normal(ks[0], (hidden, hidden), jnp.float32),
        "bq": scale * jax.random.normal(ks[1], (1, hidden), jnp.float32),
        "wk": scale * jax.random.normal(ks[2], (hidden, hidden), jnp.float32),
        "bk": scale * jax.random.normal(ks[3], (1, hidden), jnp.float32),
        "wv": scale * jax.random.normal(ks[4], (hidden, hidden), jnp.float32),
        "bv": scale * jax.random.normal(ks[5], (1, hidden), jnp.float32),
        "wo": scale * jax.random.normal(ks[6], (hidden, hidden), jnp.float32),
        "bo": scale * jax.random.normal(ks[7], (1, hidden), jnp.float32),
        "gamma": jnp.ones((1, hidden), jnp.float32),
        "beta": jnp.zeros((1, hidden), jnp.float32),
    }


def reference(x, mask, params, num_heads, eps=1e-12):
    # pure-JAX f32 reference mirroring the torch module (eval mode)
    B, S, H = x.shape
    d = H // num_heads
    q = x @ params["wq"] + params["bq"][0]
    k = x @ params["wk"] + params["bk"][0]
    v = x @ params["wv"] + params["bv"][0]

    def split(t):
        return t.reshape(B, S, num_heads, d).transpose(0, 2, 1, 3)

    qh, kh, vh = split(q), split(k), split(v)
    scores = jnp.einsum("bhqd,bhkd->bhqk", qh, kh) / math.sqrt(d)
    scores = scores + mask[:, None, :, :]          # (B,1,1,S) broadcast
    probs = jax.nn.softmax(scores, axis=-1)
    ctx = jnp.einsum("bhqk,bhkd->bhqd", probs, vh)
    ctx = ctx.transpose(0, 2, 1, 3).reshape(B, S, H)
    out = ctx @ params["wo"] + params["bo"][0]
    y = out + x
    mu = y.mean(-1, keepdims=True)
    var = ((y - mu) ** 2).mean(-1, keepdims=True)
    return (y - mu) / jnp.sqrt(var + eps) * params["gamma"][0] + params["beta"][0]


if __name__ == "__main__":
    # small but tile-representative shapes: S, H multiples of 128, head_size=64
    B, S, H, NH = 2, 256, 128, 2

    key = jax.random.PRNGKey(0)
    kx, km, kp = jax.random.split(key, 3)

    x = jax.random.normal(kx, (B, S, H), jnp.float32)
    # additive BERT mask: 0 for visible, -10000 for masked
    keep = (jax.random.uniform(km, (B, 1, S)) > 0.2).astype(jnp.float32)
    mask = (1.0 - keep) * -10000.0

    params = init_params(kp, H)

    out = bert_attention(x, mask, params, num_heads=NH)
    out = jax.block_until_ready(out)

    ref = reference(x, mask, params, NH)
    assert out.shape == (B, S, H)
    # bf16 MXU operands + approx reciprocal -> loosened tolerance vs. f32 reference
    assert jnp.allclose(out, ref, atol=2e-2, rtol=2e-2), float(jnp.abs(out - ref).max())

    print("KERNEL_OK")
</pallas_src>

<mosaic_0001>
module attributes {stable_mosaic.version = 11 : i64} {
  func.func @bert_attention_kernel(%arg0: i32, %arg1: i32, %arg2: memref<1x256x128xf32, #tpu.memory_space<vmem>>, %arg3: memref<1x1x256xf32, #tpu.memory_space<vmem>>, %arg4: memref<128x384xbf16, #tpu.memory_space<vmem>>, %arg5: memref<1x384xf32, #tpu.memory_space<vmem>>, %arg6: memref<2x64x128xbf16, #tpu.memory_space<vmem>>, %arg7: memref<1x128xf32, #tpu.memory_space<vmem>>, %arg8: memref<1x128xf32, #tpu.memory_space<vmem>>, %arg9: memref<1x128xf32, #tpu.memory_space<vmem>>, %arg10: memref<1x128x128xf32, #tpu.memory_space<vmem>>, %arg11: memref<256x384xbf16, #tpu.memory_space<vmem>>) attributes {dimension_semantics = [#tpu.dimension_semantics<parallel>, #tpu.dimension_semantics<arbitrary>], iteration_bounds = array<i64: 2, 2>, scalar_prefetch = 0 : i64, scratch_operands = 1 : i64, tpu.core_type = #tpu.core_type<tc>, window_params = [{transform_indices = @transform_0, window_bounds = array<i64: 1, 256, 128>}, {transform_indices = @transform_1, window_bounds = array<i64: 1, 1, 256>}, {pipeline_mode = #tpu.pipeline_mode<synchronous>, transform_indices = @transform_2, window_bounds = array<i64: 128, 384>}, {pipeline_mode = #tpu.pipeline_mode<synchronous>, transform_indices = @transform_3, window_bounds = array<i64: 1, 384>}, {pipeline_mode = #tpu.pipeline_mode<synchronous>, transform_indices = @transform_4, window_bounds = array<i64: 2, 64, 128>}, {pipeline_mode = #tpu.pipeline_mode<synchronous>, transform_indices = @transform_5, window_bounds = array<i64: 1, 128>}, {pipeline_mode = #tpu.pipeline_mode<synchronous>, transform_indices = @transform_6, window_bounds = array<i64: 1, 128>}, {pipeline_mode = #tpu.pipeline_mode<synchronous>, transform_indices = @transform_7, window_bounds = array<i64: 1, 128>}, {transform_indices = @transform_8, window_bounds = array<i64: 1, 128, 128>}]} {
    %c0_i32 = arith.constant 0 : i32
    %0 = arith.cmpi eq, %arg1, %c0_i32 : i32
    %1 = arith.extui %0 : i1 to i32
    %c0_i32_0 = arith.constant 0 : i32
    %2 = arith.cmpi ne, %1, %c0_i32_0 : i32
    scf.if %2 {
      %c0_38 = arith.constant 0 : index
      %c0_39 = arith.constant 0 : index
      %c0_40 = arith.constant 0 : index
      %90 = vector.load %arg2[%c0_38, %c0_39, %c0_40] : memref<1x256x128xf32, #tpu.memory_space<vmem>>, vector<1x256x128xf32>
      %91 = vector.shape_cast %90 : vector<1x256x128xf32> to vector<256x128xf32>
      %92 = arith.truncf %91 : vector<256x128xf32> to vector<256x128xbf16>
      %c0_41 = arith.constant 0 : index
      %c0_42 = arith.constant 0 : index
      %93 = vector.load %arg4[%c0_41, %c0_42] : memref<128x384xbf16, #tpu.memory_space<vmem>>, vector<128x384xbf16>
      %cst_43 = arith.constant dense<0.000000e+00> : vector<256x384xf32>
      %94 = tpu.matmul %92, %93, %cst_43 {dimension_numbers = #tpu.dot_dimension_numbers<[1], [0], [0], [1], [0, 0, 1, 1], [], []>} : vector<256x128xbf16>, vector<128x384xbf16>, vector<256x384xf32> -> vector<256x384xf32>
      %c0_44 = arith.constant 0 : index
      %c0_45 = arith.constant 0 : index
      %95 = vector.load %arg5[%c0_44, %c0_45] : memref<1x384xf32, #tpu.memory_space<vmem>>, vector<1x384xf32>
      %96 = vector.broadcast %95 : vector<1x384xf32> to vector<256x384xf32>
      %97 = arith.addf %94, %96 : vector<256x384xf32>
      %98 = arith.truncf %97 : vector<256x384xf32> to vector<256x384xbf16>
      %c0_46 = arith.constant 0 : index
      %c0_47 = arith.constant 0 : index
      %99 = vector.load %arg11[%c0_46, %c0_47] : memref<256x384xbf16, #tpu.memory_space<vmem>>, vector<256x384xbf16>
      tpu.vector_store %arg11[%c0_46, %c0_47], %98 {strides = array<i32>} : memref<256x384xbf16, #tpu.memory_space<vmem>>, vector<256x384xbf16>,
    } else {
    }
    %c128_i32 = arith.constant 128 : i32
    %3 = arith.muli %arg1, %c128_i32 : i32
    %4 = tpu.assume_multiple %3, 128 : i32
    %c0 = arith.constant 0 : index
    %c0_1 = arith.constant 0 : index
    %c0_2 = arith.constant 0 : index
    %5 = vector.load %arg3[%c0, %c0_1, %c0_2] : memref<1x1x256xf32, #tpu.memory_space<vmem>>, vector<1x1x256xf32>
    %6 = vector.shape_cast %5 : vector<1x1x256xf32> to vector<1x256xf32>
    %7 = arith.index_cast %4 : i32 to index
    %c0_3 = arith.constant 0 : index
    %8 = vector.load %arg11[%7, %c0_3] : memref<256x384xbf16, #tpu.memory_space<vmem>>, vector<128x64xbf16>
    %c0_4 = arith.constant 0 : index
    %c128 = arith.constant 128 : index
    %9 = vector.load %arg11[%c0_4, %c128] : memref<256x384xbf16, #tpu.memory_space<vmem>>, vector<256x64xbf16>
    %c0_5 = arith.constant 0 : index
    %c256 = arith.constant 256 : index
    %10 = vector.load %arg11[%c0_5, %c256] : memref<256x384xbf16, #tpu.memory_space<vmem>>, vector<256x64xbf16>
    %cst = arith.constant dense<0.000000e+00> : vector<128x256xf32>
    %11 = tpu.matmul %8, %9, %cst {dimension_numbers = #tpu.dot_dimension_numbers<[1], [1], [0], [0], [0, 0, 1, 0], [], []>} : vector<128x64xbf16>, vector<256x64xbf16>, vector<128x256xf32> -> vector<128x256xf32>
    %12 = vector.broadcast %6 : vector<1x256xf32> to vector<128x256xf32>
    %13 = arith.addf %11, %12 : vector<128x256xf32>
    %cst_6 = arith.constant dense<0xFF800000> : vector<128xf32>
    %14 = vector.multi_reduction <maximumf>, %13, %cst_6 [1] : vector<128x256xf32> to vector<128xf32>
    %15 = vector.shape_cast %14 : vector<128xf32> to vector<128x1xf32>
    %16 = vector.broadcast %15 : vector<128x1xf32> to vector<128x256xf32>
    %17 = arith.subf %13, %16 : vector<128x256xf32>
    %18 = math.exp %17 : vector<128x256xf32>
    %cst_7 = arith.constant dense<0.000000e+00> : vector<128xf32>
    %19 = vector.multi_reduction <add>, %18, %cst_7 [1] : vector<128x256xf32> to vector<128xf32>
    %20 = vector.shape_cast %19 : vector<128xf32> to vector<128x1xf32>
    %21 = arith.truncf %18 : vector<128x256xf32> to vector<128x256xbf16>
    %cst_8 = arith.constant dense<0.000000e+00> : vector<128x64xf32>
    %22 = tpu.matmul %21, %10, %cst_8 {dimension_numbers = #tpu.dot_dimension_numbers<[1], [0], [0], [1], [0, 0, 1, 1], [], []>} : vector<128x256xbf16>, vector<256x64xbf16>, vector<128x64xf32> -> vector<128x64xf32>
    %23 = tpu.reciprocal %20 {approx = true} : vector<128x1xf32> -> vector<128x1xf32>
    %24 = vector.broadcast %23 : vector<128x1xf32> to vector<128x64xf32>
    %25 = arith.mulf %22, %24 : vector<128x64xf32>
    %26 = arith.truncf %25 : vector<128x64xf32> to vector<128x64xbf16>
    %c0_9 = arith.constant 0 : index
    %c0_10 = arith.constant 0 : index
    %c0_11 = arith.constant 0 : index
    %27 = vector.load %arg6[%c0_9, %c0_10, %c0_11] : memref<2x64x128xbf16, #tpu.memory_space<vmem>>, vector<1x64x128xbf16>
    %28 = vector.shape_cast %27 : vector<1x64x128xbf16> to vector<64x128xbf16>
    %cst_12 = arith.constant dense<0.000000e+00> : vector<128x128xf32>
    %29 = tpu.matmul %26, %28, %cst_12 {dimension_numbers = #tpu.dot_dimension_numbers<[1], [0], [0], [1], [0, 0, 1, 1], [], []>} : vector<128x64xbf16>, vector<64x128xbf16>, vector<128x128xf32> -> vector<128x128xf32>
    %30 = arith.index_cast %4 : i32 to index
    %c64 = arith.constant 64 : index
    %31 = vector.load %arg11[%30, %c64] : memref<256x384xbf16, #tpu.memory_space<vmem>>, vector<128x64xbf16>
    %c0_13 = arith.constant 0 : index
    %c192 = arith.constant 192 : index
    %32 = vector.load %arg11[%c0_13, %c192] : memref<256x384xbf16, #tpu.memory_space<vmem>>, vector<256x64xbf16>
    %c0_14 = arith.constant 0 : index
    %c320 = arith.constant 320 : index
    %33 = vector.load %arg11[%c0_14, %c320] : memref<256x384xbf16, #tpu.memory_space<vmem>>, vector<256x64xbf16>
    %cst_15 = arith.constant dense<0.000000e+00> : vector<128x256xf32>
    %34 = tpu.matmul %31, %32, %cst_15 {dimension_numbers = #tpu.dot_dimension_numbers<[1], [1], [0], [0], [0, 0, 1, 0], [], []>} : vector<128x64xbf16>, vector<256x64xbf16>, vector<128x256xf32> -> vector<128x256xf32>
    %35 = vector.broadcast %6 : vector<1x256xf32> to vector<128x256xf32>
    %36 = arith.addf %34, %35 : vector<128x256xf32>
    %cst_16 = arith.constant dense<0xFF800000> : vector<128xf32>
    %37 = vector.multi_reduction <maximumf>, %36, %cst_16 [1] : vector<128x256xf32> to vector<128xf32>
    %38 = vector.shape_cast %37 : vector<128xf32> to vector<128x1xf32>
    %39 = vector.broadcast %38 : vector<128x1xf32> to vector<128x256xf32>
    %40 = arith.subf %36, %39 : vector<128x256xf32>
    %41 = math.exp %40 : vector<128x256xf32>
    %cst_17 = arith.constant dense<0.000000e+00> : vector<128xf32>
    %42 = vector.multi_reduction <add>, %41, %cst_17 [1] : vector<128x256xf32> to vector<128xf32>
    %43 = vector.shape_cast %42 : vector<128xf32> to vector<128x1xf32>
    %44 = arith.truncf %41 : vector<128x256xf32> to vector<128x256xbf16>
    %cst_18 = arith.constant dense<0.000000e+00> : vector<128x64xf32>
    %45 = tpu.matmul %44, %33, %cst_18 {dimension_numbers = #tpu.dot_dimension_numbers<[1], [0], [0], [1], [0, 0, 1, 1], [], []>} : vector<128x256xbf16>, vector<256x64xbf16>, vector<128x64xf32> -> vector<128x64xf32>
    %46 = tpu.reciprocal %43 {approx = true} : vector<128x1xf32> -> vector<128x1xf32>
    %47 = vector.broadcast %46 : vector<128x1xf32> to vector<128x64xf32>
    %48 = arith.mulf %45, %47 : vector<128x64xf32>
    %49 = arith.truncf %48 : vector<128x64xf32> to vector<128x64xbf16>
    %c1 = arith.constant 1 : index
    %c0_19 = arith.constant 0 : index
    %c0_20 = arith.constant 0 : index
    %50 = vector.load %arg6[%c1, %c0_19, %c0_20] : memref<2x64x128xbf16, #tpu.memory_space<vmem>>, vector<1x64x128xbf16>
    %51 = vector.shape_cast %50 : vector<1x64x128xbf16> to vector<64x128xbf16>
    %cst_21 = arith.constant dense<0.000000e+00> : vector<128x128xf32>
    %52 = tpu.matmul %49, %51, %cst_21 {dimension_numbers = #tpu.dot_dimension_numbers<[1], [0], [0], [1], [0, 0, 1, 1], [], []>} : vector<128x64xbf16>, vector<64x128xbf16>, vector<128x128xf32> -> vector<128x128xf32>
    %53 = arith.addf %29, %52 : vector<128x128xf32>
    %c0_22 = arith.constant 0 : index
    %c0_23 = arith.constant 0 : index
    %54 = vector.load %arg7[%c0_22, %c0_23] : memref<1x128xf32, #tpu.memory_space<vmem>>, vector<1x128xf32>
    %55 = vector.broadcast %54 : vector<1x128xf32> to vector<128x128xf32>
    %56 = arith.addf %53, %55 : vector<128x128xf32>
    %c0_24 = arith.constant 0 : index
    %57 = arith.index_cast %4 : i32 to index
    %c0_25 = arith.constant 0 : index
    %58 = vector.load %arg2[%c0_24, %57, %c0_25] : memref<1x256x128xf32, #tpu.memory_space<vmem>>, vector<1x128x128xf32>
    %59 = vector.shape_cast %58 : vector<1x128x128xf32> to vector<128x128xf32>
    %60 = arith.addf %56, %59 : vector<128x128xf32>
    %cst_26 = arith.constant dense<0.000000e+00> : vector<128xf32>
    %61 = vector.multi_reduction <add>, %60, %cst_26 [1] : vector<128x128xf32> to vector<128xf32>
    %62 = vector.shape_cast %61 : vector<128xf32> to vector<128x1xf32>
    %cst_27 = arith.constant 1.280000e+02 : f32
    %63 = vector.broadcast %cst_27 : f32 to vector<128x1xf32>
    %64 = arith.divf %62, %63 : vector<128x1xf32>
    %65 = vector.broadcast %64 : vector<128x1xf32> to vector<128x128xf32>
    %66 = arith.subf %60, %65 : vector<128x128xf32>
    %67 = vector.broadcast %64 : vector<128x1xf32> to vector<128x128xf32>
    %68 = arith.subf %60, %67 : vector<128x128xf32>
    %69 = arith.mulf %66, %68 : vector<128x128xf32>
    %cst_28 = arith.constant dense<0.000000e+00> : vector<128xf32>
    %70 = vector.multi_reduction <add>, %69, %cst_28 [1] : vector<128x128xf32> to vector<128xf32>
    %71 = vector.shape_cast %70 : vector<128xf32> to vector<128x1xf32>
    %cst_29 = arith.constant 1.280000e+02 : f32
    %72 = vector.broadcast %cst_29 : f32 to vector<128x1xf32>
    %73 = arith.divf %71, %72 : vector<128x1xf32>
    %74 = vector.broadcast %64 : vector<128x1xf32> to vector<128x128xf32>
    %75 = arith.subf %60, %74 : vector<128x128xf32>
    %cst_30 = arith.constant 9.99999996E-13 : f32
    %76 = vector.broadcast %cst_30 : f32 to vector<128x1xf32>
    %77 = arith.addf %73, %76 : vector<128x1xf32>
    %78 = math.rsqrt %77 : vector<128x1xf32>
    %79 = vector.broadcast %78 : vector<128x1xf32> to vector<128x128xf32>
    %80 = arith.mulf %75, %79 : vector<128x128xf32>
    %c0_31 = arith.constant 0 : index
    %c0_32 = arith.constant 0 : index
    %81 = vector.load %arg8[%c0_31, %c0_32] : memref<1x128xf32, #tpu.memory_space<vmem>>, vector<1x128xf32>
    %82 = vector.broadcast %81 : vector<1x128xf32> to vector<128x128xf32>
    %83 = arith.mulf %80, %82 : vector<128x128xf32>
    %c0_33 = arith.constant 0 : index
    %c0_34 = arith.constant 0 : index
    %84 = vector.load %arg9[%c0_33, %c0_34] : memref<1x128xf32, #tpu.memory_space<vmem>>, vector<1x128xf32>
    %85 = vector.broadcast %84 : vector<1x128xf32> to vector<128x128xf32>
    %86 = arith.addf %83, %85 : vector<128x128xf32>
    %c0_35 = arith.constant 0 : index
    %c0_36 = arith.constant 0 : index
    %c0_37 = arith.constant 0 : index
    %87 = vector.load %arg10[%c0_35, %c0_36, %c0_37] : memref<1x128x128xf32, #tpu.memory_space<vmem>>, vector<1x128x128xf32>
    %88 = vector.shape_cast %87 : vector<1x128x128xf32> to vector<128x128xf32>
    %89 = vector.shape_cast %86 : vector<128x128xf32> to vector<1x128x128xf32>
    tpu.vector_store %arg10[%c0_35, %c0_36, %c0_37], %89 {strides = array<i32>} : memref<1x128x128xf32, #tpu.memory_space<vmem>>, vector<1x128x128xf32>,
    return
  }
  func.func @transform_0(%arg0: i32, %arg1: i32) -> (i32, i32, i32) {
    %c0_i32 = arith.constant 0 : i32
    %c0_i32_0 = arith.constant 0 : i32
    %c0_i32_1 = arith.constant 0 : i32
    return %arg0, %c0_i32, %c0_i32_0 : i32, i32, i32
  }
  func.func @transform_1(%arg0: i32, %arg1: i32) -> (i32, i32, i32) {
    %c0_i32 = arith.constant 0 : i32
    %c0_i32_0 = arith.constant 0 : i32
    %c0_i32_1 = arith.constant 0 : i32
    return %arg0, %c0_i32, %c0_i32_0 : i32, i32, i32
  }
  func.func @transform_2(%arg0: i32, %arg1: i32) -> (i32, i32) {
    %c0_i32 = arith.constant 0 : i32
    %c0_i32_0 = arith.constant 0 : i32
    %c0_i32_1 = arith.constant 0 : i32
    return %c0_i32, %c0_i32_0 : i32, i32
  }
  func.func @transform_3(%arg0: i32, %arg1: i32) -> (i32, i32) {
    %c0_i32 = arith.constant 0 : i32
    %c0_i32_0 = arith.constant 0 : i32
    %c0_i32_1 = arith.constant 0 : i32
    return %c0_i32, %c0_i32_0 : i32, i32
  }
  func.func @transform_4(%arg0: i32, %arg1: i32) -> (i32, i32, i32) {
    %c0_i32 = arith.constant 0 : i32
    %c0_i32_0 = arith.constant 0 : i32
    %c0_i32_1 = arith.constant 0 : i32
    %c0_i32_2 = arith.constant 0 : i32
    return %c0_i32, %c0_i32_0, %c0_i32_1 : i32, i32, i32
  }
  func.func @transform_5(%arg0: i32, %arg1: i32) -> (i32, i32) {
    %c0_i32 = arith.constant 0 : i32
    %c0_i32_0 = arith.constant 0 : i32
    %c0_i32_1 = arith.constant 0 : i32
    return %c0_i32, %c0_i32_0 : i32, i32
  }
  func.func @transform_6(%arg0: i32, %arg1: i32) -> (i32, i32) {
    %c0_i32 = arith.constant 0 : i32
    %c0_i32_0 = arith.constant 0 : i32
    %c0_i32_1 = arith.constant 0 : i32
    return %c0_i32, %c0_i32_0 : i32, i32
  }
  func.func @transform_7(%arg0: i32, %arg1: i32) -> (i32, i32) {
    %c0_i32 = arith.constant 0 : i32
    %c0_i32_0 = arith.constant 0 : i32
    %c0_i32_1 = arith.constant 0 : i32
    return %c0_i32, %c0_i32_0 : i32, i32
  }
  func.func @transform_8(%arg0: i32, %arg1: i32) -> (i32, i32, i32) {
    %c0_i32 = arith.constant 0 : i32
    %c0_i32_0 = arith.constant 0 : i32
    return %arg0, %arg1, %c0_i32 : i32, i32, i32
  }
}

</mosaic_0001>

<llo_original>
// kernel: tpu_custom_call.1
$region0: #{tpu_custom_call.1}
  #allocation0 [shape = 'u32[]', space=smem, size = 0x4, offset = 0x4, fixed_abs, tag = 'smem constant byte address 0x4 - core index']
  #allocation1 [shape = 'u32[144,128]{1,0:T(1,128)}', space=vmem, size = 0x12000, scoped, tag = 'internal scratch']
  #allocation2 [shape = 'bf16[256,384]{1,0:T(16,128)(2,1)}', space=vmem, size = 0x30000, scoped, tag = 'scratch operand']
  %s0 = inlined_call_operand.hbm [shape: f32[2,256,128], index: 0, kind: input, shape index: {}]
  %s1 = inlined_call_operand.hbm [shape: f32[2,1,256], index: 1, kind: input, shape index: {}]
  %s2 = inlined_call_operand.hbm [shape: bf16[128,384], index: 2, kind: input, shape index: {}]
  %s3 = inlined_call_operand.hbm [shape: f32[1,384], index: 3, kind: input, shape index: {}]
  %s4 = inlined_call_operand.hbm [shape: bf16[2,64,128], index: 4, kind: input, shape index: {}]
  %s5 = inlined_call_operand.hbm [shape: f32[1,128], index: 5, kind: input, shape index: {}]
  %s6 = inlined_call_operand.hbm [shape: f32[1,128], index: 6, kind: input, shape index: {}]
  %s7 = inlined_call_operand.hbm [shape: f32[1,128], index: 7, kind: input, shape index: {}]
  %s8 = inlined_call_operand.hbm [shape: f32[2,256,128], index: 8, kind: output, shape index: {}]
  %s9 = sld [smem:[#allocation0]]
  $region101: #{tpu_custom_call.1} parent=0
    _
  %s11 = ssub.s32 1, %s9
  %s12 = scalar_select 0, %s11, %s9
  $region1: #{tpu_custom_call.1} parent=0
    #allocation3 [shape = 'u8[262144]{0}', space=vmem, size = 0x40000, scoped, tag = 'input window, operand 0']
    #allocation4 [shape = 's32[2]{0}', space=sflag, size = 0x8, scoped, tag = 'scoped memory for tpu_custom_call.1']
    #allocation5 [shape = 's32[2]{0}', space=sflag, size = 0x8, scoped, tag = 'scoped memory for tpu_custom_call.1']
    #allocation6 [shape = 'u8[2048]{0}', space=vmem, size = 0x800, scoped, tag = 'input window, operand 1']
    #allocation7 [shape = 's32[2]{0}', space=sflag, size = 0x8, scoped, tag = 'scoped memory for tpu_custom_call.1']
    #allocation8 [shape = 'u8[98304]{0}', space=vmem, size = 0x18000, scoped, tag = 'input window, operand 2, single buffered']
    #allocation9 [shape = 'u8[1536]{0}', space=vmem, size = 0x800, scoped, tag = 'input window, operand 3, single buffered']
    #allocation10 [shape = 's32[1]{0}', space=sflag, size = 0x4, scoped, tag = 'scoped memory for tpu_custom_call.1']
    #allocation11 [shape = 'u8[32768]{0}', space=vmem, size = 0x8000, scoped, tag = 'input window, operand 4, single buffered']
    #allocation12 [shape = 'u8[512]{0}', space=vmem, size = 0x400, scoped, tag = 'input window, operand 5, single buffered']
    #allocation13 [shape = 's32[1]{0}', space=sflag, size = 0x4, scoped, tag = 'scoped memory for tpu_custom_call.1']
    #allocation14 [shape = 'u8[512]{0}', space=vmem, size = 0x400, scoped, tag = 'input window, operand 6, single buffered']
    #allocation15 [shape = 'u8[512]{0}', space=vmem, size = 0x400, scoped, tag = 'input window, operand 7, single buffered']
    #allocation16 [shape = 's32[1]{0}', space=sflag, size = 0x4, scoped, tag = 'scoped memory for tpu_custom_call.1']
    #allocation17 [shape = 'u8[131072]{0}', space=vmem, size = 0x20000, scoped, tag = 'output window, operand 0']
    %13 = vsyncpa [#allocation4], 0
    %s14 = scalar_lea.sflag [#allocation4], 1
    %15 = vsyncpa %s14, 0
    %16 = vsyncpa [#allocation7], 0
    %s17 = scalar_lea.sflag [#allocation7], 1
    %18 = vsyncpa %s17, 0
    %19 = vsyncpa [#allocation10], 0
    %20 = vsyncpa [#allocation13], 0
    %21 = vsyncpa [#allocation16], 0
    %22 = vsyncpa [#allocation5], 0
    %s23 = scalar_lea.sflag [#allocation5], 1
    %24 = vsyncpa %s23, 0
    loop: start=0, step=1, limit=6
    $region2: #{tpu_custom_call.1} parent=1 // loop_pre_header
      _
    $region3: #{tpu_custom_call.1} parent=1 // loop_header
      %s26 = sphi 0, %s30
      %p27 = scmp.ge.s32.totalorder %s26, 6
      %s33 = sphi 0, %s45
      %s34 = sphi 0, %s41
      %s35 = sphi 0, %s33
      %s36 = sphi 0, %s34
      %s37 = sphi 0, %s35
      %s38 = sphi 0, %s36
      %s48 = sphi 0, %s50
      %s51 = sphi 0, %s48
      %s52 = sphi 0, %s51
      %s68 = sphi 0, %s52
      %s74 = sphi 0, %s76
      %s77 = sphi 0, %s74
      %s78 = sphi 0, %s77
      %s94 = sphi 0, %s78
      %s98 = sphi 0, %s98
      %s100 = sphi 0, %s98
      %s101 = sphi 0, %s100
      %s115 = sphi 0, %s101
      %s119 = sphi 0, %s119
      %s121 = sphi 0, %s119
      %s122 = sphi 0, %s121
      %s136 = sphi 0, %s122
      %s140 = sphi 0, %s140
      %s142 = sphi 0, %s140
      %s143 = sphi 0, %s142
      %s157 = sphi 0, %s143
      %s161 = sphi 0, %s161
      %s163 = sphi 0, %s161
      %s164 = sphi 0, %s163
      %s178 = sphi 0, %s164
      %s182 = sphi 0, %s182
      %s184 = sphi 0, %s182
      %s185 = sphi 0, %s184
      %s199 = sphi 0, %s185
      %s203 = sphi 0, %s203
      %s205 = sphi 0, %s203
      %s206 = sphi 0, %s205
      %s220 = sphi 0, %s206
      %s228 = sphi 0, %s230
      %s231 = sphi 0, %s228
      %s232 = sphi 0, %s231
      %s248 = sphi 0, %s232
    $region4: #{tpu_custom_call.1} parent=1 // loop_header_branch
      %29 = sbr.rel (%p27) target = $region8
    $region5: #{tpu_custom_call.1} parent=1 // loop_body
      %s31 = ssub.s32 %s26, 1
      %s32 = ssub.s32 %s26, 2
      %s39 = sadd.s32 1, %s34
      %p40 = scmp.ge.s32.totalorder %s39, 2
      %s41 = scalar_select %p40, 0, %s39
      %s42 = sadd.s32 1, %s33
      %s43 = scalar_select %p40, %s42, %s33
      %p44 = scmp.ge.s32.totalorder %s43, 2
      %s45 = scalar_select %p44, 0, %s43
      %s46 = ssub.s32 %s33, %s45
      %p47 = scmp.eq.s32.totalorder %s46, 0
      %s49 = sadd.s32 %s48, 1
      %s50 = scalar_select %p47, %s48, %s49
      %p53 = pneg %p47
      %p54 = scmp.eq.s32.totalorder %s26, 3
      %p55 = por %p53, %p54
      %p56 = scmp.ne.s32.totalorder %s48, %s51
      %p57 = scmp.eq.s32.totalorder %s26, 0
      %p58 = por %p56, %p57
      %p59 = scmp.ne.s32.totalorder %s48, %s51
      %p60 = scmp.eq.s32.totalorder %s31, 3
      %p61 = por %p59, %p60
      %p62 = scmp.ne.s32.totalorder %s51, %s52
      %p63 = scmp.eq.s32.totalorder %s31, 0
      %p64 = por %p62, %p63
      %p65 = scmp.ne.s32.totalorder %s51, %s52
      %p66 = scmp.eq.s32.totalorder %s32, 3
      %p67 = por %p65, %p66
      %p69 = scmp.ne.s32.totalorder %s52, %s68
      %p70 = scmp.eq.s32.totalorder %s32, 0
      %p71 = por %p69, %p70
      %s72 = ssub.s32 %s33, %s45
      %p73 = scmp.eq.s32.totalorder %s72, 0
      %s75 = sadd.s32 %s74, 1
      %s76 = scalar_select %p73, %s74, %s75
      %p79 = pneg %p73
      %p80 = scmp.eq.s32.totalorder %s26, 3
      %p81 = por %p79, %p80
      %p82 = scmp.ne.s32.totalorder %s74, %s77
      %p83 = scmp.eq.s32.totalorder %s26, 0
      %p84 = por %p82, %p83
      %p85 = scmp.ne.s32.totalorder %s74, %s77
      %p86 = scmp.eq.s32.totalorder %s31, 3
      %p87 = por %p85, %p86
      %p88 = scmp.ne.s32.totalorder %s77, %s78
      %p89 = scmp.eq.s32.totalorder %s31, 0
      %p90 = por %p88, %p89
      %p91 = scmp.ne.s32.totalorder %s77, %s78
      %p92 = scmp.eq.s32.totalorder %s32, 3
      %p93 = por %p91, %p92
      %p95 = scmp.ne.s32.totalorder %s78, %s94
      %p96 = scmp.eq.s32.totalorder %s32, 0
      %p97 = por %p95, %p96
      %s99 = sadd.s32 %s98, 1
      %p102 = scmp.eq.s32.totalorder %s26, 3
      %p103 = scmp.ne.s32.totalorder %s98, %s100
      %p104 = scmp.eq.s32.totalorder %s26, 0
      %p105 = por %p103, %p104
      %p106 = scmp.ne.s32.totalorder %s98, %s100
      %p107 = scmp.eq.s32.totalorder %s31, 3
      %p108 = por %p106, %p107
      %p109 = scmp.ne.s32.totalorder %s100, %s101
      %p110 = scmp.eq.s32.totalorder %s31, 0
      %p111 = por %p109, %p110
      %p112 = scmp.ne.s32.totalorder %s100, %s101
      %p113 = scmp.eq.s32.totalorder %s32, 3
      %p114 = por %p112, %p113
      %p116 = scmp.ne.s32.totalorder %s101, %s115
      %p117 = scmp.eq.s32.totalorder %s32, 0
      %p118 = por %p116, %p117
      %s120 = sadd.s32 %s119, 1
      %p123 = scmp.eq.s32.totalorder %s26, 3
      %p124 = scmp.ne.s32.totalorder %s119, %s121
      %p125 = scmp.eq.s32.totalorder %s26, 0
      %p126 = por %p124, %p125
      %p127 = scmp.ne.s32.totalorder %s119, %s121
      %p128 = scmp.eq.s32.totalorder %s31, 3
      %p129 = por %p127, %p128
      %p130 = scmp.ne.s32.totalorder %s121, %s122
      %p131 = scmp.eq.s32.totalorder %s31, 0
      %p132 = por %p130, %p131
      %p133 = scmp.ne.s32.totalorder %s121, %s122
      %p134 = scmp.eq.s32.totalorder %s32, 3
      %p135 = por %p133, %p134
      %p137 = scmp.ne.s32.totalorder %s122, %s136
      %p138 = scmp.eq.s32.totalorder %s32, 0
      %p139 = por %p137, %p138
      %s141 = sadd.s32 %s140, 1
      %p144 = scmp.eq.s32.totalorder %s26, 3
      %p145 = scmp.ne.s32.totalorder %s140, %s142
      %p146 = scmp.eq.s32.totalorder %s26, 0
      %p147 = por %p145, %p146
      %p148 = scmp.ne.s32.totalorder %s140, %s142
      %p149 = scmp.eq.s32.totalorder %s31, 3
      %p150 = por %p148, %p149
      %p151 = scmp.ne.s32.totalorder %s142, %s143
      %p152 = scmp.eq.s32.totalorder %s31, 0
      %p153 = por %p151, %p152
      %p154 = scmp.ne.s32.totalorder %s142, %s143
      %p155 = scmp.eq.s32.totalorder %s32, 3
      %p156 = por %p154, %p155
      %p158 = scmp.ne.s32.totalorder %s143, %s157
      %p159 = scmp.eq.s32.totalorder %s32, 0
      %p160 = por %p158, %p159
      %s162 = sadd.s32 %s161, 1
      %p165 = scmp.eq.s32.totalorder %s26, 3
      %p166 = scmp.ne.s32.totalorder %s161, %s163
      %p167 = scmp.eq.s32.totalorder %s26, 0
      %p168 = por %p166, %p167
      %p169 = scmp.ne.s32.totalorder %s161, %s163
      %p170 = scmp.eq.s32.totalorder %s31, 3
      %p171 = por %p169, %p170
      %p172 = scmp.ne.s32.totalorder %s163, %s164
      %p173 = scmp.eq.s32.totalorder %s31, 0
      %p174 = por %p172, %p173
      %p175 = scmp.ne.s32.totalorder %s163, %s164
      %p176 = scmp.eq.s32.totalorder %s32, 3
      %p177 = por %p175, %p176
      %p179 = scmp.ne.s32.totalorder %s164, %s178
      %p180 = scmp.eq.s32.totalorder %s32, 0
      %p181 = por %p179, %p180
      %s183 = sadd.s32 %s182, 1
      %p186 = scmp.eq.s32.totalorder %s26, 3
      %p187 = scmp.ne.s32.totalorder %s182, %s184
      %p188 = scmp.eq.s32.totalorder %s26, 0
      %p189 = por %p187, %p188
      %p190 = scmp.ne.s32.totalorder %s182, %s184
      %p191 = scmp.eq.s32.totalorder %s31, 3
      %p192 = por %p190, %p191
      %p193 = scmp.ne.s32.totalorder %s184, %s185
      %p194 = scmp.eq.s32.totalorder %s31, 0
      %p195 = por %p193, %p194
      %p196 = scmp.ne.s32.totalorder %s184, %s185
      %p197 = scmp.eq.s32.totalorder %s32, 3
      %p198 = por %p196, %p197
      %p200 = scmp.ne.s32.totalorder %s185, %s199
      %p201 = scmp.eq.s32.totalorder %s32, 0
      %p202 = por %p200, %p201
      %s204 = sadd.s32 %s203, 1
      %p207 = scmp.eq.s32.totalorder %s26, 3
      %p208 = scmp.ne.s32.totalorder %s203, %s205
      %p209 = scmp.eq.s32.totalorder %s26, 0
      %p210 = por %p208, %p209
      %p211 = scmp.ne.s32.totalorder %s203, %s205
      %p212 = scmp.eq.s32.totalorder %s31, 3
      %p213 = por %p211, %p212
      %p214 = scmp.ne.s32.totalorder %s205, %s206
      %p215 = scmp.eq.s32.totalorder %s31, 0
      %p216 = por %p214, %p215
      %p217 = scmp.ne.s32.totalorder %s205, %s206
      %p218 = scmp.eq.s32.totalorder %s32, 3
      %p219 = por %p217, %p218
      %p221 = scmp.ne.s32.totalorder %s206, %s220
      %p222 = scmp.eq.s32.totalorder %s32, 0
      %p223 = por %p221, %p222
      %s224 = ssub.s32 %s33, %s45
      %s225 = ssub.s32 %s34, %s41
      %s226 = sor.u32 %s224, %s225
      %p227 = scmp.eq.s32.totalorder %s226, 0
      %s229 = sadd.s32 %s228, 1
      %s230 = scalar_select %p227, %s228, %s229
      %p233 = pneg %p227
      %p234 = scmp.eq.s32.totalorder %s26, 3
      %p235 = por %p233, %p234
      %p236 = scmp.ne.s32.totalorder %s228, %s231
      %p237 = scmp.eq.s32.totalorder %s26, 0
      %p238 = por %p236, %p237
      %p239 = scmp.ne.s32.totalorder %s228, %s231
      %p240 = scmp.eq.s32.totalorder %s31, 3
      %p241 = por %p239, %p240
      %p242 = scmp.ne.s32.totalorder %s231, %s232
      %p243 = scmp.eq.s32.totalorder %s31, 0
      %p244 = por %p242, %p243
      %p245 = scmp.ne.s32.totalorder %s231, %s232
      %p246 = scmp.eq.s32.totalorder %s32, 3
      %p247 = por %p245, %p246
      %p249 = scmp.ne.s32.totalorder %s232, %s248
      %p250 = scmp.eq.s32.totalorder %s32, 0
      %p251 = por %p249, %p250
      %p252 = scmp.le.s32.totalorder 1, %s26
      %p253 = scmp.lt.s32.totalorder %s26, 5
      %p254 = pnand %p252, %p253
      %p255 = pneg %p254
      // Predicated region
      $region9: #{tpu_custom_call.1} parent=5 // pred_check
        _
      $region10: #{tpu_custom_call.1} parent=5 // pred_check_branch
        %257 = sbr.rel (%p254) target = $region12
      $region11: #{tpu_custom_call.1} parent=5 // pred_region
        %s258 = ssub.s32 %s26, 1
        // Predicated region
        $region13: #{tpu_custom_call.1} parent=11 // pred_check
          %p259 = pneg %p111
        $region14: #{tpu_custom_call.1} parent=11 // pred_check_branch
          %261 = sbr.rel (%p259) target = $region16
        $region15: #{tpu_custom_call.1} parent=11 // pred_region
          %s263 = ssub.s32 3072, 3072
          %264 = vsyncadd [#allocation7], %s263
          %s265 = sshll.u32 [#allocation8], 4
          %s266 = int_to_ptr.vmem [resolvable:$true] %s265
          %271 = dma.hbm_to_vmem [thread:$0]  %s2, 3072, %s266, [#allocation7], 192, 192, 12
        $region16: #{tpu_custom_call.1} parent=11 // pred_fallthru
          _
        // Predicated region
        $region17: #{tpu_custom_call.1} parent=11 // pred_check
          %p272 = pneg %p132
        $region18: #{tpu_custom_call.1} parent=11 // pred_check_branch
          %274 = sbr.rel (%p272) target = $region20
        $region19: #{tpu_custom_call.1} parent=11 // pred_region
          %s276 = ssub.s32 48, 48
          %277 = vsyncadd [#allocation10], %s276
          %s279 = sshll.u32 [#allocation9], 4
          %s280 = int_to_ptr.vmem [resolvable:$true] %s279
          %282 = dma.hbm_to_vmem [thread:$0]  %s3, 48, %s280, [#allocation10]
        $region20: #{tpu_custom_call.1} parent=11 // pred_fallthru
          _
        // Predicated region
        $region21: #{tpu_custom_call.1} parent=11 // pred_check
          %p283 = pneg %p153
        $region22: #{tpu_custom_call.1} parent=11 // pred_check_branch
          %285 = sbr.rel (%p283) target = $region24
        $region23: #{tpu_custom_call.1} parent=11 // pred_region
          %s287 = ssub.s32 1024, 1024
          %288 = vsyncadd [#allocation10], %s287
          %s289 = sshll.u32 [#allocation11], 4
          %s290 = int_to_ptr.vmem [resolvable:$true] %s289
          %295 = dma.hbm_to_vmem [thread:$0]  %s4, 1024, %s290, [#allocation10], 64, 64, 4
        $region24: #{tpu_custom_call.1} parent=11 // pred_fallthru
          _
        // Predicated region
        $region25: #{tpu_custom_call.1} parent=11 // pred_check
          %p296 = pneg %p174
        $region26: #{tpu_custom_call.1} parent=11 // pred_check_branch
          %298 = sbr.rel (%p296) target = $region28
        $region27: #{tpu_custom_call.1} parent=11 // pred_region
          %s300 = ssub.s32 16, 16
          %301 = vsyncadd [#allocation13], %s300
          %s303 = sshll.u32 [#allocation12], 4
          %s304 = int_to_ptr.vmem [resolvable:$true] %s303
          %306 = dma.hbm_to_vmem [thread:$0]  %s5, 16, %s304, [#allocation13]
        $region28: #{tpu_custom_call.1} parent=11 // pred_fallthru
          _
        // Predicated region
        $region29: #{tpu_custom_call.1} parent=11 // pred_check
          %p307 = pneg %p195
        $region30: #{tpu_custom_call.1} parent=11 // pred_check_branch
          %309 = sbr.rel (%p307) target = $region32
        $region31: #{tpu_custom_call.1} parent=11 // pred_region
          %s311 = ssub.s32 16, 16
          %312 = vsyncadd [#allocation13], %s311
          %s314 = sshll.u32 [#allocation14], 4
          %s315 = int_to_ptr.vmem [resolvable:$true] %s314
          %317 = dma.hbm_to_vmem [thread:$0]  %s6, 16, %s315, [#allocation13]
        $region32: #{tpu_custom_call.1} parent=11 // pred_fallthru
          _
        // Predicated region
        $region33: #{tpu_custom_call.1} parent=11 // pred_check
          %p318 = pneg %p216
        $region34: #{tpu_custom_call.1} parent=11 // pred_check_branch
          %320 = sbr.rel (%p318) target = $region36
        $region35: #{tpu_custom_call.1} parent=11 // pred_region
          %s322 = ssub.s32 16, 16
          %323 = vsyncadd [#allocation16], %s322
          %s325 = sshll.u32 [#allocation15], 4
          %s326 = int_to_ptr.vmem [resolvable:$true] %s325
          %328 = dma.hbm_to_vmem [thread:$0]  %s7, 16, %s326, [#allocation16]
        $region36: #{tpu_custom_call.1} parent=11 // pred_fallthru
          _
      $region12: #{tpu_custom_call.1} parent=5 // pred_fallthru
        _
      %p329 = scmp.lt.s32.totalorder %s26, 4
      // Predicated region
      $region37: #{tpu_custom_call.1} parent=5 // pred_check
        %p330 = pneg %p329
      $region38: #{tpu_custom_call.1} parent=5 // pred_check_branch
        %332 = sbr.rel (%p330) target = $region40
      $region39: #{tpu_custom_call.1} parent=5 // pred_region
        // Predicated region
        $region41: #{tpu_custom_call.1} parent=39 // pred_check
          %p333 = pneg %p58
        $region42: #{tpu_custom_call.1} parent=39 // pred_check_branch
          %335 = sbr.rel (%p333) target = $region44
        $region43: #{tpu_custom_call.1} parent=39 // pred_region
          %s336 = sand.u32 %s48, 1
          %s337 = scalar_lea.sflag [#allocation4], %s336
          %s338 = sand.u32 %s48, 1
          %s339 = smul.addr %s338, 256
          %s340 = scalar_lea.vmem [#allocation3], %s339
          %s342 = ssub.s32 4096, 4096
          %343 = vsyncadd %s337, %s342
          %s344 = smul.addr %s33, 32
          %s345 = smul.addr %s344, 128
          %s346 = scalar_lea.hbm %s0, %s345
          %s347 = sshll.u32 %s340, 4
          %s348 = int_to_ptr.vmem [resolvable:$true] %s347
          %353 = dma.hbm_to_vmem [thread:$0]  %s346, 4096, %s348, %s337, 128, 128, 8
        $region44: #{tpu_custom_call.1} parent=39 // pred_fallthru
          _
        // Predicated region
        $region45: #{tpu_custom_call.1} parent=39 // pred_check
          %p354 = pneg %p84
        $region46: #{tpu_custom_call.1} parent=39 // pred_check_branch
          %356 = sbr.rel (%p354) target = $region48
        $region47: #{tpu_custom_call.1} parent=39 // pred_region
          %s357 = sand.u32 %s26, 1
          %s358 = scalar_lea.sflag [#allocation7], %s357
          %s359 = sand.u32 %s74, 1
          %s360 = smul.addr %s359, 2
          %s361 = scalar_lea.vmem [#allocation6], %s360
          %s363 = ssub.s32 32, 32
          %364 = vsyncadd %s358, %s363
          %s365 = smul.addr %s33, 2
          %s366 = smul.addr %s365, 16
          %s367 = scalar_lea.hbm %s1, %s366
          %s369 = sshll.u32 %s361, 4
          %s370 = int_to_ptr.vmem [resolvable:$true] %s369
          %372 = dma.hbm_to_vmem [thread:$0]  %s367, 32, %s370, %s358
        $region48: #{tpu_custom_call.1} parent=39 // pred_fallthru
          _
      $region40: #{tpu_custom_call.1} parent=5 // pred_fallthru
        _
      %p373 = scmp.le.s32.totalorder 1, %s26
      %p374 = scmp.lt.s32.totalorder %s26, 5
      %p375 = pnand %p373, %p374
      %p376 = pneg %p375
      // Predicated region
      $region49: #{tpu_custom_call.1} parent=5 // pred_check
        _
      $region50: #{tpu_custom_call.1} parent=5 // pred_check_branch
        %378 = sbr.rel (%p375) target = $region52
      $region51: #{tpu_custom_call.1} parent=5 // pred_region
        %s379 = ssub.s32 %s26, 1
        %s380 = sand.u32 %s51, 1
        %s381 = scalar_lea.sflag [#allocation4], %s380
        %s382 = sand.u32 %s51, 1
        %s383 = smul.addr %s382, 256
        %s384 = scalar_lea.vmem [#allocation3], %s383
        // Predicated region
        $region53: #{tpu_custom_call.1} parent=51 // pred_check
          %p385 = pneg %p64
        $region54: #{tpu_custom_call.1} parent=51 // pred_check_branch
          %387 = sbr.rel (%p385) target = $region56
        $region55: #{tpu_custom_call.1} parent=51 // pred_region
          %388 = dma.done %s381, 4096
        $region56: #{tpu_custom_call.1} parent=51 // pred_fallthru
          _
        %s389 = sand.u32 %s31, 1
        %s390 = scalar_lea.sflag [#allocation7], %s389
        %s391 = sand.u32 %s77, 1
        %s392 = smul.addr %s391, 2
        %s393 = scalar_lea.vmem [#allocation6], %s392
        // Predicated region
        $region57: #{tpu_custom_call.1} parent=51 // pred_check
          %p394 = pneg %p90
        $region58: #{tpu_custom_call.1} parent=51 // pred_check_branch
          %396 = sbr.rel (%p394) target = $region60
        $region59: #{tpu_custom_call.1} parent=51 // pred_region
          %397 = dma.done %s390, 32
        $region60: #{tpu_custom_call.1} parent=51 // pred_fallthru
          _
        // Predicated region
        $region61: #{tpu_custom_call.1} parent=51 // pred_check
          %p398 = pneg %p111
        $region62: #{tpu_custom_call.1} parent=51 // pred_check_branch
          %400 = sbr.rel (%p398) target = $region64
        $region63: #{tpu_custom_call.1} parent=51 // pred_region
          %401 = dma.done [#allocation7], 3072
        $region64: #{tpu_custom_call.1} parent=51 // pred_fallthru
          _
        // Predicated region
        $region65: #{tpu_custom_call.1} parent=51 // pred_check
          %p402 = pneg %p132
        $region66: #{tpu_custom_call.1} parent=51 // pred_check_branch
          %404 = sbr.rel (%p402) target = $region68
        $region67: #{tpu_custom_call.1} parent=51 // pred_region
          %405 = dma.done [#allocation10], 48
        $region68: #{tpu_custom_call.1} parent=51 // pred_fallthru
          _
        // Predicated region
        $region69: #{tpu_custom_call.1} parent=51 // pred_check
          %p406 = pneg %p153
        $region70: #{tpu_custom_call.1} parent=51 // pred_check_branch
          %408 = sbr.rel (%p406) target = $region72
        $region71: #{tpu_custom_call.1} parent=51 // pred_region
          %409 = dma.done [#allocation10], 1024
        $region72: #{tpu_custom_call.1} parent=51 // pred_fallthru
          _
        // Predicated region
        $region73: #{tpu_custom_call.1} parent=51 // pred_check
          %p410 = pneg %p174
        $region74: #{tpu_custom_call.1} parent=51 // pred_check_branch
          %412 = sbr.rel (%p410) target = $region76
        $region75: #{tpu_custom_call.1} parent=51 // pred_region
          %413 = dma.done [#allocation13], 16
        $region76: #{tpu_custom_call.1} parent=51 // pred_fallthru
          _
        // Predicated region
        $region77: #{tpu_custom_call.1} parent=51 // pred_check
          %p414 = pneg %p195
        $region78: #{tpu_custom_call.1} parent=51 // pred_check_branch
          %416 = sbr.rel (%p414) target = $region80
        $region79: #{tpu_custom_call.1} parent=51 // pred_region
          %417 = dma.done [#allocation13], 16
        $region80: #{tpu_custom_call.1} parent=51 // pred_fallthru
          _
        // Predicated region
        $region81: #{tpu_custom_call.1} parent=51 // pred_check
          %p418 = pneg %p216
        $region82: #{tpu_custom_call.1} parent=51 // pred_check_branch
          %420 = sbr.rel (%p418) target = $region84
        $region83: #{tpu_custom_call.1} parent=51 // pred_region
          %421 = dma.done [#allocation16], 16
        $region84: #{tpu_custom_call.1} parent=51 // pred_fallthru
          _
        %s422 = sand.u32 %s51, 1
        %s423 = scalar_lea.sflag [#allocation4], %s422
        %s424 = sand.u32 %s51, 1
        %s425 = smul.addr %s424, 256
        %s426 = scalar_lea.vmem [#allocation3], %s425
        %p427 = pneg %p64
        %p428 = pneg %p61
        %s429 = sand.u32 %s31, 1
        %s430 = scalar_lea.sflag [#allocation7], %s429
        %s431 = sand.u32 %s77, 1
        %s432 = smul.addr %s431, 2
        %s433 = scalar_lea.vmem [#allocation6], %s432
        %p434 = pneg %p90
        %p435 = pneg %p87
        %p436 = pneg %p111
        %p437 = pneg %p108
        %p438 = pneg %p132
        %p439 = pneg %p129
        %p440 = pneg %p153
        %p441 = pneg %p150
        %p442 = pneg %p174
        %p443 = pneg %p171
        %p444 = pneg %p195
        %p445 = pneg %p192
        %p446 = pneg %p216
        %p447 = pneg %p213
        %p448 = pneg %p244
        %p449 = pneg %p241
        %s450 = sand.u32 %s231, 1
        %s451 = scalar_lea.sflag [#allocation5], %s450
        %s452 = sand.u32 %s231, 1
        %s453 = smul.addr %s452, 128
        %s454 = scalar_lea.vmem [#allocation17], %s453
        %s455 = smul.u32 16, %s36
        %p457 = scmp.eq.s32.totalorder %s36, 0
        // Predicated region
        $region85: #{tpu_custom_call.1} parent=51 // pred_check
          %p458 = pneg %p457
        $region86: #{tpu_custom_call.1} parent=51 // pred_check_branch
          %460 = sbr.rel (%p458) target = $region88
        $region87: #{tpu_custom_call.1} parent=51 // pred_region
          %v461 = vld [vmem:[%s384] sm:$0xff]
          %v462 = vld [vmem:[%s384 + $0x8] sm:$0xff]
          %v463 = vld [vmem:[%s384 + $0x10] sm:$0xff]
          %v464 = vld [vmem:[%s384 + $0x18] sm:$0xff]
          %v465 = vld [vmem:[%s384 + $0x20] sm:$0xff]
          %v466 = vld [vmem:[%s384 + $0x28] sm:$0xff]
          %v467 = vld [vmem:[%s384 + $0x30] sm:$0xff]
          %v468 = vld [vmem:[%s384 + $0x38] sm:$0xff]
          %v469 = vld [vmem:[%s384 + $0x40] sm:$0xff]
          %v470 = vld [vmem:[%s384 + $0x48] sm:$0xff]
          %v471 = vld [vmem:[%s384 + $0x50] sm:$0xff]
          %v472 = vld [vmem:[%s384 + $0x58] sm:$0xff]
          %v473 = vld [vmem:[%s384 + $0x60] sm:$0xff]
          %v474 = vld [vmem:[%s384 + $0x68] sm:$0xff]
          %v475 = vld [vmem:[%s384 + $0x70] sm:$0xff]
          %v476 = vld [vmem:[%s384 + $0x78] sm:$0xff]
          %v477 = vld [vmem:[%s384 + $0x80] sm:$0xff]
          %v478 = vld [vmem:[%s384 + $0x88] sm:$0xff]
          %v479 = vld [vmem:[%s384 + $0x90] sm:$0xff]
          %v480 = vld [vmem:[%s384 + $0x98] sm:$0xff]
          %v481 = vld [vmem:[%s384 + $0xa0] sm:$0xff]
          %v482 = vld [vmem:[%s384 + $0xa8] sm:$0xff]
          %v483 = vld [vmem:[%s384 + $0xb0] sm:$0xff]
          %v484 = vld [vmem:[%s384 + $0xb8] sm:$0xff]
          %v485 = vld [vmem:[%s384 + $0xc0] sm:$0xff]
          %v486 = vld [vmem:[%s384 + $0xc8] sm:$0xff]
          %v487 = vld [vmem:[%s384 + $0xd0] sm:$0xff]
          %v488 = vld [vmem:[%s384 + $0xd8] sm:$0xff]
          %v489 = vld [vmem:[%s384 + $0xe0] sm:$0xff]
          %v490 = vld [vmem:[%s384 + $0xe8] sm:$0xff]
          %v491 = vld [vmem:[%s384 + $0xf0] sm:$0xff]
          %v492 = vld [vmem:[%s384 + $0xf8] sm:$0xff]
          %v493 = vpack.c.bf16 %v462, %v461
          %v494 = vpack.c.bf16 %v464, %v463
          %v495 = vpack.c.bf16 %v466, %v465
          %v496 = vpack.c.bf16 %v468, %v467
          %v497 = vpack.c.bf16 %v470, %v469
          %v498 = vpack.c.bf16 %v472, %v471
          %v499 = vpack.c.bf16 %v474, %v473
          %v500 = vpack.c.bf16 %v476, %v475
          %v501 = vpack.c.bf16 %v478, %v477
          %v502 = vpack.c.bf16 %v480, %v479
          %v503 = vpack.c.bf16 %v482, %v481
          %v504 = vpack.c.bf16 %v484, %v483
          %v505 = vpack.c.bf16 %v486, %v485
          %v506 = vpack.c.bf16 %v488, %v487
          %v507 = vpack.c.bf16 %v490, %v489
          %v508 = vpack.c.bf16 %v492, %v491
          %v509 = vld [vmem:[#allocation8] sm:$0xff]
          %v510 = vld [vmem:[#allocation8 + $0x8] sm:$0xf]
          %v511 = vld [vmem:[#allocation8 + $0xc] sm:$0xff]
          %v512 = vld [vmem:[#allocation8 + $0x14] sm:$0xf]
          %v513 = vld [vmem:[#allocation8 + $0x18] sm:$0xff]
          %v514 = vld [vmem:[#allocation8 + $0x20] sm:$0xf]
          %v515 = vld [vmem:[#allocation8 + $0x24] sm:$0xff]
          %v516 = vld [vmem:[#allocation8 + $0x2c] sm:$0xf]
          %v517 = vld [vmem:[#allocation8 + $0x30] sm:$0xff]
          %v518 = vld [vmem:[#allocation8 + $0x38] sm:$0xf]
          %v519 = vld [vmem:[#allocation8 + $0x3c] sm:$0xff]
          %v520 = vld [vmem:[#allocation8 + $0x44] sm:$0xf]
          %v521 = vld [vmem:[#allocation8 + $0x48] sm:$0xff]
          %v522 = vld [vmem:[#allocation8 + $0x50] sm:$0xf]
          %v523 = vld [vmem:[#allocation8 + $0x54] sm:$0xff]
          %v524 = vld [vmem:[#allocation8 + $0x5c] sm:$0xf]
          %v525 = vld [vmem:[#allocation8 + $0x60] sm:$0xff]
          %v526 = vld [vmem:[#allocation8 + $0x68] sm:$0xf]
          %v527 = vld [vmem:[#allocation8 + $0x6c] sm:$0xff]
          %v528 = vld [vmem:[#allocation8 + $0x74] sm:$0xf]
          %v529 = vld [vmem:[#allocation8 + $0x78] sm:$0xff]
          %v530 = vld [vmem:[#allocation8 + $0x80] sm:$0xf]
          %v531 = vld [vmem:[#allocation8 + $0x84] sm:$0xff]
          %v532 = vld [vmem:[#allocation8 + $0x8c] sm:$0xf]
          %v533 = vld [vmem:[#allocation8 + $0x90] sm:$0xff]
          %v534 = vld [vmem:[#allocation8 + $0x98] sm:$0xf]
          %v535 = vld [vmem:[#allocation8 + $0x9c] sm:$0xff]
          %v536 = vld [vmem:[#allocation8 + $0xa4] sm:$0xf]
          %v537 = vld [vmem:[#allocation8 + $0xa8] sm:$0xff]
          %v538 = vld [vmem:[#allocation8 + $0xb0] sm:$0xf]
          %v539 = vld [vmem:[#allocation8 + $0xb4] sm:$0xff]
          %v540 = vld [vmem:[#allocation8 + $0xbc] sm:$0xf]
          %v541 = vld [vmem:[#allocation9] sm:$0x7]
          %v543 = vlaneseq
          %v544 = vshrl.u32 %v543, 7
          %v545 = vsub.s32 0, %v544
          %v546 = vrot.slane %v541, %v545
          %v547 = vlaneseq
          %v548 = vshrl.u32 %v547, 7
          %v549 = vsub.s32 1, %v548
          %v550 = vrot.slane %v541, %v549
          %v551 = vlaneseq
          %v552 = vshrl.u32 %v551, 7
          %v553 = vsub.s32 2, %v552
          %v554 = vrot.slane %v541, %v553
          %v590 = vunpack.c.l.b16 %v509
          %v591 = vunpack.c.h.b16 %v509
          %v592 = vunpack.c.l.b16 %v510
          %v593 = vunpack.c.l.b16 %v511
          %v594 = vunpack.c.h.b16 %v511
          %v595 = vunpack.c.l.b16 %v512
          %v596 = vunpack.c.l.b16 %v513
          %v597 = vunpack.c.h.b16 %v513
          %v598 = vunpack.c.l.b16 %v514
          %v599 = vunpack.c.l.b16 %v515
          %v600 = vunpack.c.h.b16 %v515
          %v601 = vunpack.c.l.b16 %v516
          %v602 = vunpack.c.l.b16 %v517
          %v603 = vunpack.c.h.b16 %v517
          %v604 = vunpack.c.l.b16 %v518
          %v605 = vunpack.c.l.b16 %v519
          %v606 = vunpack.c.h.b16 %v519
          %v607 = vunpack.c.l.b16 %v520
          %v608 = vunpack.c.l.b16 %v521
          %v609 = vunpack.c.h.b16 %v521
          %v610 = vunpack.c.l.b16 %v522
          %v611 = vunpack.c.l.b16 %v523
          %v612 = vunpack.c.h.b16 %v523
          %v613 = vunpack.c.l.b16 %v524
          %v614 = vunpack.c.l.b16 %v525
          %v615 = vunpack.c.h.b16 %v525
          %v616 = vunpack.c.l.b16 %v526
          %v617 = vunpack.c.l.b16 %v527
          %v618 = vunpack.c.h.b16 %v527
          %v619 = vunpack.c.l.b16 %v528
          %v620 = vunpack.c.l.b16 %v529
          %v621 = vunpack.c.h.b16 %v529
          %v622 = vunpack.c.l.b16 %v530
          %v623 = vunpack.c.l.b16 %v531
          %v624 = vunpack.c.h.b16 %v531
          %v625 = vunpack.c.l.b16 %v532
          %v626 = vunpack.c.l.b16 %v533
          %v627 = vunpack.c.h.b16 %v533
          %v628 = vunpack.c.l.b16 %v534
          %v629 = vunpack.c.l.b16 %v535
          %v630 = vunpack.c.h.b16 %v535
          %v631 = vunpack.c.l.b16 %v536
          %v632 = vunpack.c.l.b16 %v537
          %v633 = vunpack.c.h.b16 %v537
          %v634 = vunpack.c.l.b16 %v538
          %v635 = vunpack.c.l.b16 %v539
          %v636 = vunpack.c.h.b16 %v539
          %v637 = vunpack.c.l.b16 %v540
          %v638 = vpack.c.b16 %v593, %v590
          %v639 = vpack.c.b16 %v594, %v591
          %v640 = vpack.c.b16 %v595, %v592
          %v641 = vpack.c.b16 %v599, %v596
          %v642 = vpack.c.b16 %v600, %v597
          %v643 = vpack.c.b16 %v601, %v598
          %v644 = vpack.c.b16 %v605, %v602
          %v645 = vpack.c.b16 %v606, %v603
          %v646 = vpack.c.b16 %v607, %v604
          %v647 = vpack.c.b16 %v611, %v608
          %v648 = vpack.c.b16 %v612, %v609
          %v649 = vpack.c.b16 %v613, %v610
          %v650 = vpack.c.b16 %v617, %v614
          %v651 = vpack.c.b16 %v618, %v615
          %v652 = vpack.c.b16 %v619, %v616
          %v653 = vpack.c.b16 %v623, %v620
          %v654 = vpack.c.b16 %v624, %v621
          %v655 = vpack.c.b16 %v625, %v622
          %v656 = vpack.c.b16 %v629, %v626
          %v657 = vpack.c.b16 %v630, %v627
          %v658 = vpack.c.b16 %v631, %v628
          %v659 = vpack.c.b16 %v635, %v632
          %v660 = vpack.c.b16 %v636, %v633
          %v661 = vpack.c.b16 %v637, %v634
          %686 = vmatprep.subr.bf16.mxu0 %v639
          %687 = vmatpush1.bf16.msra.mxu0 %v638
          %688 = vmatprep.subr.bf16.mxu0 %v642
          %689 = vmatpush1.bf16.msra.mxu0 %v641
          %690 = vmatprep.subr.bf16.mxu0 %v645
          %691 = vmatpush1.bf16.msra.mxu0 %v644
          %692 = vmatprep.subr.bf16.mxu0 %v648
          %693 = vmatpush1.bf16.msra.mxu0 %v647
          %694 = vmatprep.subr.bf16.mxu0 %v651
          %695 = vmatpush1.bf16.msra.mxu0 %v650
          %696 = vmatprep.subr.bf16.mxu0 %v654
          %697 = vmatpush1.bf16.msra.mxu0 %v653
          %698 = vmatprep.subr.bf16.mxu0 %v657
          %699 = vmatpush1.bf16.msra.mxu0 %v656
          %700 = vmatprep.subr.bf16.mxu0 %v660
          %701 = vmatpush1.bf16.msra.mxu0 %v659
          %702 = vmatprep.subr.bf16.mxu0 0
          %703 = vmatpush1.bf16.msra.mxu0 0
          %704 = vmatprep.subr.bf16.mxu0 0
          %705 = vmatpush1.bf16.msra.mxu0 0
          %706 = vmatprep.subr.bf16.mxu0 0
          %707 = vmatpush1.bf16.msra.mxu0 0
          %708 = vmatprep.subr.bf16.mxu0 0
          %709 = vmatpush1.bf16.msra.mxu0 0
          %710 = vmatprep.subr.bf16.mxu0 0
          %711 = vmatpush1.bf16.msra.mxu0 0
          %712 = vmatprep.subr.bf16.mxu0 0
          %713 = vmatpush1.bf16.msra.mxu0 0
          %714 = vmatprep.subr.bf16.mxu0 0
          %715 = vmatpush1.bf16.msra.mxu0 0
          %716 = vmatprep.subr.bf16.mxu0 0
          %717 = vmatpush1.bf16.msra.mxu0 0
          %718 = vmatprep.mubr.bf16.mxu0 0
          %719 = vmatmul.mubr.bf16.gmra.mrb[0].mxu0 %v493
          %v720 = vpop.f32.mrb[0].mxu0
          %v721 = vadd.f32 %v546, %v720
          %v722 = vpop.f32.mrb[0].mxu0
          %v723 = vadd.f32 %v550, %v722
          %v724 = vpop.f32.mrb[0].mxu0
          %v725 = vadd.f32 %v546, %v724
          %v726 = vpop.f32.mrb[0].mxu0
          %v727 = vadd.f32 %v550, %v726
          %728 = vmatprep.mubr.bf16.mxu0 0
          %729 = vmatmul.mubr.bf16.gmra.mrb[0].mxu0 %v494
          %v730 = vpop.f32.mrb[0].mxu0
          %v731 = vadd.f32 %v546, %v730
          %v732 = vpop.f32.mrb[0].mxu0
          %v733 = vadd.f32 %v550, %v732
          %v734 = vpop.f32.mrb[0].mxu0
          %v735 = vadd.f32 %v546, %v734
          %v736 = vpop.f32.mrb[0].mxu0
          %v737 = vadd.f32 %v550, %v736
          %738 = vmatprep.mubr.bf16.mxu0 0
          %739 = vmatmul.mubr.bf16.gmra.mrb[0].mxu0 %v495
          %v740 = vpop.f32.mrb[0].mxu0
          %v741 = vadd.f32 %v546, %v740
          %v742 = vpop.f32.mrb[0].mxu0
          %v743 = vadd.f32 %v550, %v742
          %v744 = vpop.f32.mrb[0].mxu0
          %v745 = vadd.f32 %v546, %v744
          %v746 = vpop.f32.mrb[0].mxu0
          %v747 = vadd.f32 %v550, %v746
          %748 = vmatprep.mubr.bf16.mxu0 0
          %749 = vmatmul.mubr.bf16.gmra.mrb[0].mxu0 %v496
          %v750 = vpop.f32.mrb[0].mxu0
          %v751 = vadd.f32 %v546, %v750
          %v752 = vpop.f32.mrb[0].mxu0
          %v753 = vadd.f32 %v550, %v752
          %v754 = vpop.f32.mrb[0].mxu0
          %v755 = vadd.f32 %v546, %v754
          %v756 = vpop.f32.mrb[0].mxu0
          %v757 = vadd.f32 %v550, %v756
          %758 = vmatprep.mubr.bf16.mxu0 0
          %759 = vmatmul.mubr.bf16.gmra.mrb[0].mxu0 %v497
          %v760 = vpop.f32.mrb[0].mxu0
          %v761 = vadd.f32 %v546, %v760
          %v762 = vpop.f32.mrb[0].mxu0
          %v763 = vadd.f32 %v550, %v762
          %v764 = vpop.f32.mrb[0].mxu0
          %v765 = vadd.f32 %v546, %v764
          %v766 = vpop.f32.mrb[0].mxu0
          %v767 = vadd.f32 %v550, %v766
          %768 = vmatprep.mubr.bf16.mxu0 0
          %769 = vmatmul.mubr.bf16.gmra.mrb[0].mxu0 %v498
          %v770 = vpop.f32.mrb[0].mxu0
          %v771 = vadd.f32 %v546, %v770
          %v772 = vpop.f32.mrb[0].mxu0
          %v773 = vadd.f32 %v550, %v772
          %v774 = vpop.f32.mrb[0].mxu0
          %v775 = vadd.f32 %v546, %v774
          %v776 = vpop.f32.mrb[0].mxu0
          %v777 = vadd.f32 %v550, %v776
          %778 = vmatprep.mubr.bf16.mxu0 0
          %779 = vmatmul.mubr.bf16.gmra.mrb[0].mxu0 %v499
          %v780 = vpop.f32.mrb[0].mxu0
          %v781 = vadd.f32 %v546, %v780
          %v782 = vpop.f32.mrb[0].mxu0
          %v783 = vadd.f32 %v550, %v782
          %v784 = vpop.f32.mrb[0].mxu0
          %v785 = vadd.f32 %v546, %v784
          %v786 = vpop.f32.mrb[0].mxu0
          %v787 = vadd.f32 %v550, %v786
          %788 = vmatprep.mubr.bf16.mxu0 0
          %789 = vmatmul.mubr.bf16.gmra.mrb[0].mxu0 %v500
          %v790 = vpop.f32.mrb[0].mxu0
          %v791 = vadd.f32 %v546, %v790
          %v792 = vpop.f32.mrb[0].mxu0
          %v793 = vadd.f32 %v550, %v792
          %v794 = vpop.f32.mrb[0].mxu0
          %v795 = vadd.f32 %v546, %v794
          %v796 = vpop.f32.mrb[0].mxu0
          %v797 = vadd.f32 %v550, %v796
          %798 = vmatprep.mubr.bf16.mxu0 0
          %799 = vmatmul.mubr.bf16.gmra.mrb[0].mxu0 %v501
          %v800 = vpop.f32.mrb[0].mxu0
          %v801 = vadd.f32 %v546, %v800
          %v802 = vpop.f32.mrb[0].mxu0
          %v803 = vadd.f32 %v550, %v802
          %v804 = vpop.f32.mrb[0].mxu0
          %v805 = vadd.f32 %v546, %v804
          %v806 = vpop.f32.mrb[0].mxu0
          %v807 = vadd.f32 %v550, %v806
          %808 = vmatprep.mubr.bf16.mxu0 0
          %809 = vmatmul.mubr.bf16.gmra.mrb[0].mxu0 %v502
          %v810 = vpop.f32.mrb[0].mxu0
          %v811 = vadd.f32 %v546, %v810
          %v812 = vpop.f32.mrb[0].mxu0
          %v813 = vadd.f32 %v550, %v812
          %v814 = vpop.f32.mrb[0].mxu0
          %v815 = vadd.f32 %v546, %v814
          %v816 = vpop.f32.mrb[0].mxu0
          %v817 = vadd.f32 %v550, %v816
          %818 = vmatprep.mubr.bf16.mxu0 0
          %819 = vmatmul.mubr.bf16.gmra.mrb[0].mxu0 %v503
          %v820 = vpop.f32.mrb[0].mxu0
          %v821 = vadd.f32 %v546, %v820
          %v822 = vpop.f32.mrb[0].mxu0
          %v823 = vadd.f32 %v550, %v822
          %v824 = vpop.f32.mrb[0].mxu0
          %v825 = vadd.f32 %v546, %v824
          %v826 = vpop.f32.mrb[0].mxu0
          %v827 = vadd.f32 %v550, %v826
          %828 = vmatprep.mubr.bf16.mxu0 0
          %829 = vmatmul.mubr.bf16.gmra.mrb[0].mxu0 %v504
          %v830 = vpop.f32.mrb[0].mxu0
          %v831 = vadd.f32 %v546, %v830
          %v832 = vpop.f32.mrb[0].mxu0
          %v833 = vadd.f32 %v550, %v832
          %v834 = vpop.f32.mrb[0].mxu0
          %v835 = vadd.f32 %v546, %v834
          %v836 = vpop.f32.mrb[0].mxu0
          %v837 = vadd.f32 %v550, %v836
          %838 = vmatprep.mubr.bf16.mxu0 0
          %839 = vmatmul.mubr.bf16.gmra.mrb[0].mxu0 %v505
          %v840 = vpop.f32.mrb[0].mxu0
          %v841 = vadd.f32 %v546, %v840
          %v842 = vpop.f32.mrb[0].mxu0
          %v843 = vadd.f32 %v550, %v842
          %v844 = vpop.f32.mrb[0].mxu0
          %v845 = vadd.f32 %v546, %v844
          %v846 = vpop.f32.mrb[0].mxu0
          %v847 = vadd.f32 %v550, %v846
          %848 = vmatprep.mubr.bf16.mxu0 0
          %849 = vmatmul.mubr.bf16.gmra.mrb[0].mxu0 %v506
          %v850 = vpop.f32.mrb[0].mxu0
          %v851 = vadd.f32 %v546, %v850
          %v852 = vpop.f32.mrb[0].mxu0
          %v853 = vadd.f32 %v550, %v852
          %v854 = vpop.f32.mrb[0].mxu0
          %v855 = vadd.f32 %v546, %v854
          %v856 = vpop.f32.mrb[0].mxu0
          %v857 = vadd.f32 %v550, %v856
          %858 = vmatprep.mubr.bf16.mxu0 0
          %859 = vmatmul.mubr.bf16.gmra.mrb[0].mxu0 %v507
          %v860 = vpop.f32.mrb[0].mxu0
          %v861 = vadd.f32 %v546, %v860
          %v862 = vpop.f32.mrb[0].mxu0
          %v863 = vadd.f32 %v550, %v862
          %v864 = vpop.f32.mrb[0].mxu0
          %v865 = vadd.f32 %v546, %v864
          %v866 = vpop.f32.mrb[0].mxu0
          %v867 = vadd.f32 %v550, %v866
          %868 = vmatprep.mubr.bf16.mxu0 0
          %869 = vmatmul.mubr.bf16.gmra.mrb[0].mxu0 %v508
          %v870 = vpop.f32.mrb[0].mxu0
          %v871 = vadd.f32 %v546, %v870
          %v872 = vpop.f32.mrb[0].mxu0
          %v873 = vadd.f32 %v550, %v872
          %v874 = vpop.f32.mrb[0].mxu0
          %v875 = vadd.f32 %v546, %v874
          %v876 = vpop.f32.mrb[0].mxu0
          %v877 = vadd.f32 %v550, %v876
          %878 = vdwg.mxu0
          %879 = vmatprep.subr.bf16.mxu0 0
          %880 = vmatpush1.bf16.msra.mxu0 %v640
          %881 = vmatprep.subr.bf16.mxu0 0
          %882 = vmatpush1.bf16.msra.mxu0 %v643
          %883 = vmatprep.subr.bf16.mxu0 0
          %884 = vmatpush1.bf16.msra.mxu0 %v646
          %885 = vmatprep.subr.bf16.mxu0 0
          %886 = vmatpush1.bf16.msra.mxu0 %v649
          %887 = vmatprep.subr.bf16.mxu0 0
          %888 = vmatpush1.bf16.msra.mxu0 %v652
          %889 = vmatprep.subr.bf16.mxu0 0
          %890 = vmatpush1.bf16.msra.mxu0 %v655
          %891 = vmatprep.subr.bf16.mxu0 0
          %892 = vmatpush1.bf16.msra.mxu0 %v658
          %893 = vmatprep.subr.bf16.mxu0 0
          %894 = vmatpush1.bf16.msra.mxu0 %v661
          %895 = vmatprep.subr.bf16.mxu0 0
          %896 = vmatpush1.bf16.msra.mxu0 0
          %897 = vmatprep.subr.bf16.mxu0 0
          %898 = vmatpush1.bf16.msra.mxu0 0
          %899 = vmatprep.subr.bf16.mxu0 0
          %900 = vmatpush1.bf16.msra.mxu0 0
          %901 = vmatprep.subr.bf16.mxu0 0
          %902 = vmatpush1.bf16.msra.mxu0 0
          %903 = vmatprep.subr.bf16.mxu0 0
          %904 = vmatpush1.bf16.msra.mxu0 0
          %905 = vmatprep.subr.bf16.mxu0 0
          %906 = vmatpush1.bf16.msra.mxu0 0
          %907 = vmatprep.subr.bf16.mxu0 0
          %908 = vmatpush1.bf16.msra.mxu0 0
          %909 = vmatprep.subr.bf16.mxu0 0
          %910 = vmatpush1.bf16.msra.mxu0 0
          %911 = vmatprep.mubr.bf16.mxu0 0
          %912 = vmatmul.mubr.bf16.gmra.mrb[0].mxu0 %v493
          %v913 = vpop.f32.mrb[0].mxu0
          %v914 = vadd.f32 %v554, %v913
          %v915 = vpop.f32.mrb[0].mxu0
          %v916 = vpop.f32.mrb[0].mxu0
          %v917 = vadd.f32 %v554, %v916
          %v918 = vpop.f32.mrb[0].mxu0
          %919 = vmatprep.mubr.bf16.mxu0 0
          %920 = vmatmul.mubr.bf16.gmra.mrb[0].mxu0 %v494
          %v921 = vpop.f32.mrb[0].mxu0
          %v922 = vadd.f32 %v554, %v921
          %v923 = vpop.f32.mrb[0].mxu0
          %v924 = vpop.f32.mrb[0].mxu0
          %v925 = vadd.f32 %v554, %v924
          %v926 = vpop.f32.mrb[0].mxu0
          %927 = vmatprep.mubr.bf16.mxu0 0
          %928 = vmatmul.mubr.bf16.gmra.mrb[0].mxu0 %v495
          %v929 = vpop.f32.mrb[0].mxu0
          %v930 = vadd.f32 %v554, %v929
          %v931 = vpop.f32.mrb[0].mxu0
          %v932 = vpop.f32.mrb[0].mxu0
          %v933 = vadd.f32 %v554, %v932
          %v934 = vpop.f32.mrb[0].mxu0
          %935 = vmatprep.mubr.bf16.mxu0 0
          %936 = vmatmul.mubr.bf16.gmra.mrb[0].mxu0 %v496
          %v937 = vpop.f32.mrb[0].mxu0
          %v938 = vadd.f32 %v554, %v937
          %v939 = vpop.f32.mrb[0].mxu0
          %v940 = vpop.f32.mrb[0].mxu0
          %v941 = vadd.f32 %v554, %v940
          %v942 = vpop.f32.mrb[0].mxu0
          %943 = vmatprep.mubr.bf16.mxu0 0
          %944 = vmatmul.mubr.bf16.gmra.mrb[0].mxu0 %v497
          %v945 = vpop.f32.mrb[0].mxu0
          %v946 = vadd.f32 %v554, %v945
          %v947 = vpop.f32.mrb[0].mxu0
          %v948 = vpop.f32.mrb[0].mxu0
          %v949 = vadd.f32 %v554, %v948
          %v950 = vpop.f32.mrb[0].mxu0
          %951 = vmatprep.mubr.bf16.mxu0 0
          %952 = vmatmul.mubr.bf16.gmra.mrb[0].mxu0 %v498
          %v953 = vpop.f32.mrb[0].mxu0
          %v954 = vadd.f32 %v554, %v953
          %v955 = vpop.f32.mrb[0].mxu0
          %v956 = vpop.f32.mrb[0].mxu0
          %v957 = vadd.f32 %v554, %v956
          %v958 = vpop.f32.mrb[0].mxu0
          %959 = vmatprep.mubr.bf16.mxu0 0
          %960 = vmatmul.mubr.bf16.gmra.mrb[0].mxu0 %v499
          %v961 = vpop.f32.mrb[0].mxu0
          %v962 = vadd.f32 %v554, %v961
          %v963 = vpop.f32.mrb[0].mxu0
          %v964 = vpop.f32.mrb[0].mxu0
          %v965 = vadd.f32 %v554, %v964
          %v966 = vpop.f32.mrb[0].mxu0
          %967 = vmatprep.mubr.bf16.mxu0 0
          %968 = vmatmul.mubr.bf16.gmra.mrb[0].mxu0 %v500
          %v969 = vpop.f32.mrb[0].mxu0
          %v970 = vadd.f32 %v554, %v969
          %v971 = vpop.f32.mrb[0].mxu0
          %v972 = vpop.f32.mrb[0].mxu0
          %v973 = vadd.f32 %v554, %v972
          %v974 = vpop.f32.mrb[0].mxu0
          %975 = vmatprep.mubr.bf16.mxu0 0
          %976 = vmatmul.mubr.bf16.gmra.mrb[0].mxu0 %v501
          %v977 = vpop.f32.mrb[0].mxu0
          %v978 = vadd.f32 %v554, %v977
          %v979 = vpop.f32.mrb[0].mxu0
          %v980 = vpop.f32.mrb[0].mxu0
          %v981 = vadd.f32 %v554, %v980
          %v982 = vpop.f32.mrb[0].mxu0
          %983 = vmatprep.mubr.bf16.mxu0 0
          %984 = vmatmul.mubr.bf16.gmra.mrb[0].mxu0 %v502
          %v985 = vpop.f32.mrb[0].mxu0
          %v986 = vadd.f32 %v554, %v985
          %v987 = vpop.f32.mrb[0].mxu0
          %v988 = vpop.f32.mrb[0].mxu0
          %v989 = vadd.f32 %v554, %v988
          %v990 = vpop.f32.mrb[0].mxu0
          %991 = vmatprep.mubr.bf16.mxu0 0
          %992 = vmatmul.mubr.bf16.gmra.mrb[0].mxu0 %v503
          %v993 = vpop.f32.mrb[0].mxu0
          %v994 = vadd.f32 %v554, %v993
          %v995 = vpop.f32.mrb[0].mxu0
          %v996 = vpop.f32.mrb[0].mxu0
          %v997 = vadd.f32 %v554, %v996
          %v998 = vpop.f32.mrb[0].mxu0
          %999 = vmatprep.mubr.bf16.mxu0 0
          %1000 = vmatmul.mubr.bf16.gmra.mrb[0].mxu0 %v504
          %v1001 = vpop.f32.mrb[0].mxu0
          %v1002 = vadd.f32 %v554, %v1001
          %v1003 = vpop.f32.mrb[0].mxu0
          %v1004 = vpop.f32.mrb[0].mxu0
          %v1005 = vadd.f32 %v554, %v1004
          %v1006 = vpop.f32.mrb[0].mxu0
          %1007 = vmatprep.mubr.bf16.mxu0 0
          %1008 = vmatmul.mubr.bf16.gmra.mrb[0].mxu0 %v505
          %v1009 = vpop.f32.mrb[0].mxu0
          %v1010 = vadd.f32 %v554, %v1009
          %v1011 = vpop.f32.mrb[0].mxu0
          %v1012 = vpop.f32.mrb[0].mxu0
          %v1013 = vadd.f32 %v554, %v1012
          %v1014 = vpop.f32.mrb[0].mxu0
          %1015 = vmatprep.mubr.bf16.mxu0 0
          %1016 = vmatmul.mubr.bf16.gmra.mrb[0].mxu0 %v506
          %v1017 = vpop.f32.mrb[0].mxu0
          %v1018 = vadd.f32 %v554, %v1017
          %v1019 = vpop.f32.mrb[0].mxu0
          %v1020 = vpop.f32.mrb[0].mxu0
          %v1021 = vadd.f32 %v554, %v1020
          %v1022 = vpop.f32.mrb[0].mxu0
          %1023 = vmatprep.mubr.bf16.mxu0 0
          %1024 = vmatmul.mubr.bf16.gmra.mrb[0].mxu0 %v507
          %v1025 = vpop.f32.mrb[0].mxu0
          %v1026 = vadd.f32 %v554, %v1025
          %v1027 = vpop.f32.mrb[0].mxu0
          %v1028 = vpop.f32.mrb[0].mxu0
          %v1029 = vadd.f32 %v554, %v1028
          %v1030 = vpop.f32.mrb[0].mxu0
          %1031 = vmatprep.mubr.bf16.mxu0 0
          %1032 = vmatmul.mubr.bf16.gmra.mrb[0].mxu0 %v508
          %v1033 = vpop.f32.mrb[0].mxu0
          %v1034 = vadd.f32 %v554, %v1033
          %v1035 = vpop.f32.mrb[0].mxu0
          %v1036 = vpop.f32.mrb[0].mxu0
          %v1037 = vadd.f32 %v554, %v1036
          %v1038 = vpop.f32.mrb[0].mxu0
          %1039 = vdwg.mxu0
          %v1040 = vpack.c.bf16 %v725, %v721
          %v1041 = vpack.c.bf16 %v727, %v723
          %v1042 = vpack.c.bf16 %v917, %v914
          %v1043 = vpack.c.bf16 %v735, %v731
          %v1044 = vpack.c.bf16 %v737, %v733
          %v1045 = vpack.c.bf16 %v925, %v922
          %v1046 = vpack.c.bf16 %v745, %v741
          %v1047 = vpack.c.bf16 %v747, %v743
          %v1048 = vpack.c.bf16 %v933, %v930
          %v1049 = vpack.c.bf16 %v755, %v751
          %v1050 = vpack.c.bf16 %v757, %v753
          %v1051 = vpack.c.bf16 %v941, %v938
          %v1052 = vpack.c.bf16 %v765, %v761
          %v1053 = vpack.c.bf16 %v767, %v763
          %v1054 = vpack.c.bf16 %v949, %v946
          %v1055 = vpack.c.bf16 %v775, %v771
          %v1056 = vpack.c.bf16 %v777, %v773
          %v1057 = vpack.c.bf16 %v957, %v954
          %v1058 = vpack.c.bf16 %v785, %v781
          %v1059 = vpack.c.bf16 %v787, %v783
          %v1060 = vpack.c.bf16 %v965, %v962
          %v1061 = vpack.c.bf16 %v795, %v791
          %v1062 = vpack.c.bf16 %v797, %v793
          %v1063 = vpack.c.bf16 %v973, %v970
          %v1064 = vpack.c.bf16 %v805, %v801
          %v1065 = vpack.c.bf16 %v807, %v803
          %v1066 = vpack.c.bf16 %v981, %v978
          %v1067 = vpack.c.bf16 %v815, %v811
          %v1068 = vpack.c.bf16 %v817, %v813
          %v1069 = vpack.c.bf16 %v989, %v986
          %v1070 = vpack.c.bf16 %v825, %v821
          %v1071 = vpack.c.bf16 %v827, %v823
          %v1072 = vpack.c.bf16 %v997, %v994
          %v1073 = vpack.c.bf16 %v835, %v831
          %v1074 = vpack.c.bf16 %v837, %v833
          %v1075 = vpack.c.bf16 %v1005, %v1002
          %v1076 = vpack.c.bf16 %v845, %v841
          %v1077 = vpack.c.bf16 %v847, %v843
          %v1078 = vpack.c.bf16 %v1013, %v1010
          %v1079 = vpack.c.bf16 %v855, %v851
          %v1080 = vpack.c.bf16 %v857, %v853
          %v1081 = vpack.c.bf16 %v1021, %v1018
          %v1082 = vpack.c.bf16 %v865, %v861
          %v1083 = vpack.c.bf16 %v867, %v863
          %v1084 = vpack.c.bf16 %v1029, %v1026
          %v1085 = vpack.c.bf16 %v875, %v871
          %v1086 = vpack.c.bf16 %v877, %v873
          %v1087 = vpack.c.bf16 %v1037, %v1034
          %1088 = vst [vmem:[#allocation2] sm:$0xff] %v1040
          %1089 = vst [vmem:[#allocation2 + $0x8] sm:$0xff] %v1041
          %1090 = vst [vmem:[#allocation2 + $0x10] sm:$0xff] %v1042
          %1091 = vst [vmem:[#allocation2 + $0x18] sm:$0xff] %v1043
          %1092 = vst [vmem:[#allocation2 + $0x20] sm:$0xff] %v1044
          %1093 = vst [vmem:[#allocation2 + $0x28] sm:$0xff] %v1045
          %1094 = vst [vmem:[#allocation2 + $0x30] sm:$0xff] %v1046
          %1095 = vst [vmem:[#allocation2 + $0x38] sm:$0xff] %v1047
          %1096 = vst [vmem:[#allocation2 + $0x40] sm:$0xff] %v1048
          %1097 = vst [vmem:[#allocation2 + $0x48] sm:$0xff] %v1049
          %1098 = vst [vmem:[#allocation2 + $0x50] sm:$0xff] %v1050
          %1099 = vst [vmem:[#allocation2 + $0x58] sm:$0xff] %v1051
          %1100 = vst [vmem:[#allocation2 + $0x60] sm:$0xff] %v1052
          %1101 = vst [vmem:[#allocation2 + $0x68] sm:$0xff] %v1053
          %1102 = vst [vmem:[#allocation2 + $0x70] sm:$0xff] %v1054
          %1103 = vst [vmem:[#allocation2 + $0x78] sm:$0xff] %v1055
          %1104 = vst [vmem:[#allocation2 + $0x80] sm:$0xff] %v1056
          %1105 = vst [vmem:[#allocation2 + $0x88] sm:$0xff] %v1057
          %1106 = vst [vmem:[#allocation2 + $0x90] sm:$0xff] %v1058
          %1107 = vst [vmem:[#allocation2 + $0x98] sm:$0xff] %v1059
          %1108 = vst [vmem:[#allocation2 + $0xa0] sm:$0xff] %v1060
          %1109 = vst [vmem:[#allocation2 + $0xa8] sm:$0xff] %v1061
          %1110 = vst [vmem:[#allocation2 + $0xb0] sm:$0xff] %v1062
          %1111 = vst [vmem:[#allocation2 + $0xb8] sm:$0xff] %v1063
          %1112 = vst [vmem:[#allocation2 + $0xc0] sm:$0xff] %v1064
          %1113 = vst [vmem:[#allocation2 + $0xc8] sm:$0xff] %v1065
          %1114 = vst [vmem:[#allocation2 + $0xd0] sm:$0xff] %v1066
          %1115 = vst [vmem:[#allocation2 + $0xd8] sm:$0xff] %v1067
          %1116 = vst [vmem:[#allocation2 + $0xe0] sm:$0xff] %v1068
          %1117 = vst [vmem:[#allocation2 + $0xe8] sm:$0xff] %v1069
          %1118 = vst [vmem:[#allocation2 + $0xf0] sm:$0xff] %v1070
          %1119 = vst [vmem:[#allocation2 + $0xf8] sm:$0xff] %v1071
          %1120 = vst [vmem:[#allocation2 + $0x100] sm:$0xff] %v1072
          %1121 = vst [vmem:[#allocation2 + $0x108] sm:$0xff] %v1073
          %1122 = vst [vmem:[#allocation2 + $0x110] sm:$0xff] %v1074
          %1123 = vst [vmem:[#allocation2 + $0x118] sm:$0xff] %v1075
          %1124 = vst [vmem:[#allocation2 + $0x120] sm:$0xff] %v1076
          %1125 = vst [vmem:[#allocation2 + $0x128] sm:$0xff] %v1077
          %1126 = vst [vmem:[#allocation2 + $0x130] sm:$0xff] %v1078
          %1127 = vst [vmem:[#allocation2 + $0x138] sm:$0xff] %v1079
          %1128 = vst [vmem:[#allocation2 + $0x140] sm:$0xff] %v1080
          %1129 = vst [vmem:[#allocation2 + $0x148] sm:$0xff] %v1081
          %1130 = vst [vmem:[#allocation2 + $0x150] sm:$0xff] %v1082
          %1131 = vst [vmem:[#allocation2 + $0x158] sm:$0xff] %v1083
          %1132 = vst [vmem:[#allocation2 + $0x160] sm:$0xff] %v1084
          %1133 = vst [vmem:[#allocation2 + $0x168] sm:$0xff] %v1085
          %1134 = vst [vmem:[#allocation2 + $0x170] sm:$0xff] %v1086
          %1135 = vst [vmem:[#allocation2 + $0x178] sm:$0xff] %v1087
        $region88: #{tpu_custom_call.1} parent=51 // pred_fallthru
          _
        %s1136 = smul.u32 %s36, 128
        %v1137 = vld [vmem:[%s393] sm:$0x3]
        %s1138 = sshra.s32 %s1136, 4
        %s1139 = sand.u32 %s1136, 15
        %s1140 = smul.u32 %s1138, 3
        %s1141 = smul.addr %s1140, 8
        %s1142 = scalar_lea.vmem [#allocation2], %s1141
        %v1143 = vld [vmem:[%s1142] sm:$0xff]
        %v1144 = vld [vmem:[%s1142 + $0x18] sm:$0xff]
        %v1145 = vld [vmem:[%s1142 + $0x30] sm:$0xff]
        %v1146 = vld [vmem:[%s1142 + $0x48] sm:$0xff]
        %v1147 = vld [vmem:[%s1142 + $0x60] sm:$0xff]
        %v1148 = vld [vmem:[%s1142 + $0x78] sm:$0xff]
        %v1149 = vld [vmem:[%s1142 + $0x90] sm:$0xff]
        %v1150 = vld [vmem:[%s1142 + $0xa8] sm:$0xff]
        %v1151 = vld [vmem:[#allocation2 + $0x8] sm:$0xff]
        %v1152 = vld [vmem:[#allocation2 + $0x20] sm:$0xff]
        %v1153 = vld [vmem:[#allocation2 + $0x38] sm:$0xff]
        %v1154 = vld [vmem:[#allocation2 + $0x50] sm:$0xff]
        %v1155 = vld [vmem:[#allocation2 + $0x68] sm:$0xff]
        %v1156 = vld [vmem:[#allocation2 + $0x80] sm:$0xff]
        %v1157 = vld [vmem:[#allocation2 + $0x98] sm:$0xff]
        %v1158 = vld [vmem:[#allocation2 + $0xb0] sm:$0xff]
        %v1159 = vld [vmem:[#allocation2 + $0xc8] sm:$0xff]
        %v1160 = vld [vmem:[#allocation2 + $0xe0] sm:$0xff]
        %v1161 = vld [vmem:[#allocation2 + $0xf8] sm:$0xff]
        %v1162 = vld [vmem:[#allocation2 + $0x110] sm:$0xff]
        %v1163 = vld [vmem:[#allocation2 + $0x128] sm:$0xff]
        %v1164 = vld [vmem:[#allocation2 + $0x140] sm:$0xff]
        %v1165 = vld [vmem:[#allocation2 + $0x158] sm:$0xff]
        %v1166 = vld [vmem:[#allocation2 + $0x170] sm:$0xff]
        %v1167 = vld [vmem:[#allocation2 + $0x10] sm:$0xff]
        %v1168 = vld [vmem:[#allocation2 + $0x28] sm:$0xff]
        %v1169 = vld [vmem:[#allocation2 + $0x40] sm:$0xff]
        %v1170 = vld [vmem:[#allocation2 + $0x58] sm:$0xff]
        %v1171 = vld [vmem:[#allocation2 + $0x70] sm:$0xff]
        %v1172 = vld [vmem:[#allocation2 + $0x88] sm:$0xff]
        %v1173 = vld [vmem:[#allocation2 + $0xa0] sm:$0xff]
        %v1174 = vld [vmem:[#allocation2 + $0xb8] sm:$0xff]
        %v1175 = vld [vmem:[#allocation2 + $0xd0] sm:$0xff]
        %v1176 = vld [vmem:[#allocation2 + $0xe8] sm:$0xff]
        %v1177 = vld [vmem:[#allocation2 + $0x100] sm:$0xff]
        %v1178 = vld [vmem:[#allocation2 + $0x118] sm:$0xff]
        %v1179 = vld [vmem:[#allocation2 + $0x130] sm:$0xff]
        %v1180 = vld [vmem:[#allocation2 + $0x148] sm:$0xff]
        %v1181 = vld [vmem:[#allocation2 + $0x160] sm:$0xff]
        %v1182 = vld [vmem:[#allocation2 + $0x178] sm:$0xff]
        %v1184 = vlaneseq
        %v1185 = vshrl.u32 %v1184, 7
        %v1186 = vsub.s32 0, %v1185
        %v1187 = vrot.slane %v1137, %v1186
        %v1188 = vlaneseq
        %v1189 = vshrl.u32 %v1188, 7
        %v1190 = vsub.s32 1, %v1189
        %v1191 = vrot.slane %v1137, %v1190
        %vm1194 = vcmask 523264
        %v1196 = vsel %vm1194, %v1143, 0
        %v1199 = vsel %vm1194, %v1144, 0
        %v1202 = vsel %vm1194, %v1145, 0
        %v1205 = vsel %vm1194, %v1146, 0
        %v1208 = vsel %vm1194, %v1147, 0
        %v1211 = vsel %vm1194, %v1148, 0
        %v1214 = vsel %vm1194, %v1149, 0
        %v1217 = vsel %vm1194, %v1150, 0
        %v1220 = vsel %vm1194, %v1151, 0
        %v1223 = vsel %vm1194, %v1152, 0
        %v1226 = vsel %vm1194, %v1153, 0
        %v1229 = vsel %vm1194, %v1154, 0
        %v1232 = vsel %vm1194, %v1155, 0
        %v1235 = vsel %vm1194, %v1156, 0
        %v1238 = vsel %vm1194, %v1157, 0
        %v1241 = vsel %vm1194, %v1158, 0
        %v1244 = vsel %vm1194, %v1159, 0
        %v1247 = vsel %vm1194, %v1160, 0
        %v1250 = vsel %vm1194, %v1161, 0
        %v1253 = vsel %vm1194, %v1162, 0
        %v1256 = vsel %vm1194, %v1163, 0
        %v1259 = vsel %vm1194, %v1164, 0
        %v1262 = vsel %vm1194, %v1165, 0
        %v1265 = vsel %vm1194, %v1166, 0
        %1267 = vmatprep.subr.bf16.mxu0 0
        %1268 = vmatpush1.bf16.xpose.msra.mxu0 %v1220
        %1269 = vmatprep.subr.bf16.mxu0 0
        %1270 = vmatpush1.bf16.xpose.msra.mxu0 %v1223
        %1271 = vmatprep.subr.bf16.mxu0 0
        %1272 = vmatpush1.bf16.xpose.msra.mxu0 %v1226
        %1273 = vmatprep.subr.bf16.mxu0 0
        %1274 = vmatpush1.bf16.xpose.msra.mxu0 %v1229
        %1275 = vmatprep.subr.bf16.mxu0 0
        %1276 = vmatpush1.bf16.xpose.msra.mxu0 %v1232
        %1277 = vmatprep.subr.bf16.mxu0 0
        %1278 = vmatpush1.bf16.xpose.msra.mxu0 %v1235
        %1279 = vmatprep.subr.bf16.mxu0 0
        %1280 = vmatpush1.bf16.xpose.msra.mxu0 %v1238
        %1281 = vmatprep.subr.bf16.mxu0 0
        %1282 = vmatpush1.bf16.xpose.msra.mxu0 %v1241
        %1283 = vmatprep.subr.bf16.mxu0 0
        %1284 = vmatpush1.bf16.xpose.msra.mxu0 %v1244
        %1285 = vmatprep.subr.bf16.mxu0 0
        %1286 = vmatpush1.bf16.xpose.msra.mxu0 %v1247
        %1287 = vmatprep.subr.bf16.mxu0 0
        %1288 = vmatpush1.bf16.xpose.msra.mxu0 %v1250
        %1289 = vmatprep.subr.bf16.mxu0 0
        %1290 = vmatpush1.bf16.xpose.msra.mxu0 %v1253
        %1291 = vmatprep.subr.bf16.mxu0 0
        %1292 = vmatpush1.bf16.xpose.msra.mxu0 %v1256
        %1293 = vmatprep.subr.bf16.mxu0 0
        %1294 = vmatpush1.bf16.xpose.msra.mxu0 %v1259
        %1295 = vmatprep.subr.bf16.mxu0 0
        %1296 = vmatpush1.bf16.xpose.msra.mxu0 %v1262
        %1297 = vmatprep.subr.bf16.mxu0 0
        %1298 = vmatpush1.bf16.xpose.msra.mxu0 %v1265
        %1299 = vmatprep.mubr.bf16.mxu0 0
        %1300 = vmatmul.mubr.bf16.gmra.mrb[0].mxu0 %v1196
        %v1301 = vpop.f32.mrb[0].mxu0
        %v1302 = vadd.f32 %v1187, %v1301
        %v1303 = vpop.f32.mrb[0].mxu0
        %v1304 = vadd.f32 %v1191, %v1303
        %v1305 = vpop.f32.mrb[0].mxu0
        %v1306 = vadd.f32 %v1187, %v1305
        %v1307 = vpop.f32.mrb[0].mxu0
        %v1308 = vadd.f32 %v1191, %v1307
        %1309 = vmatprep.mubr.bf16.mxu0 0
        %1310 = vmatmul.mubr.bf16.gmra.mrb[0].mxu0 %v1199
        %v1311 = vpop.f32.mrb[0].mxu0
        %v1312 = vadd.f32 %v1187, %v1311
        %v1313 = vpop.f32.mrb[0].mxu0
        %v1314 = vadd.f32 %v1191, %v1313
        %v1315 = vpop.f32.mrb[0].mxu0
        %v1316 = vadd.f32 %v1187, %v1315
        %v1317 = vpop.f32.mrb[0].mxu0
        %v1318 = vadd.f32 %v1191, %v1317
        %1319 = vmatprep.mubr.bf16.mxu0 0
        %1320 = vmatmul.mubr.bf16.gmra.mrb[0].mxu0 %v1202
        %v1321 = vpop.f32.mrb[0].mxu0
        %v1322 = vadd.f32 %v1187, %v1321
        %v1323 = vpop.f32.mrb[0].mxu0
        %v1324 = vadd.f32 %v1191, %v1323
        %v1325 = vpop.f32.mrb[0].mxu0
        %v1326 = vadd.f32 %v1187, %v1325
        %v1327 = vpop.f32.mrb[0].mxu0
        %v1328 = vadd.f32 %v1191, %v1327
        %1329 = vmatprep.mubr.bf16.mxu0 0
        %1330 = vmatmul.mubr.bf16.gmra.mrb[0].mxu0 %v1205
        %v1331 = vpop.f32.mrb[0].mxu0
        %v1332 = vadd.f32 %v1187, %v1331
        %v1333 = vpop.f32.mrb[0].mxu0
        %v1334 = vadd.f32 %v1191, %v1333
        %v1335 = vpop.f32.mrb[0].mxu0
        %v1336 = vadd.f32 %v1187, %v1335
        %v1337 = vpop.f32.mrb[0].mxu0
        %v1338 = vadd.f32 %v1191, %v1337
        %1339 = vmatprep.mubr.bf16.mxu0 0
        %1340 = vmatmul.mubr.bf16.gmra.mrb[0].mxu0 %v1208
        %v1341 = vpop.f32.mrb[0].mxu0
        %v1342 = vadd.f32 %v1187, %v1341
        %v1343 = vpop.f32.mrb[0].mxu0
        %v1344 = vadd.f32 %v1191, %v1343
        %v1345 = vpop.f32.mrb[0].mxu0
        %v1346 = vadd.f32 %v1187, %v1345
        %v1347 = vpop.f32.mrb[0].mxu0
        %v1348 = vadd.f32 %v1191, %v1347
        %1349 = vmatprep.mubr.bf16.mxu0 0
        %1350 = vmatmul.mubr.bf16.gmra.mrb[0].mxu0 %v1211
        %v1351 = vpop.f32.mrb[0].mxu0
        %v1352 = vadd.f32 %v1187, %v1351
        %v1353 = vpop.f32.mrb[0].mxu0
        %v1354 = vadd.f32 %v1191, %v1353
        %v1355 = vpop.f32.mrb[0].mxu0
        %v1356 = vadd.f32 %v1187, %v1355
        %v1357 = vpop.f32.mrb[0].mxu0
        %v1358 = vadd.f32 %v1191, %v1357
        %1359 = vmatprep.mubr.bf16.mxu0 0
        %1360 = vmatmul.mubr.bf16.gmra.mrb[0].mxu0 %v1214
        %v1361 = vpop.f32.mrb[0].mxu0
        %v1362 = vadd.f32 %v1187, %v1361
        %v1363 = vpop.f32.mrb[0].mxu0
        %v1364 = vadd.f32 %v1191, %v1363
        %v1365 = vpop.f32.mrb[0].mxu0
        %v1366 = vadd.f32 %v1187, %v1365
        %v1367 = vpop.f32.mrb[0].mxu0
        %v1368 = vadd.f32 %v1191, %v1367
        %1369 = vmatprep.mubr.bf16.mxu0 0
        %1370 = vmatmul.mubr.bf16.gmra.mrb[0].mxu0 %v1217
        %v1371 = vpop.f32.mrb[0].mxu0
        %v1372 = vadd.f32 %v1187, %v1371
        %v1373 = vpop.f32.mrb[0].mxu0
        %v1374 = vadd.f32 %v1191, %v1373
        %v1375 = vpop.f32.mrb[0].mxu0
        %v1376 = vadd.f32 %v1187, %v1375
        %v1377 = vpop.f32.mrb[0].mxu0
        %v1378 = vadd.f32 %v1191, %v1377
        %1379 = vdwg.mxu0
        %v1380 = vmax.f32 %v1302, %v1304
        %1381 = vmax.xlane.f32.xlu0 %v1380
        %v1382 = vpop.xlane.xlu0 %1381
        %v1383 = vmax.f32 %v1306, %v1308
        %1384 = vmax.xlane.f32.xlu0 %v1383
        %v1385 = vpop.xlane.xlu0 %1384
        %v1386 = vmax.f32 %v1312, %v1314
        %1387 = vmax.xlane.f32.xlu0 %v1386
        %v1388 = vpop.xlane.xlu0 %1387
        %v1389 = vmax.f32 %v1316, %v1318
        %1390 = vmax.xlane.f32.xlu0 %v1389
        %v1391 = vpop.xlane.xlu0 %1390
        %v1392 = vmax.f32 %v1322, %v1324
        %1393 = vmax.xlane.f32.xlu0 %v1392
        %v1394 = vpop.xlane.xlu0 %1393
        %v1395 = vmax.f32 %v1326, %v1328
        %1396 = vmax.xlane.f32.xlu0 %v1395
        %v1397 = vpop.xlane.xlu0 %1396
        %v1398 = vmax.f32 %v1332, %v1334
        %1399 = vmax.xlane.f32.xlu0 %v1398
        %v1400 = vpop.xlane.xlu0 %1399
        %v1401 = vmax.f32 %v1336, %v1338
        %1402 = vmax.xlane.f32.xlu0 %v1401
        %v1403 = vpop.xlane.xlu0 %1402
        %v1404 = vmax.f32 %v1342, %v1344
        %1405 = vmax.xlane.f32.xlu0 %v1404
        %v1406 = vpop.xlane.xlu0 %1405
        %v1407 = vmax.f32 %v1346, %v1348
        %1408 = vmax.xlane.f32.xlu0 %v1407
        %v1409 = vpop.xlane.xlu0 %1408
        %v1410 = vmax.f32 %v1352, %v1354
        %1411 = vmax.xlane.f32.xlu0 %v1410
        %v1412 = vpop.xlane.xlu0 %1411
        %v1413 = vmax.f32 %v1356, %v1358
        %1414 = vmax.xlane.f32.xlu0 %v1413
        %v1415 = vpop.xlane.xlu0 %1414
        %v1416 = vmax.f32 %v1362, %v1364
        %1417 = vmax.xlane.f32.xlu0 %v1416
        %v1418 = vpop.xlane.xlu0 %1417
        %v1419 = vmax.f32 %v1366, %v1368
        %1420 = vmax.xlane.f32.xlu0 %v1419
        %v1421 = vpop.xlane.xlu0 %1420
        %v1422 = vmax.f32 %v1372, %v1374
        %1423 = vmax.xlane.f32.xlu0 %v1422
        %v1424 = vpop.xlane.xlu0 %1423
        %v1425 = vmax.f32 %v1376, %v1378
        %1426 = vmax.xlane.f32.xlu0 %v1425
        %v1427 = vpop.xlane.xlu0 %1426
        %v1428 = vsub.f32 %v1302, %v1382
        %v1429 = vsub.f32 %v1304, %v1382
        %v1430 = vsub.f32 %v1306, %v1385
        %v1431 = vsub.f32 %v1308, %v1385
        %v1432 = vsub.f32 %v1312, %v1388
        %v1433 = vsub.f32 %v1314, %v1388
        %v1434 = vsub.f32 %v1316, %v1391
        %v1435 = vsub.f32 %v1318, %v1391
        %v1436 = vsub.f32 %v1322, %v1394
        %v1437 = vsub.f32 %v1324, %v1394
        %v1438 = vsub.f32 %v1326, %v1397
        %v1439 = vsub.f32 %v1328, %v1397
        %v1440 = vsub.f32 %v1332, %v1400
        %v1441 = vsub.f32 %v1334, %v1400
        %v1442 = vsub.f32 %v1336, %v1403
        %v1443 = vsub.f32 %v1338, %v1403
        %v1444 = vsub.f32 %v1342, %v1406
        %v1445 = vsub.f32 %v1344, %v1406
        %v1446 = vsub.f32 %v1346, %v1409
        %v1447 = vsub.f32 %v1348, %v1409
        %v1448 = vsub.f32 %v1352, %v1412
        %v1449 = vsub.f32 %v1354, %v1412
        %v1450 = vsub.f32 %v1356, %v1415
        %v1451 = vsub.f32 %v1358, %v1415
        %v1452 = vsub.f32 %v1362, %v1418
        %v1453 = vsub.f32 %v1364, %v1418
        %v1454 = vsub.f32 %v1366, %v1421
        %v1455 = vsub.f32 %v1368, %v1421
        %v1456 = vsub.f32 %v1372, %v1424
        %v1457 = vsub.f32 %v1374, %v1424
        %v1458 = vsub.f32 %v1376, %v1427
        %v1459 = vsub.f32 %v1378, %v1427
        %v1460 = vmul.f32 %v1428, 1.442695
        %v1461 = vpow.pop %v1460
        %v1462 = vmul.f32 %v1429, 1.442695
        %v1463 = vpow.pop %v1462
        %v1464 = vmul.f32 %v1430, 1.442695
        %v1465 = vpow.pop %v1464
        %v1466 = vmul.f32 %v1431, 1.442695
        %v1467 = vpow.pop %v1466
        %v1468 = vmul.f32 %v1432, 1.442695
        %v1469 = vpow.pop %v1468
        %v1470 = vmul.f32 %v1433, 1.442695
        %v1471 = vpow.pop %v1470
        %v1472 = vmul.f32 %v1434, 1.442695
        %v1473 = vpow.pop %v1472
        %v1474 = vmul.f32 %v1435, 1.442695
        %v1475 = vpow.pop %v1474
        %v1476 = vmul.f32 %v1436, 1.442695
        %v1477 = vpow.pop %v1476
        %v1478 = vmul.f32 %v1437, 1.442695
        %v1479 = vpow.pop %v1478
        %v1480 = vmul.f32 %v1438, 1.442695
        %v1481 = vpow.pop %v1480
        %v1482 = vmul.f32 %v1439, 1.442695
        %v1483 = vpow.pop %v1482
        %v1484 = vmul.f32 %v1440, 1.442695
        %v1485 = vpow.pop %v1484
        %v1486 = vmul.f32 %v1441, 1.442695
        %v1487 = vpow.pop %v1486
        %v1488 = vmul.f32 %v1442, 1.442695
        %v1489 = vpow.pop %v1488
        %v1490 = vmul.f32 %v1443, 1.442695
        %v1491 = vpow.pop %v1490
        %v1492 = vmul.f32 %v1444, 1.442695
        %v1493 = vpow.pop %v1492
        %v1494 = vmul.f32 %v1445, 1.442695
        %v1495 = vpow.pop %v1494
        %v1496 = vmul.f32 %v1446, 1.442695
        %v1497 = vpow.pop %v1496
        %v1498 = vmul.f32 %v1447, 1.442695
        %v1499 = vpow.pop %v1498
        %v1500 = vmul.f32 %v1448, 1.442695
        %v1501 = vpow.pop %v1500
        %v1502 = vmul.f32 %v1449, 1.442695
        %v1503 = vpow.pop %v1502
        %v1504 = vmul.f32 %v1450, 1.442695
        %v1505 = vpow.pop %v1504
        %v1506 = vmul.f32 %v1451, 1.442695
        %v1507 = vpow.pop %v1506
        %v1508 = vmul.f32 %v1452, 1.442695
        %v1509 = vpow.pop %v1508
        %v1510 = vmul.f32 %v1453, 1.442695
        %v1511 = vpow.pop %v1510
        %v1512 = vmul.f32 %v1454, 1.442695
        %v1513 = vpow.pop %v1512
        %v1514 = vmul.f32 %v1455, 1.442695
        %v1515 = vpow.pop %v1514
        %v1516 = vmul.f32 %v1456, 1.442695
        %v1517 = vpow.pop %v1516
        %v1518 = vmul.f32 %v1457, 1.442695
        %v1519 = vpow.pop %v1518
        %v1520 = vmul.f32 %v1458, 1.442695
        %v1521 = vpow.pop %v1520
        %v1522 = vmul.f32 %v1459, 1.442695
        %v1523 = vpow.pop %v1522
        %v1524 = vadd.f32 %v1461, %v1463
        %1525 = vadd.xlane.f32.xlu0 %v1524
        %v1526 = vpop.xlane.xlu0 %1525
        %v1527 = vadd.f32 %v1465, %v1467
        %1528 = vadd.xlane.f32.xlu0 %v1527
        %v1529 = vpop.xlane.xlu0 %1528
        %v1530 = vadd.f32 %v1469, %v1471
        %1531 = vadd.xlane.f32.xlu0 %v1530
        %v1532 = vpop.xlane.xlu0 %1531
        %v1533 = vadd.f32 %v1473, %v1475
        %1534 = vadd.xlane.f32.xlu0 %v1533
        %v1535 = vpop.xlane.xlu0 %1534
        %v1536 = vadd.f32 %v1477, %v1479
        %1537 = vadd.xlane.f32.xlu0 %v1536
        %v1538 = vpop.xlane.xlu0 %1537
        %v1539 = vadd.f32 %v1481, %v1483
        %1540 = vadd.xlane.f32.xlu0 %v1539
        %v1541 = vpop.xlane.xlu0 %1540
        %v1542 = vadd.f32 %v1485, %v1487
        %1543 = vadd.xlane.f32.xlu0 %v1542
        %v1544 = vpop.xlane.xlu0 %1543
        %v1545 = vadd.f32 %v1489, %v1491
        %1546 = vadd.xlane.f32.xlu0 %v1545
        %v1547 = vpop.xlane.xlu0 %1546
        %v1548 = vadd.f32 %v1493, %v1495
        %1549 = vadd.xlane.f32.xlu0 %v1548
        %v1550 = vpop.xlane.xlu0 %1549
        %v1551 = vadd.f32 %v1497, %v1499
        %1552 = vadd.xlane.f32.xlu0 %v1551
        %v1553 = vpop.xlane.xlu0 %1552
        %v1554 = vadd.f32 %v1501, %v1503
        %1555 = vadd.xlane.f32.xlu0 %v1554
        %v1556 = vpop.xlane.xlu0 %1555
        %v1557 = vadd.f32 %v1505, %v1507
        %1558 = vadd.xlane.f32.xlu0 %v1557
        %v1559 = vpop.xlane.xlu0 %1558
        %v1560 = vadd.f32 %v1509, %v1511
        %1561 = vadd.xlane.f32.xlu0 %v1560
        %v1562 = vpop.xlane.xlu0 %1561
        %v1563 = vadd.f32 %v1513, %v1515
        %1564 = vadd.xlane.f32.xlu0 %v1563
        %v1565 = vpop.xlane.xlu0 %1564
        %v1566 = vadd.f32 %v1517, %v1519
        %1567 = vadd.xlane.f32.xlu0 %v1566
        %v1568 = vpop.xlane.xlu0 %1567
        %v1569 = vadd.f32 %v1521, %v1523
        %1570 = vadd.xlane.f32.xlu0 %v1569
        %v1571 = vpop.xlane.xlu0 %1570
        %v1572 = vpack.c.bf16 %v1465, %v1461
        %v1573 = vpack.c.bf16 %v1467, %v1463
        %v1574 = vpack.c.bf16 %v1473, %v1469
        %v1575 = vpack.c.bf16 %v1475, %v1471
        %v1576 = vpack.c.bf16 %v1481, %v1477
        %v1577 = vpack.c.bf16 %v1483, %v1479
        %v1578 = vpack.c.bf16 %v1489, %v1485
        %v1579 = vpack.c.bf16 %v1491, %v1487
        %v1580 = vpack.c.bf16 %v1497, %v1493
        %v1581 = vpack.c.bf16 %v1499, %v1495
        %v1582 = vpack.c.bf16 %v1505, %v1501
        %v1583 = vpack.c.bf16 %v1507, %v1503
        %v1584 = vpack.c.bf16 %v1513, %v1509
        %v1585 = vpack.c.bf16 %v1515, %v1511
        %v1586 = vpack.c.bf16 %v1521, %v1517
        %v1587 = vpack.c.bf16 %v1523, %v1519
        %1588 = vmatprep.subr.bf16.mxu0 0
        %1589 = vmatpush1.bf16.msra.mxu0 %v1167
        %1590 = vmatprep.subr.bf16.mxu0 0
        %1591 = vmatpush1.bf16.msra.mxu0 %v1168
        %1592 = vmatprep.subr.bf16.mxu0 0
        %1593 = vmatpush1.bf16.msra.mxu0 %v1169
        %1594 = vmatprep.subr.bf16.mxu0 0
        %1595 = vmatpush1.bf16.msra.mxu0 %v1170
        %1596 = vmatprep.subr.bf16.mxu0 0
        %1597 = vmatpush1.bf16.msra.mxu0 %v1171
        %1598 = vmatprep.subr.bf16.mxu0 0
        %1599 = vmatpush1.bf16.msra.mxu0 %v1172
        %1600 = vmatprep.subr.bf16.mxu0 0
        %1601 = vmatpush1.bf16.msra.mxu0 %v1173
        %1602 = vmatprep.subr.bf16.mxu0 0
        %1603 = vmatpush1.bf16.msra.mxu0 %v1174
        %1604 = vmatprep.subr.bf16.mxu0 0
        %1605 = vmatpush1.bf16.msra.mxu0 %v1175
        %1606 = vmatprep.subr.bf16.mxu0 0
        %1607 = vmatpush1.bf16.msra.mxu0 %v1176
        %1608 = vmatprep.subr.bf16.mxu0 0
        %1609 = vmatpush1.bf16.msra.mxu0 %v1177
        %1610 = vmatprep.subr.bf16.mxu0 0
        %1611 = vmatpush1.bf16.msra.mxu0 %v1178
        %1612 = vmatprep.subr.bf16.mxu0 0
        %1613 = vmatpush1.bf16.msra.mxu0 %v1179
        %1614 = vmatprep.subr.bf16.mxu0 0
        %1615 = vmatpush1.bf16.msra.mxu0 %v1180
        %1616 = vmatprep.subr.bf16.mxu0 0
        %1617 = vmatpush1.bf16.msra.mxu0 %v1181
        %1618 = vmatprep.subr.bf16.mxu0 0
        %1619 = vmatpush1.bf16.msra.mxu0 %v1182
        %1620 = vmatprep.mubr.bf16.mxu0 %v1573
        %1621 = vmatmul.mubr.bf16.gmra.mrb[0].mxu0 %v1572
        %v1622 = vpop.f32.mrb[0].mxu0
        %v1623 = vadd.f32 0.0, %v1622
        %v1624 = vpop.f32.mrb[0].mxu0
        %v1625 = vpop.f32.mrb[0].mxu0
        %v1626 = vadd.f32 0.0, %v1625
        %v1627 = vpop.f32.mrb[0].mxu0
        %1628 = vmatprep.mubr.bf16.mxu0 %v1575
        %1629 = vmatmul.mubr.bf16.gmra.mrb[0].mxu0 %v1574
        %v1630 = vpop.f32.mrb[0].mxu0
        %v1631 = vadd.f32 0.0, %v1630
        %v1632 = vpop.f32.mrb[0].mxu0
        %v1633 = vpop.f32.mrb[0].mxu0
        %v1634 = vadd.f32 0.0, %v1633
        %v1635 = vpop.f32.mrb[0].mxu0
        %1636 = vmatprep.mubr.bf16.mxu0 %v1577
        %1637 = vmatmul.mubr.bf16.gmra.mrb[0].mxu0 %v1576
        %v1638 = vpop.f32.mrb[0].mxu0
        %v1639 = vadd.f32 0.0, %v1638
        %v1640 = vpop.f32.mrb[0].mxu0
        %v1641 = vpop.f32.mrb[0].mxu0
        %v1642 = vadd.f32 0.0, %v1641
        %v1643 = vpop.f32.mrb[0].mxu0
        %1644 = vmatprep.mubr.bf16.mxu0 %v1579
        %1645 = vmatmul.mubr.bf16.gmra.mrb[0].mxu0 %v1578
        %v1646 = vpop.f32.mrb[0].mxu0
        %v1647 = vadd.f32 0.0, %v1646
        %v1648 = vpop.f32.mrb[0].mxu0
        %v1649 = vpop.f32.mrb[0].mxu0
        %v1650 = vadd.f32 0.0, %v1649
        %v1651 = vpop.f32.mrb[0].mxu0
        %1652 = vmatprep.mubr.bf16.mxu0 %v1581
        %1653 = vmatmul.mubr.bf16.gmra.mrb[0].mxu0 %v1580
        %v1654 = vpop.f32.mrb[0].mxu0
        %v1655 = vadd.f32 0.0, %v1654
        %v1656 = vpop.f32.mrb[0].mxu0
        %v1657 = vpop.f32.mrb[0].mxu0
        %v1658 = vadd.f32 0.0, %v1657
        %v1659 = vpop.f32.mrb[0].mxu0
        %1660 = vmatprep.mubr.bf16.mxu0 %v1583
        %1661 = vmatmul.mubr.bf16.gmra.mrb[0].mxu0 %v1582
        %v1662 = vpop.f32.mrb[0].mxu0
        %v1663 = vadd.f32 0.0, %v1662
        %v1664 = vpop.f32.mrb[0].mxu0
        %v1665 = vpop.f32.mrb[0].mxu0
        %v1666 = vadd.f32 0.0, %v1665
        %v1667 = vpop.f32.mrb[0].mxu0
        %1668 = vmatprep.mubr.bf16.mxu0 %v1585
        %1669 = vmatmul.mubr.bf16.gmra.mrb[0].mxu0 %v1584
        %v1670 = vpop.f32.mrb[0].mxu0
        %v1671 = vadd.f32 0.0, %v1670
        %v1672 = vpop.f32.mrb[0].mxu0
        %v1673 = vpop.f32.mrb[0].mxu0
        %v1674 = vadd.f32 0.0, %v1673
        %v1675 = vpop.f32.mrb[0].mxu0
        %1676 = vmatprep.mubr.bf16.mxu0 %v1587
        %1677 = vmatmul.mubr.bf16.gmra.mrb[0].mxu0 %v1586
        %v1678 = vpop.f32.mrb[0].mxu0
        %v1679 = vadd.f32 0.0, %v1678
        %v1680 = vpop.f32.mrb[0].mxu0
        %v1681 = vpop.f32.mrb[0].mxu0
        %v1682 = vadd.f32 0.0, %v1681
        %v1683 = vpop.f32.mrb[0].mxu0
        %1684 = vdwg.mxu0
        %v1685 = vrcp.pop %v1526
        %v1686 = vrcp.pop %v1529
        %v1687 = vrcp.pop %v1532
        %v1688 = vrcp.pop %v1535
        %v1689 = vrcp.pop %v1538
        %v1690 = vrcp.pop %v1541
        %v1691 = vrcp.pop %v1544
        %v1692 = vrcp.pop %v1547
        %v1693 = vrcp.pop %v1550
        %v1694 = vrcp.pop %v1553
        %v1695 = vrcp.pop %v1556
        %v1696 = vrcp.pop %v1559
        %v1697 = vrcp.pop %v1562
        %v1698 = vrcp.pop %v1565
        %v1699 = vrcp.pop %v1568
        %v1700 = vrcp.pop %v1571
        %v1701 = vmul.f32 %v1623, %v1685
        %v1702 = vmul.f32 %v1626, %v1686
        %v1703 = vmul.f32 %v1631, %v1687
        %v1704 = vmul.f32 %v1634, %v1688
        %v1705 = vmul.f32 %v1639, %v1689
        %v1706 = vmul.f32 %v1642, %v1690
        %v1707 = vmul.f32 %v1647, %v1691
        %v1708 = vmul.f32 %v1650, %v1692
        %v1709 = vmul.f32 %v1655, %v1693
        %v1710 = vmul.f32 %v1658, %v1694
        %v1711 = vmul.f32 %v1663, %v1695
        %v1712 = vmul.f32 %v1666, %v1696
        %v1713 = vmul.f32 %v1671, %v1697
        %v1714 = vmul.f32 %v1674, %v1698
        %v1715 = vmul.f32 %v1679, %v1699
        %v1716 = vmul.f32 %v1682, %v1700
        %v1717 = vpack.c.bf16 %v1702, %v1701
        %v1718 = vpack.c.bf16 %v1704, %v1703
        %v1719 = vpack.c.bf16 %v1706, %v1705
        %v1720 = vpack.c.bf16 %v1708, %v1707
        %v1721 = vpack.c.bf16 %v1710, %v1709
        %v1722 = vpack.c.bf16 %v1712, %v1711
        %v1723 = vpack.c.bf16 %v1714, %v1713
        %v1724 = vpack.c.bf16 %v1716, %v1715
        %v1725 = vld [vmem:[#allocation11] sm:$0xf]
        %v1726 = vld [vmem:[#allocation11 + $0x4] sm:$0xf]
        %v1727 = vld [vmem:[#allocation11 + $0x8] sm:$0xf]
        %v1728 = vld [vmem:[#allocation11 + $0xc] sm:$0xf]
        %v1729 = vld [vmem:[#allocation11 + $0x10] sm:$0xf]
        %v1730 = vld [vmem:[#allocation11 + $0x14] sm:$0xf]
        %v1731 = vld [vmem:[#allocation11 + $0x18] sm:$0xf]
        %v1732 = vld [vmem:[#allocation11 + $0x1c] sm:$0xf]
        %1741 = vrot.lane.b32.xlu0 %v1143, 64
        %v1742 = vpop.permute.xlu0 %1741
        %1743 = vrot.lane.b32.xlu0 %v1144, 64
        %v1744 = vpop.permute.xlu0 %1743
        %1745 = vrot.lane.b32.xlu0 %v1145, 64
        %v1746 = vpop.permute.xlu0 %1745
        %1747 = vrot.lane.b32.xlu0 %v1146, 64
        %v1748 = vpop.permute.xlu0 %1747
        %1749 = vrot.lane.b32.xlu0 %v1147, 64
        %v1750 = vpop.permute.xlu0 %1749
        %1751 = vrot.lane.b32.xlu0 %v1148, 64
        %v1752 = vpop.permute.xlu0 %1751
        %1753 = vrot.lane.b32.xlu0 %v1149, 64
        %v1754 = vpop.permute.xlu0 %1753
        %1755 = vrot.lane.b32.xlu0 %v1150, 64
        %v1756 = vpop.permute.xlu0 %1755
        %1773 = vrot.lane.b32.xlu0 %v1151, 64
        %v1774 = vpop.permute.xlu0 %1773
        %1775 = vrot.lane.b32.xlu0 %v1152, 64
        %v1776 = vpop.permute.xlu0 %1775
        %1777 = vrot.lane.b32.xlu0 %v1153, 64
        %v1778 = vpop.permute.xlu0 %1777
        %1779 = vrot.lane.b32.xlu0 %v1154, 64
        %v1780 = vpop.permute.xlu0 %1779
        %1781 = vrot.lane.b32.xlu0 %v1155, 64
        %v1782 = vpop.permute.xlu0 %1781
        %1783 = vrot.lane.b32.xlu0 %v1156, 64
        %v1784 = vpop.permute.xlu0 %1783
        %1785 = vrot.lane.b32.xlu0 %v1157, 64
        %v1786 = vpop.permute.xlu0 %1785
        %1787 = vrot.lane.b32.xlu0 %v1158, 64
        %v1788 = vpop.permute.xlu0 %1787
        %1789 = vrot.lane.b32.xlu0 %v1159, 64
        %v1790 = vpop.permute.xlu0 %1789
        %1791 = vrot.lane.b32.xlu0 %v1160, 64
        %v1792 = vpop.permute.xlu0 %1791
        %1793 = vrot.lane.b32.xlu0 %v1161, 64
        %v1794 = vpop.permute.xlu0 %1793
        %1795 = vrot.lane.b32.xlu0 %v1162, 64
        %v1796 = vpop.permute.xlu0 %1795
        %1797 = vrot.lane.b32.xlu0 %v1163, 64
        %v1798 = vpop.permute.xlu0 %1797
        %1799 = vrot.lane.b32.xlu0 %v1164, 64
        %v1800 = vpop.permute.xlu0 %1799
        %1801 = vrot.lane.b32.xlu0 %v1165, 64
        %v1802 = vpop.permute.xlu0 %1801
        %1803 = vrot.lane.b32.xlu0 %v1166, 64
        %v1804 = vpop.permute.xlu0 %1803
        %v1806 = vsel %vm1194, %v1742, 0
        %v1809 = vsel %vm1194, %v1744, 0
        %v1812 = vsel %vm1194, %v1746, 0
        %v1815 = vsel %vm1194, %v1748, 0
        %v1818 = vsel %vm1194, %v1750, 0
        %v1821 = vsel %vm1194, %v1752, 0
        %v1824 = vsel %vm1194, %v1754, 0
        %v1827 = vsel %vm1194, %v1756, 0
        %v1830 = vsel %vm1194, %v1774, 0
        %v1833 = vsel %vm1194, %v1776, 0
        %v1836 = vsel %vm1194, %v1778, 0
        %v1839 = vsel %vm1194, %v1780, 0
        %v1842 = vsel %vm1194, %v1782, 0
        %v1845 = vsel %vm1194, %v1784, 0
        %v1848 = vsel %vm1194, %v1786, 0
        %v1851 = vsel %vm1194, %v1788, 0
        %v1854 = vsel %vm1194, %v1790, 0
        %v1857 = vsel %vm1194, %v1792, 0
        %v1860 = vsel %vm1194, %v1794, 0
        %v1863 = vsel %vm1194, %v1796, 0
        %v1866 = vsel %vm1194, %v1798, 0
        %v1869 = vsel %vm1194, %v1800, 0
        %v1872 = vsel %vm1194, %v1802, 0
        %v1875 = vsel %vm1194, %v1804, 0
        %1877 = vmatprep.subr.bf16.mxu0 0
        %1878 = vmatpush1.bf16.xpose.msra.mxu0 %v1830
        %1879 = vmatprep.subr.bf16.mxu0 0
        %1880 = vmatpush1.bf16.xpose.msra.mxu0 %v1833
        %1881 = vmatprep.subr.bf16.mxu0 0
        %1882 = vmatpush1.bf16.xpose.msra.mxu0 %v1836
        %1883 = vmatprep.subr.bf16.mxu0 0
        %1884 = vmatpush1.bf16.xpose.msra.mxu0 %v1839
        %1885 = vmatprep.subr.bf16.mxu0 0
        %1886 = vmatpush1.bf16.xpose.msra.mxu0 %v1842
        %1887 = vmatprep.subr.bf16.mxu0 0
        %1888 = vmatpush1.bf16.xpose.msra.mxu0 %v1845
        %1889 = vmatprep.subr.bf16.mxu0 0
        %1890 = vmatpush1.bf16.xpose.msra.mxu0 %v1848
        %1891 = vmatprep.subr.bf16.mxu0 0
        %1892 = vmatpush1.bf16.xpose.msra.mxu0 %v1851
        %1893 = vmatprep.subr.bf16.mxu0 0
        %1894 = vmatpush1.bf16.xpose.msra.mxu0 %v1854
        %1895 = vmatprep.subr.bf16.mxu0 0
        %1896 = vmatpush1.bf16.xpose.msra.mxu0 %v1857
        %1897 = vmatprep.subr.bf16.mxu0 0
        %1898 = vmatpush1.bf16.xpose.msra.mxu0 %v1860
        %1899 = vmatprep.subr.bf16.mxu0 0
        %1900 = vmatpush1.bf16.xpose.msra.mxu0 %v1863
        %1901 = vmatprep.subr.bf16.mxu0 0
        %1902 = vmatpush1.bf16.xpose.msra.mxu0 %v1866
        %1903 = vmatprep.subr.bf16.mxu0 0
        %1904 = vmatpush1.bf16.xpose.msra.mxu0 %v1869
        %1905 = vmatprep.subr.bf16.mxu0 0
        %1906 = vmatpush1.bf16.xpose.msra.mxu0 %v1872
        %1907 = vmatprep.subr.bf16.mxu0 0
        %1908 = vmatpush1.bf16.xpose.msra.mxu0 %v1875
        %1909 = vmatprep.mubr.bf16.mxu0 0
        %1910 = vmatmul.mubr.bf16.gmra.mrb[0].mxu0 %v1806
        %v1911 = vpop.f32.mrb[0].mxu0
        %v1912 = vadd.f32 %v1187, %v1911
        %v1913 = vpop.f32.mrb[0].mxu0
        %v1914 = vadd.f32 %v1191, %v1913
        %v1915 = vpop.f32.mrb[0].mxu0
        %v1916 = vadd.f32 %v1187, %v1915
        %v1917 = vpop.f32.mrb[0].mxu0
        %v1918 = vadd.f32 %v1191, %v1917
        %1919 = vmatprep.mubr.bf16.mxu0 0
        %1920 = vmatmul.mubr.bf16.gmra.mrb[0].mxu0 %v1809
        %v1921 = vpop.f32.mrb[0].mxu0
        %v1922 = vadd.f32 %v1187, %v1921
        %v1923 = vpop.f32.mrb[0].mxu0
        %v1924 = vadd.f32 %v1191, %v1923
        %v1925 = vpop.f32.mrb[0].mxu0
        %v1926 = vadd.f32 %v1187, %v1925
        %v1927 = vpop.f32.mrb[0].mxu0
        %v1928 = vadd.f32 %v1191, %v1927
        %1929 = vmatprep.mubr.bf16.mxu0 0
        %1930 = vmatmul.mubr.bf16.gmra.mrb[0].mxu0 %v1812
        %v1931 = vpop.f32.mrb[0].mxu0
        %v1932 = vadd.f32 %v1187, %v1931
        %v1933 = vpop.f32.mrb[0].mxu0
        %v1934 = vadd.f32 %v1191, %v1933
        %v1935 = vpop.f32.mrb[0].mxu0
        %v1936 = vadd.f32 %v1187, %v1935
        %v1937 = vpop.f32.mrb[0].mxu0
        %v1938 = vadd.f32 %v1191, %v1937
        %1939 = vmatprep.mubr.bf16.mxu0 0
        %1940 = vmatmul.mubr.bf16.gmra.mrb[0].mxu0 %v1815
        %v1941 = vpop.f32.mrb[0].mxu0
        %v1942 = vadd.f32 %v1187, %v1941
        %v1943 = vpop.f32.mrb[0].mxu0
        %v1944 = vadd.f32 %v1191, %v1943
        %v1945 = vpop.f32.mrb[0].mxu0
        %v1946 = vadd.f32 %v1187, %v1945
        %v1947 = vpop.f32.mrb[0].mxu0
        %v1948 = vadd.f32 %v1191, %v1947
        %1949 = vmatprep.mubr.bf16.mxu0 0
        %1950 = vmatmul.mubr.bf16.gmra.mrb[0].mxu0 %v1818
        %v1951 = vpop.f32.mrb[0].mxu0
        %v1952 = vadd.f32 %v1187, %v1951
        %v1953 = vpop.f32.mrb[0].mxu0
        %v1954 = vadd.f32 %v1191, %v1953
        %v1955 = vpop.f32.mrb[0].mxu0
        %v1956 = vadd.f32 %v1187, %v1955
        %v1957 = vpop.f32.mrb[0].mxu0
        %v1958 = vadd.f32 %v1191, %v1957
        %1959 = vmatprep.mubr.bf16.mxu0 0
        %1960 = vmatmul.mubr.bf16.gmra.mrb[0].mxu0 %v1821
        %v1961 = vpop.f32.mrb[0].mxu0
        %v1962 = vadd.f32 %v1187, %v1961
        %v1963 = vpop.f32.mrb[0].mxu0
        %v1964 = vadd.f32 %v1191, %v1963
        %v1965 = vpop.f32.mrb[0].mxu0
        %v1966 = vadd.f32 %v1187, %v1965
        %v1967 = vpop.f32.mrb[0].mxu0
        %v1968 = vadd.f32 %v1191, %v1967
        %1969 = vmatprep.mubr.bf16.mxu0 0
        %1970 = vmatmul.mubr.bf16.gmra.mrb[0].mxu0 %v1824
        %v1971 = vpop.f32.mrb[0].mxu0
        %v1972 = vadd.f32 %v1187, %v1971
        %v1973 = vpop.f32.mrb[0].mxu0
        %v1974 = vadd.f32 %v1191, %v1973
        %v1975 = vpop.f32.mrb[0].mxu0
        %v1976 = vadd.f32 %v1187, %v1975
        %v1977 = vpop.f32.mrb[0].mxu0
        %v1978 = vadd.f32 %v1191, %v1977
        %1979 = vmatprep.mubr.bf16.mxu0 0
        %1980 = vmatmul.mubr.bf16.gmra.mrb[0].mxu0 %v1827
        %v1981 = vpop.f32.mrb[0].mxu0
        %v1982 = vadd.f32 %v1187, %v1981
        %v1983 = vpop.f32.mrb[0].mxu0
        %v1984 = vadd.f32 %v1191, %v1983
        %v1985 = vpop.f32.mrb[0].mxu0
        %v1986 = vadd.f32 %v1187, %v1985
        %v1987 = vpop.f32.mrb[0].mxu0
        %v1988 = vadd.f32 %v1191, %v1987
        %1989 = vdwg.mxu0
        %v1990 = vmax.f32 %v1912, %v1914
        %1991 = vmax.xlane.f32.xlu0 %v1990
        %v1992 = vpop.xlane.xlu0 %1991
        %v1993 = vmax.f32 %v1916, %v1918
        %1994 = vmax.xlane.f32.xlu0 %v1993
        %v1995 = vpop.xlane.xlu0 %1994
        %v1996 = vmax.f32 %v1922, %v1924
        %1997 = vmax.xlane.f32.xlu0 %v1996
        %v1998 = vpop.xlane.xlu0 %1997
        %v1999 = vmax.f32 %v1926, %v1928
        %2000 = vmax.xlane.f32.xlu0 %v1999
        %v2001 = vpop.xlane.xlu0 %2000
        %v2002 = vmax.f32 %v1932, %v1934
        %2003 = vmax.xlane.f32.xlu0 %v2002
        %v2004 = vpop.xlane.xlu0 %2003
        %v2005 = vmax.f32 %v1936, %v1938
        %2006 = vmax.xlane.f32.xlu0 %v2005
        %v2007 = vpop.xlane.xlu0 %2006
        %v2008 = vmax.f32 %v1942, %v1944
        %2009 = vmax.xlane.f32.xlu0 %v2008
        %v2010 = vpop.xlane.xlu0 %2009
        %v2011 = vmax.f32 %v1946, %v1948
        %2012 = vmax.xlane.f32.xlu0 %v2011
        %v2013 = vpop.xlane.xlu0 %2012
        %v2014 = vmax.f32 %v1952, %v1954
        %2015 = vmax.xlane.f32.xlu0 %v2014
        %v2016 = vpop.xlane.xlu0 %2015
        %v2017 = vmax.f32 %v1956, %v1958
        %2018 = vmax.xlane.f32.xlu0 %v2017
        %v2019 = vpop.xlane.xlu0 %2018
        %v2020 = vmax.f32 %v1962, %v1964
        %2021 = vmax.xlane.f32.xlu0 %v2020
        %v2022 = vpop.xlane.xlu0 %2021
        %v2023 = vmax.f32 %v1966, %v1968
        %2024 = vmax.xlane.f32.xlu0 %v2023
        %v2025 = vpop.xlane.xlu0 %2024
        %v2026 = vmax.f32 %v1972, %v1974
        %2027 = vmax.xlane.f32.xlu0 %v2026
        %v2028 = vpop.xlane.xlu0 %2027
        %v2029 = vmax.f32 %v1976, %v1978
        %2030 = vmax.xlane.f32.xlu0 %v2029
        %v2031 = vpop.xlane.xlu0 %2030
        %v2032 = vmax.f32 %v1982, %v1984
        %2033 = vmax.xlane.f32.xlu0 %v2032
        %v2034 = vpop.xlane.xlu0 %2033
        %v2035 = vmax.f32 %v1986, %v1988
        %2036 = vmax.xlane.f32.xlu0 %v2035
        %v2037 = vpop.xlane.xlu0 %2036
        %v2038 = vsub.f32 %v1912, %v1992
        %v2039 = vsub.f32 %v1914, %v1992
        %v2040 = vsub.f32 %v1916, %v1995
        %v2041 = vsub.f32 %v1918, %v1995
        %v2042 = vsub.f32 %v1922, %v1998
        %v2043 = vsub.f32 %v1924, %v1998
        %v2044 = vsub.f32 %v1926, %v2001
        %v2045 = vsub.f32 %v1928, %v2001
        %v2046 = vsub.f32 %v1932, %v2004
        %v2047 = vsub.f32 %v1934, %v2004
        %v2048 = vsub.f32 %v1936, %v2007
        %v2049 = vsub.f32 %v1938, %v2007
        %v2050 = vsub.f32 %v1942, %v2010
        %v2051 = vsub.f32 %v1944, %v2010
        %v2052 = vsub.f32 %v1946, %v2013
        %v2053 = vsub.f32 %v1948, %v2013
        %v2054 = vsub.f32 %v1952, %v2016
        %v2055 = vsub.f32 %v1954, %v2016
        %v2056 = vsub.f32 %v1956, %v2019
        %v2057 = vsub.f32 %v1958, %v2019
        %v2058 = vsub.f32 %v1962, %v2022
        %v2059 = vsub.f32 %v1964, %v2022
        %v2060 = vsub.f32 %v1966, %v2025
        %v2061 = vsub.f32 %v1968, %v2025
        %v2062 = vsub.f32 %v1972, %v2028
        %v2063 = vsub.f32 %v1974, %v2028
        %v2064 = vsub.f32 %v1976, %v2031
        %v2065 = vsub.f32 %v1978, %v2031
        %v2066 = vsub.f32 %v1982, %v2034
        %v2067 = vsub.f32 %v1984, %v2034
        %v2068 = vsub.f32 %v1986, %v2037
        %v2069 = vsub.f32 %v1988, %v2037
        %v2070 = vmul.f32 %v2038, 1.442695
        %v2071 = vpow.pop %v2070
        %v2072 = vmul.f32 %v2039, 1.442695
        %v2073 = vpow.pop %v2072
        %v2074 = vmul.f32 %v2040, 1.442695
        %v2075 = vpow.pop %v2074
        %v2076 = vmul.f32 %v2041, 1.442695
        %v2077 = vpow.pop %v2076
        %v2078 = vmul.f32 %v2042, 1.442695
        %v2079 = vpow.pop %v2078
        %v2080 = vmul.f32 %v2043, 1.442695
        %v2081 = vpow.pop %v2080
        %v2082 = vmul.f32 %v2044, 1.442695
        %v2083 = vpow.pop %v2082
        %v2084 = vmul.f32 %v2045, 1.442695
        %v2085 = vpow.pop %v2084
        %v2086 = vmul.f32 %v2046, 1.442695
        %v2087 = vpow.pop %v2086
        %v2088 = vmul.f32 %v2047, 1.442695
        %v2089 = vpow.pop %v2088
        %v2090 = vmul.f32 %v2048, 1.442695
        %v2091 = vpow.pop %v2090
        %v2092 = vmul.f32 %v2049, 1.442695
        %v2093 = vpow.pop %v2092
        %v2094 = vmul.f32 %v2050, 1.442695
        %v2095 = vpow.pop %v2094
        %v2096 = vmul.f32 %v2051, 1.442695
        %v2097 = vpow.pop %v2096
        %v2098 = vmul.f32 %v2052, 1.442695
        %v2099 = vpow.pop %v2098
        %v2100 = vmul.f32 %v2053, 1.442695
        %v2101 = vpow.pop %v2100
        %v2102 = vmul.f32 %v2054, 1.442695
        %v2103 = vpow.pop %v2102
        %v2104 = vmul.f32 %v2055, 1.442695
        %v2105 = vpow.pop %v2104
        %v2106 = vmul.f32 %v2056, 1.442695
        %v2107 = vpow.pop %v2106
        %v2108 = vmul.f32 %v2057, 1.442695
        %v2109 = vpow.pop %v2108
        %v2110 = vmul.f32 %v2058, 1.442695
        %v2111 = vpow.pop %v2110
        %v2112 = vmul.f32 %v2059, 1.442695
        %v2113 = vpow.pop %v2112
        %v2114 = vmul.f32 %v2060, 1.442695
        %v2115 = vpow.pop %v2114
        %v2116 = vmul.f32 %v2061, 1.442695
        %v2117 = vpow.pop %v2116
        %v2118 = vmul.f32 %v2062, 1.442695
        %v2119 = vpow.pop %v2118
        %v2120 = vmul.f32 %v2063, 1.442695
        %v2121 = vpow.pop %v2120
        %v2122 = vmul.f32 %v2064, 1.442695
        %v2123 = vpow.pop %v2122
        %v2124 = vmul.f32 %v2065, 1.442695
        %v2125 = vpow.pop %v2124
        %v2126 = vmul.f32 %v2066, 1.442695
        %v2127 = vpow.pop %v2126
        %v2128 = vmul.f32 %v2067, 1.442695
        %v2129 = vpow.pop %v2128
        %v2130 = vmul.f32 %v2068, 1.442695
        %v2131 = vpow.pop %v2130
        %v2132 = vmul.f32 %v2069, 1.442695
        %v2133 = vpow.pop %v2132
        %v2134 = vadd.f32 %v2071, %v2073
        %2135 = vadd.xlane.f32.xlu0 %v2134
        %v2136 = vpop.xlane.xlu0 %2135
        %v2137 = vadd.f32 %v2075, %v2077
        %2138 = vadd.xlane.f32.xlu0 %v2137
        %v2139 = vpop.xlane.xlu0 %2138
        %v2140 = vadd.f32 %v2079, %v2081
        %2141 = vadd.xlane.f32.xlu0 %v2140
        %v2142 = vpop.xlane.xlu0 %2141
        %v2143 = vadd.f32 %v2083, %v2085
        %2144 = vadd.xlane.f32.xlu0 %v2143
        %v2145 = vpop.xlane.xlu0 %2144
        %v2146 = vadd.f32 %v2087, %v2089
        %2147 = vadd.xlane.f32.xlu0 %v2146
        %v2148 = vpop.xlane.xlu0 %2147
        %v2149 = vadd.f32 %v2091, %v2093
        %2150 = vadd.xlane.f32.xlu0 %v2149
        %v2151 = vpop.xlane.xlu0 %2150
        %v2152 = vadd.f32 %v2095, %v2097
        %2153 = vadd.xlane.f32.xlu0 %v2152
        %v2154 = vpop.xlane.xlu0 %2153
        %v2155 = vadd.f32 %v2099, %v2101
        %2156 = vadd.xlane.f32.xlu0 %v2155
        %v2157 = vpop.xlane.xlu0 %2156
        %v2158 = vadd.f32 %v2103, %v2105
        %2159 = vadd.xlane.f32.xlu0 %v2158
        %v2160 = vpop.xlane.xlu0 %2159
        %v2161 = vadd.f32 %v2107, %v2109
        %2162 = vadd.xlane.f32.xlu0 %v2161
        %v2163 = vpop.xlane.xlu0 %2162
        %v2164 = vadd.f32 %v2111, %v2113
        %2165 = vadd.xlane.f32.xlu0 %v2164
        %v2166 = vpop.xlane.xlu0 %2165
        %v2167 = vadd.f32 %v2115, %v2117
        %2168 = vadd.xlane.f32.xlu0 %v2167
        %v2169 = vpop.xlane.xlu0 %2168
        %v2170 = vadd.f32 %v2119, %v2121
        %2171 = vadd.xlane.f32.xlu0 %v2170
        %v2172 = vpop.xlane.xlu0 %2171
        %v2173 = vadd.f32 %v2123, %v2125
        %2174 = vadd.xlane.f32.xlu0 %v2173
        %v2175 = vpop.xlane.xlu0 %2174
        %v2176 = vadd.f32 %v2127, %v2129
        %2177 = vadd.xlane.f32.xlu0 %v2176
        %v2178 = vpop.xlane.xlu0 %2177
        %v2179 = vadd.f32 %v2131, %v2133
        %2180 = vadd.xlane.f32.xlu0 %v2179
        %v2181 = vpop.xlane.xlu0 %2180
        %v2182 = vpack.c.bf16 %v2075, %v2071
        %v2183 = vpack.c.bf16 %v2077, %v2073
        %v2184 = vpack.c.bf16 %v2083, %v2079
        %v2185 = vpack.c.bf16 %v2085, %v2081
        %v2186 = vpack.c.bf16 %v2091, %v2087
        %v2187 = vpack.c.bf16 %v2093, %v2089
        %v2188 = vpack.c.bf16 %v2099, %v2095
        %v2189 = vpack.c.bf16 %v2101, %v2097
        %v2190 = vpack.c.bf16 %v2107, %v2103
        %v2191 = vpack.c.bf16 %v2109, %v2105
        %v2192 = vpack.c.bf16 %v2115, %v2111
        %v2193 = vpack.c.bf16 %v2117, %v2113
        %v2194 = vpack.c.bf16 %v2123, %v2119
        %v2195 = vpack.c.bf16 %v2125, %v2121
        %v2196 = vpack.c.bf16 %v2131, %v2127
        %v2197 = vpack.c.bf16 %v2133, %v2129
        %2214 = vrot.lane.b32.xlu0 %v1167, 64
        %v2215 = vpop.permute.xlu0 %2214
        %2216 = vrot.lane.b32.xlu0 %v1168, 64
        %v2217 = vpop.permute.xlu0 %2216
        %2218 = vrot.lane.b32.xlu0 %v1169, 64
        %v2219 = vpop.permute.xlu0 %2218
        %2220 = vrot.lane.b32.xlu0 %v1170, 64
        %v2221 = vpop.permute.xlu0 %2220
        %2222 = vrot.lane.b32.xlu0 %v1171, 64
        %v2223 = vpop.permute.xlu0 %2222
        %2224 = vrot.lane.b32.xlu0 %v1172, 64
        %v2225 = vpop.permute.xlu0 %2224
        %2226 = vrot.lane.b32.xlu0 %v1173, 64
        %v2227 = vpop.permute.xlu0 %2226
        %2228 = vrot.lane.b32.xlu0 %v1174, 64
        %v2229 = vpop.permute.xlu0 %2228
        %2230 = vrot.lane.b32.xlu0 %v1175, 64
        %v2231 = vpop.permute.xlu0 %2230
        %2232 = vrot.lane.b32.xlu0 %v1176, 64
        %v2233 = vpop.permute.xlu0 %2232
        %2234 = vrot.lane.b32.xlu0 %v1177, 64
        %v2235 = vpop.permute.xlu0 %2234
        %2236 = vrot.lane.b32.xlu0 %v1178, 64
        %v2237 = vpop.permute.xlu0 %2236
        %2238 = vrot.lane.b32.xlu0 %v1179, 64
        %v2239 = vpop.permute.xlu0 %2238
        %2240 = vrot.lane.b32.xlu0 %v1180, 64
        %v2241 = vpop.permute.xlu0 %2240
        %2242 = vrot.lane.b32.xlu0 %v1181, 64
        %v2243 = vpop.permute.xlu0 %2242
        %2244 = vrot.lane.b32.xlu0 %v1182, 64
        %v2245 = vpop.permute.xlu0 %2244
        %2262 = vmatprep.subr.bf16.mxu0 0
        %2263 = vmatpush1.bf16.msra.mxu0 %v2215
        %2264 = vmatprep.subr.bf16.mxu0 0
        %2265 = vmatpush1.bf16.msra.mxu0 %v2217
        %2266 = vmatprep.subr.bf16.mxu0 0
        %2267 = vmatpush1.bf16.msra.mxu0 %v2219
        %2268 = vmatprep.subr.bf16.mxu0 0
        %2269 = vmatpush1.bf16.msra.mxu0 %v2221
        %2270 = vmatprep.subr.bf16.mxu0 0
        %2271 = vmatpush1.bf16.msra.mxu0 %v2223
        %2272 = vmatprep.subr.bf16.mxu0 0
        %2273 = vmatpush1.bf16.msra.mxu0 %v2225
        %2274 = vmatprep.subr.bf16.mxu0 0
        %2275 = vmatpush1.bf16.msra.mxu0 %v2227
        %2276 = vmatprep.subr.bf16.mxu0 0
        %2277 = vmatpush1.bf16.msra.mxu0 %v2229
        %2278 = vmatprep.subr.bf16.mxu0 0
        %2279 = vmatpush1.bf16.msra.mxu0 %v2231
        %2280 = vmatprep.subr.bf16.mxu0 0
        %2281 = vmatpush1.bf16.msra.mxu0 %v2233
        %2282 = vmatprep.subr.bf16.mxu0 0
        %2283 = vmatpush1.bf16.msra.mxu0 %v2235
        %2284 = vmatprep.subr.bf16.mxu0 0
        %2285 = vmatpush1.bf16.msra.mxu0 %v2237
        %2286 = vmatprep.subr.bf16.mxu0 0
        %2287 = vmatpush1.bf16.msra.mxu0 %v2239
        %2288 = vmatprep.subr.bf16.mxu0 0
        %2289 = vmatpush1.bf16.msra.mxu0 %v2241
        %2290 = vmatprep.subr.bf16.mxu0 0
        %2291 = vmatpush1.bf16.msra.mxu0 %v2243
        %2292 = vmatprep.subr.bf16.mxu0 0
        %2293 = vmatpush1.bf16.msra.mxu0 %v2245
        %2294 = vmatprep.mubr.bf16.mxu0 %v2183
        %2295 = vmatmul.mubr.bf16.gmra.mrb[0].mxu0 %v2182
        %v2296 = vpop.f32.mrb[0].mxu0
        %v2297 = vadd.f32 0.0, %v2296
        %v2298 = vpop.f32.mrb[0].mxu0
        %v2299 = vpop.f32.mrb[0].mxu0
        %v2300 = vadd.f32 0.0, %v2299
        %v2301 = vpop.f32.mrb[0].mxu0
        %2302 = vmatprep.mubr.bf16.mxu0 %v2185
        %2303 = vmatmul.mubr.bf16.gmra.mrb[0].mxu0 %v2184
        %v2304 = vpop.f32.mrb[0].mxu0
        %v2305 = vadd.f32 0.0, %v2304
        %v2306 = vpop.f32.mrb[0].mxu0
        %v2307 = vpop.f32.mrb[0].mxu0
        %v2308 = vadd.f32 0.0, %v2307
        %v2309 = vpop.f32.mrb[0].mxu0
        %2310 = vmatprep.mubr.bf16.mxu0 %v2187
        %2311 = vmatmul.mubr.bf16.gmra.mrb[0].mxu0 %v2186
        %v2312 = vpop.f32.mrb[0].mxu0
        %v2313 = vadd.f32 0.0, %v2312
        %v2314 = vpop.f32.mrb[0].mxu0
        %v2315 = vpop.f32.mrb[0].mxu0
        %v2316 = vadd.f32 0.0, %v2315
        %v2317 = vpop.f32.mrb[0].mxu0
        %2318 = vmatprep.mubr.bf16.mxu0 %v2189
        %2319 = vmatmul.mubr.bf16.gmra.mrb[0].mxu0 %v2188
        %v2320 = vpop.f32.mrb[0].mxu0
        %v2321 = vadd.f32 0.0, %v2320
        %v2322 = vpop.f32.mrb[0].mxu0
        %v2323 = vpop.f32.mrb[0].mxu0
        %v2324 = vadd.f32 0.0, %v2323
        %v2325 = vpop.f32.mrb[0].mxu0
        %2326 = vmatprep.mubr.bf16.mxu0 %v2191
        %2327 = vmatmul.mubr.bf16.gmra.mrb[0].mxu0 %v2190
        %v2328 = vpop.f32.mrb[0].mxu0
        %v2329 = vadd.f32 0.0, %v2328
        %v2330 = vpop.f32.mrb[0].mxu0
        %v2331 = vpop.f32.mrb[0].mxu0
        %v2332 = vadd.f32 0.0, %v2331
        %v2333 = vpop.f32.mrb[0].mxu0
        %2334 = vmatprep.mubr.bf16.mxu0 %v2193
        %2335 = vmatmul.mubr.bf16.gmra.mrb[0].mxu0 %v2192
        %v2336 = vpop.f32.mrb[0].mxu0
        %v2337 = vadd.f32 0.0, %v2336
        %v2338 = vpop.f32.mrb[0].mxu0
        %v2339 = vpop.f32.mrb[0].mxu0
        %v2340 = vadd.f32 0.0, %v2339
        %v2341 = vpop.f32.mrb[0].mxu0
        %2342 = vmatprep.mubr.bf16.mxu0 %v2195
        %2343 = vmatmul.mubr.bf16.gmra.mrb[0].mxu0 %v2194
        %v2344 = vpop.f32.mrb[0].mxu0
        %v2345 = vadd.f32 0.0, %v2344
        %v2346 = vpop.f32.mrb[0].mxu0
        %v2347 = vpop.f32.mrb[0].mxu0
        %v2348 = vadd.f32 0.0, %v2347
        %v2349 = vpop.f32.mrb[0].mxu0
        %2350 = vmatprep.mubr.bf16.mxu0 %v2197
        %2351 = vmatmul.mubr.bf16.gmra.mrb[0].mxu0 %v2196
        %v2352 = vpop.f32.mrb[0].mxu0
        %v2353 = vadd.f32 0.0, %v2352
        %v2354 = vpop.f32.mrb[0].mxu0
        %v2355 = vpop.f32.mrb[0].mxu0
        %v2356 = vadd.f32 0.0, %v2355
        %v2357 = vpop.f32.mrb[0].mxu0
        %2358 = vdwg.mxu0
        %v2359 = vrcp.pop %v2136
        %v2360 = vrcp.pop %v2139
        %v2361 = vrcp.pop %v2142
        %v2362 = vrcp.pop %v2145
        %v2363 = vrcp.pop %v2148
        %v2364 = vrcp.pop %v2151
        %v2365 = vrcp.pop %v2154
        %v2366 = vrcp.pop %v2157
        %v2367 = vrcp.pop %v2160
        %v2368 = vrcp.pop %v2163
        %v2369 = vrcp.pop %v2166
        %v2370 = vrcp.pop %v2169
        %v2371 = vrcp.pop %v2172
        %v2372 = vrcp.pop %v2175
        %v2373 = vrcp.pop %v2178
        %v2374 = vrcp.pop %v2181
        %v2375 = vmul.f32 %v2297, %v2359
        %v2376 = vmul.f32 %v2300, %v2360
        %v2377 = vmul.f32 %v2305, %v2361
        %v2378 = vmul.f32 %v2308, %v2362
        %v2379 = vmul.f32 %v2313, %v2363
        %v2380 = vmul.f32 %v2316, %v2364
        %v2381 = vmul.f32 %v2321, %v2365
        %v2382 = vmul.f32 %v2324, %v2366
        %v2383 = vmul.f32 %v2329, %v2367
        %v2384 = vmul.f32 %v2332, %v2368
        %v2385 = vmul.f32 %v2337, %v2369
        %v2386 = vmul.f32 %v2340, %v2370
        %v2387 = vmul.f32 %v2345, %v2371
        %v2388 = vmul.f32 %v2348, %v2372
        %v2389 = vmul.f32 %v2353, %v2373
        %v2390 = vmul.f32 %v2356, %v2374
        %v2391 = vpack.c.bf16 %v2376, %v2375
        %v2392 = vpack.c.bf16 %v2378, %v2377
        %v2393 = vpack.c.bf16 %v2380, %v2379
        %v2394 = vpack.c.bf16 %v2382, %v2381
        %v2395 = vpack.c.bf16 %v2384, %v2383
        %v2396 = vpack.c.bf16 %v2386, %v2385
        %v2397 = vpack.c.bf16 %v2388, %v2387
        %v2398 = vpack.c.bf16 %v2390, %v2389
        %s2399 = scalar_lea.vmem [#allocation11], 32
        %v2400 = vld [vmem:[%s2399] sm:$0xf]
        %v2401 = vld [vmem:[%s2399 + $0x4] sm:$0xf]
        %v2402 = vld [vmem:[%s2399 + $0x8] sm:$0xf]
        %v2403 = vld [vmem:[%s2399 + $0xc] sm:$0xf]
        %v2404 = vld [vmem:[%s2399 + $0x10] sm:$0xf]
        %v2405 = vld [vmem:[%s2399 + $0x14] sm:$0xf]
        %v2406 = vld [vmem:[%s2399 + $0x18] sm:$0xf]
        %v2407 = vld [vmem:[%s2399 + $0x1c] sm:$0xf]
        %v2416 = vunpack.c.l.b16 %v2400
        %v2417 = vunpack.c.l.b16 %v2401
        %v2418 = vunpack.c.l.b16 %v2402
        %v2419 = vunpack.c.l.b16 %v2403
        %v2420 = vunpack.c.l.b16 %v2404
        %v2421 = vunpack.c.l.b16 %v2405
        %v2422 = vunpack.c.l.b16 %v2406
        %v2423 = vunpack.c.l.b16 %v2407
        %v2424 = vpack.c.b16 %v2417, %v2416
        %v2425 = vpack.c.b16 %v2419, %v2418
        %v2426 = vpack.c.b16 %v2421, %v2420
        %v2427 = vpack.c.b16 %v2423, %v2422
        %v2433 = vsel %vm1194, %v2391, 0
        %v2436 = vsel %vm1194, %v2392, 0
        %v2439 = vsel %vm1194, %v2393, 0
        %v2442 = vsel %vm1194, %v2394, 0
        %v2445 = vsel %vm1194, %v2395, 0
        %v2448 = vsel %vm1194, %v2396, 0
        %v2451 = vsel %vm1194, %v2397, 0
        %v2454 = vsel %vm1194, %v2398, 0
        %2456 = vmatprep.subr.bf16.mxu0 0
        %2457 = vmatpush1.bf16.msra.mxu0 %v2424
        %2458 = vmatprep.subr.bf16.mxu0 0
        %2459 = vmatpush1.bf16.msra.mxu0 %v2425
        %2460 = vmatprep.subr.bf16.mxu0 0
        %2461 = vmatpush1.bf16.msra.mxu0 %v2426
        %2462 = vmatprep.subr.bf16.mxu0 0
        %2463 = vmatpush1.bf16.msra.mxu0 %v2427
        %2464 = vmatprep.subr.bf16.mxu0 0
        %2465 = vmatpush1.bf16.msra.mxu0 0
        %2466 = vmatprep.subr.bf16.mxu0 0
        %2467 = vmatpush1.bf16.msra.mxu0 0
        %2468 = vmatprep.subr.bf16.mxu0 0
        %2469 = vmatpush1.bf16.msra.mxu0 0
        %2470 = vmatprep.subr.bf16.mxu0 0
        %2471 = vmatpush1.bf16.msra.mxu0 0
        %2472 = vmatprep.subr.bf16.mxu0 0
        %2473 = vmatpush1.bf16.msra.mxu0 0
        %2474 = vmatprep.subr.bf16.mxu0 0
        %2475 = vmatpush1.bf16.msra.mxu0 0
        %2476 = vmatprep.subr.bf16.mxu0 0
        %2477 = vmatpush1.bf16.msra.mxu0 0
        %2478 = vmatprep.subr.bf16.mxu0 0
        %2479 = vmatpush1.bf16.msra.mxu0 0
        %2480 = vmatprep.subr.bf16.mxu0 0
        %2481 = vmatpush1.bf16.msra.mxu0 0
        %2482 = vmatprep.subr.bf16.mxu0 0
        %2483 = vmatpush1.bf16.msra.mxu0 0
        %2484 = vmatprep.subr.bf16.mxu0 0
        %2485 = vmatpush1.bf16.msra.mxu0 0
        %2486 = vmatprep.subr.bf16.mxu0 0
        %2487 = vmatpush1.bf16.msra.mxu0 0
        %2488 = vmatprep.mubr.bf16.mxu0 0
        %2489 = vmatmul.mubr.bf16.gmra.mrb[0].mxu0 %v2433
        %v2490 = vpop.f32.mrb[0].mxu0
        %v2491 = vadd.f32 0.0, %v2490
        %v2492 = vpop.f32.mrb[0].mxu0
        %v2493 = vpop.f32.mrb[0].mxu0
        %v2494 = vadd.f32 0.0, %v2493
        %v2495 = vpop.f32.mrb[0].mxu0
        %2496 = vmatprep.mubr.bf16.mxu0 0
        %2497 = vmatmul.mubr.bf16.gmra.mrb[0].mxu0 %v2436
        %v2498 = vpop.f32.mrb[0].mxu0
        %v2499 = vadd.f32 0.0, %v2498
        %v2500 = vpop.f32.mrb[0].mxu0
        %v2501 = vpop.f32.mrb[0].mxu0
        %v2502 = vadd.f32 0.0, %v2501
        %v2503 = vpop.f32.mrb[0].mxu0
        %2504 = vmatprep.mubr.bf16.mxu0 0
        %2505 = vmatmul.mubr.bf16.gmra.mrb[0].mxu0 %v2439
        %v2506 = vpop.f32.mrb[0].mxu0
        %v2507 = vadd.f32 0.0, %v2506
        %v2508 = vpop.f32.mrb[0].mxu0
        %v2509 = vpop.f32.mrb[0].mxu0
        %v2510 = vadd.f32 0.0, %v2509
        %v2511 = vpop.f32.mrb[0].mxu0
        %2512 = vmatprep.mubr.bf16.mxu0 0
        %2513 = vmatmul.mubr.bf16.gmra.mrb[0].mxu0 %v2442
        %v2514 = vpop.f32.mrb[0].mxu0
        %v2515 = vadd.f32 0.0, %v2514
        %v2516 = vpop.f32.mrb[0].mxu0
        %v2517 = vpop.f32.mrb[0].mxu0
        %v2518 = vadd.f32 0.0, %v2517
        %v2519 = vpop.f32.mrb[0].mxu0
        %2520 = vmatprep.mubr.bf16.mxu0 0
        %2521 = vmatmul.mubr.bf16.gmra.mrb[0].mxu0 %v2445
        %v2522 = vpop.f32.mrb[0].mxu0
        %v2523 = vadd.f32 0.0, %v2522
        %v2524 = vpop.f32.mrb[0].mxu0
        %v2525 = vpop.f32.mrb[0].mxu0
        %v2526 = vadd.f32 0.0, %v2525
        %v2527 = vpop.f32.mrb[0].mxu0
        %2528 = vmatprep.mubr.bf16.mxu0 0
        %2529 = vmatmul.mubr.bf16.gmra.mrb[0].mxu0 %v2448
        %v2530 = vpop.f32.mrb[0].mxu0
        %v2531 = vadd.f32 0.0, %v2530
        %v2532 = vpop.f32.mrb[0].mxu0
        %v2533 = vpop.f32.mrb[0].mxu0
        %v2534 = vadd.f32 0.0, %v2533
        %v2535 = vpop.f32.mrb[0].mxu0
        %2536 = vmatprep.mubr.bf16.mxu0 0
        %2537 = vmatmul.mubr.bf16.gmra.mrb[0].mxu0 %v2451
        %v2538 = vpop.f32.mrb[0].mxu0
        %v2539 = vadd.f32 0.0, %v2538
        %v2540 = vpop.f32.mrb[0].mxu0
        %v2541 = vpop.f32.mrb[0].mxu0
        %v2542 = vadd.f32 0.0, %v2541
        %v2543 = vpop.f32.mrb[0].mxu0
        %2544 = vmatprep.mubr.bf16.mxu0 0
        %2545 = vmatmul.mubr.bf16.gmra.mrb[0].mxu0 %v2454
        %v2546 = vpop.f32.mrb[0].mxu0
        %v2547 = vadd.f32 0.0, %v2546
        %v2548 = vpop.f32.mrb[0].mxu0
        %v2549 = vpop.f32.mrb[0].mxu0
        %v2550 = vadd.f32 0.0, %v2549
        %v2551 = vpop.f32.mrb[0].mxu0
        %2552 = vdwg.mxu0
        %v2561 = vunpack.c.l.b16 %v1725
        %v2562 = vunpack.c.l.b16 %v1726
        %v2563 = vunpack.c.l.b16 %v1727
        %v2564 = vunpack.c.l.b16 %v1728
        %v2565 = vunpack.c.l.b16 %v1729
        %v2566 = vunpack.c.l.b16 %v1730
        %v2567 = vunpack.c.l.b16 %v1731
        %v2568 = vunpack.c.l.b16 %v1732
        %v2569 = vpack.c.b16 %v2562, %v2561
        %v2570 = vpack.c.b16 %v2564, %v2563
        %v2571 = vpack.c.b16 %v2566, %v2565
        %v2572 = vpack.c.b16 %v2568, %v2567
        %v2578 = vsel %vm1194, %v1717, 0
        %v2581 = vsel %vm1194, %v1718, 0
        %v2584 = vsel %vm1194, %v1719, 0
        %v2587 = vsel %vm1194, %v1720, 0
        %v2590 = vsel %vm1194, %v1721, 0
        %v2593 = vsel %vm1194, %v1722, 0
        %v2596 = vsel %vm1194, %v1723, 0
        %v2599 = vsel %vm1194, %v1724, 0
        %2601 = vmatprep.subr.bf16.mxu0 0
        %2602 = vmatpush1.bf16.msra.mxu0 %v2569
        %2603 = vmatprep.subr.bf16.mxu0 0
        %2604 = vmatpush1.bf16.msra.mxu0 %v2570
        %2605 = vmatprep.subr.bf16.mxu0 0
        %2606 = vmatpush1.bf16.msra.mxu0 %v2571
        %2607 = vmatprep.subr.bf16.mxu0 0
        %2608 = vmatpush1.bf16.msra.mxu0 %v2572
        %2609 = vmatprep.subr.bf16.mxu0 0
        %2610 = vmatpush1.bf16.msra.mxu0 0
        %2611 = vmatprep.subr.bf16.mxu0 0
        %2612 = vmatpush1.bf16.msra.mxu0 0
        %2613 = vmatprep.subr.bf16.mxu0 0
        %2614 = vmatpush1.bf16.msra.mxu0 0
        %2615 = vmatprep.subr.bf16.mxu0 0
        %2616 = vmatpush1.bf16.msra.mxu0 0
        %2617 = vmatprep.subr.bf16.mxu0 0
        %2618 = vmatpush1.bf16.msra.mxu0 0
        %2619 = vmatprep.subr.bf16.mxu0 0
        %2620 = vmatpush1.bf16.msra.mxu0 0
        %2621 = vmatprep.subr.bf16.mxu0 0
        %2622 = vmatpush1.bf16.msra.mxu0 0
        %2623 = vmatprep.subr.bf16.mxu0 0
        %2624 = vmatpush1.bf16.msra.mxu0 0
        %2625 = vmatprep.subr.bf16.mxu0 0
        %2626 = vmatpush1.bf16.msra.mxu0 0
        %2627 = vmatprep.subr.bf16.mxu0 0
        %2628 = vmatpush1.bf16.msra.mxu0 0
        %2629 = vmatprep.subr.bf16.mxu0 0
        %2630 = vmatpush1.bf16.msra.mxu0 0
        %2631 = vmatprep.subr.bf16.mxu0 0
        %2632 = vmatpush1.bf16.msra.mxu0 0
        %2633 = vmatprep.mubr.bf16.mxu0 0
        %2634 = vmatmul.mubr.bf16.gmra.mrb[0].mxu0 %v2578
        %v2635 = vpop.f32.mrb[0].mxu0
        %v2636 = vadd.f32 %v2491, %v2635
        %v2637 = vpop.f32.mrb[0].mxu0
        %v2638 = vpop.f32.mrb[0].mxu0
        %v2639 = vadd.f32 %v2494, %v2638
        %v2640 = vpop.f32.mrb[0].mxu0
        %2641 = vmatprep.mubr.bf16.mxu0 0
        %2642 = vmatmul.mubr.bf16.gmra.mrb[0].mxu0 %v2581
        %v2643 = vpop.f32.mrb[0].mxu0
        %v2644 = vadd.f32 %v2499, %v2643
        %v2645 = vpop.f32.mrb[0].mxu0
        %v2646 = vpop.f32.mrb[0].mxu0
        %v2647 = vadd.f32 %v2502, %v2646
        %v2648 = vpop.f32.mrb[0].mxu0
        %2649 = vmatprep.mubr.bf16.mxu0 0
        %2650 = vmatmul.mubr.bf16.gmra.mrb[0].mxu0 %v2584
        %v2651 = vpop.f32.mrb[0].mxu0
        %v2652 = vadd.f32 %v2507, %v2651
        %v2653 = vpop.f32.mrb[0].mxu0
        %v2654 = vpop.f32.mrb[0].mxu0
        %v2655 = vadd.f32 %v2510, %v2654
        %v2656 = vpop.f32.mrb[0].mxu0
        %2657 = vmatprep.mubr.bf16.mxu0 0
        %2658 = vmatmul.mubr.bf16.gmra.mrb[0].mxu0 %v2587
        %v2659 = vpop.f32.mrb[0].mxu0
        %v2660 = vadd.f32 %v2515, %v2659
        %v2661 = vpop.f32.mrb[0].mxu0
        %v2662 = vpop.f32.mrb[0].mxu0
        %v2663 = vadd.f32 %v2518, %v2662
        %v2664 = vpop.f32.mrb[0].mxu0
        %2665 = vmatprep.mubr.bf16.mxu0 0
        %2666 = vmatmul.mubr.bf16.gmra.mrb[0].mxu0 %v2590
        %v2667 = vpop.f32.mrb[0].mxu0
        %v2668 = vadd.f32 %v2523, %v2667
        %v2669 = vpop.f32.mrb[0].mxu0
        %v2670 = vpop.f32.mrb[0].mxu0
        %v2671 = vadd.f32 %v2526, %v2670
        %v2672 = vpop.f32.mrb[0].mxu0
        %2673 = vmatprep.mubr.bf16.mxu0 0
        %2674 = vmatmul.mubr.bf16.gmra.mrb[0].mxu0 %v2593
        %v2675 = vpop.f32.mrb[0].mxu0
        %v2676 = vadd.f32 %v2531, %v2675
        %v2677 = vpop.f32.mrb[0].mxu0
        %v2678 = vpop.f32.mrb[0].mxu0
        %v2679 = vadd.f32 %v2534, %v2678
        %v2680 = vpop.f32.mrb[0].mxu0
        %2681 = vmatprep.mubr.bf16.mxu0 0
        %2682 = vmatmul.mubr.bf16.gmra.mrb[0].mxu0 %v2596
        %v2683 = vpop.f32.mrb[0].mxu0
        %v2684 = vadd.f32 %v2539, %v2683
        %v2685 = vpop.f32.mrb[0].mxu0
        %v2686 = vpop.f32.mrb[0].mxu0
        %v2687 = vadd.f32 %v2542, %v2686
        %v2688 = vpop.f32.mrb[0].mxu0
        %2689 = vmatprep.mubr.bf16.mxu0 0
        %2690 = vmatmul.mubr.bf16.gmra.mrb[0].mxu0 %v2599
        %v2691 = vpop.f32.mrb[0].mxu0
        %v2692 = vadd.f32 %v2547, %v2691
        %v2693 = vpop.f32.mrb[0].mxu0
        %v2694 = vpop.f32.mrb[0].mxu0
        %v2695 = vadd.f32 %v2550, %v2694
        %v2696 = vpop.f32.mrb[0].mxu0
        %2697 = vdwg.mxu0
        %v2698 = vld [vmem:[#allocation12] sm:$0x1]
        %v2700 = vlaneseq
        %v2701 = vshrl.u32 %v2700, 7
        %v2702 = vsub.s32 0, %v2701
        %v2703 = vrot.slane %v2698, %v2702
        %v2705 = vadd.f32 %v2636, %v2703
        %v2706 = vadd.f32 %v2639, %v2703
        %v2707 = vadd.f32 %v2644, %v2703
        %v2708 = vadd.f32 %v2647, %v2703
        %v2709 = vadd.f32 %v2652, %v2703
        %v2710 = vadd.f32 %v2655, %v2703
        %v2711 = vadd.f32 %v2660, %v2703
        %v2712 = vadd.f32 %v2663, %v2703
        %v2713 = vadd.f32 %v2668, %v2703
        %v2714 = vadd.f32 %v2671, %v2703
        %v2715 = vadd.f32 %v2676, %v2703
        %v2716 = vadd.f32 %v2679, %v2703
        %v2717 = vadd.f32 %v2684, %v2703
        %v2718 = vadd.f32 %v2687, %v2703
        %v2719 = vadd.f32 %v2692, %v2703
        %v2720 = vadd.f32 %v2695, %v2703
        %s2721 = scalar_lea.vmem %s384, %s1136 [#allocation3]
        %v2722 = vld [vmem:[%s2721] sm:$0xff]
        %v2723 = vld [vmem:[%s2721 + $0x8] sm:$0xff]
        %v2724 = vld [vmem:[%s2721 + $0x10] sm:$0xff]
        %v2725 = vld [vmem:[%s2721 + $0x18] sm:$0xff]
        %v2726 = vld [vmem:[%s2721 + $0x20] sm:$0xff]
        %v2727 = vld [vmem:[%s2721 + $0x28] sm:$0xff]
        %v2728 = vld [vmem:[%s2721 + $0x30] sm:$0xff]
        %v2729 = vld [vmem:[%s2721 + $0x38] sm:$0xff]
        %v2730 = vld [vmem:[%s2721 + $0x40] sm:$0xff]
        %v2731 = vld [vmem:[%s2721 + $0x48] sm:$0xff]
        %v2732 = vld [vmem:[%s2721 + $0x50] sm:$0xff]
        %v2733 = vld [vmem:[%s2721 + $0x58] sm:$0xff]
        %v2734 = vld [vmem:[%s2721 + $0x60] sm:$0xff]
        %v2735 = vld [vmem:[%s2721 + $0x68] sm:$0xff]
        %v2736 = vld [vmem:[%s2721 + $0x70] sm:$0xff]
        %v2737 = vld [vmem:[%s2721 + $0x78] sm:$0xff]
        %v2738 = vadd.f32 %v2705, %v2722
        %v2739 = vadd.f32 %v2706, %v2723
        %v2740 = vadd.f32 %v2707, %v2724
        %v2741 = vadd.f32 %v2708, %v2725
        %v2742 = vadd.f32 %v2709, %v2726
        %v2743 = vadd.f32 %v2710, %v2727
        %v2744 = vadd.f32 %v2711, %v2728
        %v2745 = vadd.f32 %v2712, %v2729
        %v2746 = vadd.f32 %v2713, %v2730
        %v2747 = vadd.f32 %v2714, %v2731
        %v2748 = vadd.f32 %v2715, %v2732
        %v2749 = vadd.f32 %v2716, %v2733
        %v2750 = vadd.f32 %v2717, %v2734
        %v2751 = vadd.f32 %v2718, %v2735
        %v2752 = vadd.f32 %v2719, %v2736
        %v2753 = vadd.f32 %v2720, %v2737
        %2754 = vadd.xlane.f32.xlu0 %v2738
        %v2755 = vpop.xlane.xlu0 %2754
        %2756 = vadd.xlane.f32.xlu0 %v2739
        %v2757 = vpop.xlane.xlu0 %2756
        %2758 = vadd.xlane.f32.xlu0 %v2740
        %v2759 = vpop.xlane.xlu0 %2758
        %2760 = vadd.xlane.f32.xlu0 %v2741
        %v2761 = vpop.xlane.xlu0 %2760
        %2762 = vadd.xlane.f32.xlu0 %v2742
        %v2763 = vpop.xlane.xlu0 %2762
        %2764 = vadd.xlane.f32.xlu0 %v2743
        %v2765 = vpop.xlane.xlu0 %2764
        %2766 = vadd.xlane.f32.xlu0 %v2744
        %v2767 = vpop.xlane.xlu0 %2766
        %2768 = vadd.xlane.f32.xlu0 %v2745
        %v2769 = vpop.xlane.xlu0 %2768
        %2770 = vadd.xlane.f32.xlu0 %v2746
        %v2771 = vpop.xlane.xlu0 %2770
        %2772 = vadd.xlane.f32.xlu0 %v2747
        %v2773 = vpop.xlane.xlu0 %2772
        %2774 = vadd.xlane.f32.xlu0 %v2748
        %v2775 = vpop.xlane.xlu0 %2774
        %2776 = vadd.xlane.f32.xlu0 %v2749
        %v2777 = vpop.xlane.xlu0 %2776
        %2778 = vadd.xlane.f32.xlu0 %v2750
        %v2779 = vpop.xlane.xlu0 %2778
        %2780 = vadd.xlane.f32.xlu0 %v2751
        %v2781 = vpop.xlane.xlu0 %2780
        %2782 = vadd.xlane.f32.xlu0 %v2752
        %v2783 = vpop.xlane.xlu0 %2782
        %2784 = vadd.xlane.f32.xlu0 %v2753
        %v2785 = vpop.xlane.xlu0 %2784
        %v2786 = vrcp.pop 128.0
        %v2787 = vmul.f32 %v2755, %v2786
        %v2788 = vmul.f32 %v2757, %v2786
        %v2789 = vmul.f32 %v2759, %v2786
        %v2790 = vmul.f32 %v2761, %v2786
        %v2791 = vmul.f32 %v2763, %v2786
        %v2792 = vmul.f32 %v2765, %v2786
        %v2793 = vmul.f32 %v2767, %v2786
        %v2794 = vmul.f32 %v2769, %v2786
        %v2795 = vmul.f32 %v2771, %v2786
        %v2796 = vmul.f32 %v2773, %v2786
        %v2797 = vmul.f32 %v2775, %v2786
        %v2798 = vmul.f32 %v2777, %v2786
        %v2799 = vmul.f32 %v2779, %v2786
        %v2800 = vmul.f32 %v2781, %v2786
        %v2801 = vmul.f32 %v2783, %v2786
        %v2802 = vmul.f32 %v2785, %v2786
        %v2803 = vsub.f32 %v2738, %v2787
        %v2804 = vsub.f32 %v2739, %v2788
        %v2805 = vsub.f32 %v2740, %v2789
        %v2806 = vsub.f32 %v2741, %v2790
        %v2807 = vsub.f32 %v2742, %v2791
        %v2808 = vsub.f32 %v2743, %v2792
        %v2809 = vsub.f32 %v2744, %v2793
        %v2810 = vsub.f32 %v2745, %v2794
        %v2811 = vsub.f32 %v2746, %v2795
        %v2812 = vsub.f32 %v2747, %v2796
        %v2813 = vsub.f32 %v2748, %v2797
        %v2814 = vsub.f32 %v2749, %v2798
        %v2815 = vsub.f32 %v2750, %v2799
        %v2816 = vsub.f32 %v2751, %v2800
        %v2817 = vsub.f32 %v2752, %v2801
        %v2818 = vsub.f32 %v2753, %v2802
        %v2819 = vmul.f32 %v2803, %v2803
        %v2820 = vmul.f32 %v2804, %v2804
        %v2821 = vmul.f32 %v2805, %v2805
        %v2822 = vmul.f32 %v2806, %v2806
        %v2823 = vmul.f32 %v2807, %v2807
        %v2824 = vmul.f32 %v2808, %v2808
        %v2825 = vmul.f32 %v2809, %v2809
        %v2826 = vmul.f32 %v2810, %v2810
        %v2827 = vmul.f32 %v2811, %v2811
        %v2828 = vmul.f32 %v2812, %v2812
        %v2829 = vmul.f32 %v2813, %v2813
        %v2830 = vmul.f32 %v2814, %v2814
        %v2831 = vmul.f32 %v2815, %v2815
        %v2832 = vmul.f32 %v2816, %v2816
        %v2833 = vmul.f32 %v2817, %v2817
        %v2834 = vmul.f32 %v2818, %v2818
        %2835 = vadd.xlane.f32.xlu0 %v2819
        %v2836 = vpop.xlane.xlu0 %2835
        %2837 = vadd.xlane.f32.xlu0 %v2820
        %v2838 = vpop.xlane.xlu0 %2837
        %2839 = vadd.xlane.f32.xlu0 %v2821
        %v2840 = vpop.xlane.xlu0 %2839
        %2841 = vadd.xlane.f32.xlu0 %v2822
        %v2842 = vpop.xlane.xlu0 %2841
        %2843 = vadd.xlane.f32.xlu0 %v2823
        %v2844 = vpop.xlane.xlu0 %2843
        %2845 = vadd.xlane.f32.xlu0 %v2824
        %v2846 = vpop.xlane.xlu0 %2845
        %2847 = vadd.xlane.f32.xlu0 %v2825
        %v2848 = vpop.xlane.xlu0 %2847
        %2849 = vadd.xlane.f32.xlu0 %v2826
        %v2850 = vpop.xlane.xlu0 %2849
        %2851 = vadd.xlane.f32.xlu0 %v2827
        %v2852 = vpop.xlane.xlu0 %2851
        %2853 = vadd.xlane.f32.xlu0 %v2828
        %v2854 = vpop.xlane.xlu0 %2853
        %2855 = vadd.xlane.f32.xlu0 %v2829
        %v2856 = vpop.xlane.xlu0 %2855
        %2857 = vadd.xlane.f32.xlu0 %v2830
        %v2858 = vpop.xlane.xlu0 %2857
        %2859 = vadd.xlane.f32.xlu0 %v2831
        %v2860 = vpop.xlane.xlu0 %2859
        %2861 = vadd.xlane.f32.xlu0 %v2832
        %v2862 = vpop.xlane.xlu0 %2861
        %2863 = vadd.xlane.f32.xlu0 %v2833
        %v2864 = vpop.xlane.xlu0 %2863
        %2865 = vadd.xlane.f32.xlu0 %v2834
        %v2866 = vpop.xlane.xlu0 %2865
        %v2867 = vmul.f32 %v2836, %v2786
        %v2868 = vmul.f32 %v2838, %v2786
        %v2869 = vmul.f32 %v2840, %v2786
        %v2870 = vmul.f32 %v2842, %v2786
        %v2871 = vmul.f32 %v2844, %v2786
        %v2872 = vmul.f32 %v2846, %v2786
        %v2873 = vmul.f32 %v2848, %v2786
        %v2874 = vmul.f32 %v2850, %v2786
        %v2875 = vmul.f32 %v2852, %v2786
        %v2876 = vmul.f32 %v2854, %v2786
        %v2877 = vmul.f32 %v2856, %v2786
        %v2878 = vmul.f32 %v2858, %v2786
        %v2879 = vmul.f32 %v2860, %v2786
        %v2880 = vmul.f32 %v2862, %v2786
        %v2881 = vmul.f32 %v2864, %v2786
        %v2882 = vmul.f32 %v2866, %v2786
        %v2883 = vadd.f32 %v2867, 1e-12
        %v2884 = vadd.f32 %v2868, 1e-12
        %v2885 = vadd.f32 %v2869, 1e-12
        %v2886 = vadd.f32 %v2870, 1e-12
        %v2887 = vadd.f32 %v2871, 1e-12
        %v2888 = vadd.f32 %v2872, 1e-12
        %v2889 = vadd.f32 %v2873, 1e-12
        %v2890 = vadd.f32 %v2874, 1e-12
        %v2891 = vadd.f32 %v2875, 1e-12
        %v2892 = vadd.f32 %v2876, 1e-12
        %v2893 = vadd.f32 %v2877, 1e-12
        %v2894 = vadd.f32 %v2878, 1e-12
        %v2895 = vadd.f32 %v2879, 1e-12
        %v2896 = vadd.f32 %v2880, 1e-12
        %v2897 = vadd.f32 %v2881, 1e-12
        %v2898 = vadd.f32 %v2882, 1e-12
        %v2899 = vrsqrt.pop %v2883
        %v2900 = vrsqrt.pop %v2884
        %v2901 = vrsqrt.pop %v2885
        %v2902 = vrsqrt.pop %v2886
        %v2903 = vrsqrt.pop %v2887
        %v2904 = vrsqrt.pop %v2888
        %v2905 = vrsqrt.pop %v2889
        %v2906 = vrsqrt.pop %v2890
        %v2907 = vrsqrt.pop %v2891
        %v2908 = vrsqrt.pop %v2892
        %v2909 = vrsqrt.pop %v2893
        %v2910 = vrsqrt.pop %v2894
        %v2911 = vrsqrt.pop %v2895
        %v2912 = vrsqrt.pop %v2896
        %v2913 = vrsqrt.pop %v2897
        %v2914 = vrsqrt.pop %v2898
        %v2915 = vmul.f32 %v2803, %v2899
        %v2916 = vmul.f32 %v2804, %v2900
        %v2917 = vmul.f32 %v2805, %v2901
        %v2918 = vmul.f32 %v2806, %v2902
        %v2919 = vmul.f32 %v2807, %v2903
        %v2920 = vmul.f32 %v2808, %v2904
        %v2921 = vmul.f32 %v2809, %v2905
        %v2922 = vmul.f32 %v2810, %v2906
        %v2923 = vmul.f32 %v2811, %v2907
        %v2924 = vmul.f32 %v2812, %v2908
        %v2925 = vmul.f32 %v2813, %v2909
        %v2926 = vmul.f32 %v2814, %v2910
        %v2927 = vmul.f32 %v2815, %v2911
        %v2928 = vmul.f32 %v2816, %v2912
        %v2929 = vmul.f32 %v2817, %v2913
        %v2930 = vmul.f32 %v2818, %v2914
        %v2931 = vld [vmem:[#allocation14] sm:$0x1]
        %v2933 = vlaneseq
        %v2934 = vshrl.u32 %v2933, 7
        %v2935 = vsub.s32 0, %v2934
        %v2936 = vrot.slane %v2931, %v2935
        %v2938 = vmul.f32 %v2915, %v2936
        %v2939 = vmul.f32 %v2916, %v2936
        %v2940 = vmul.f32 %v2917, %v2936
        %v2941 = vmul.f32 %v2918, %v2936
        %v2942 = vmul.f32 %v2919, %v2936
        %v2943 = vmul.f32 %v2920, %v2936
        %v2944 = vmul.f32 %v2921, %v2936
        %v2945 = vmul.f32 %v2922, %v2936
        %v2946 = vmul.f32 %v2923, %v2936
        %v2947 = vmul.f32 %v2924, %v2936
        %v2948 = vmul.f32 %v2925, %v2936
        %v2949 = vmul.f32 %v2926, %v2936
        %v2950 = vmul.f32 %v2927, %v2936
        %v2951 = vmul.f32 %v2928, %v2936
        %v2952 = vmul.f32 %v2929, %v2936
        %v2953 = vmul.f32 %v2930, %v2936
        %v2954 = vld [vmem:[#allocation15] sm:$0x1]
        %v2956 = vlaneseq
        %v2957 = vshrl.u32 %v2956, 7
        %v2958 = vsub.s32 0, %v2957
        %v2959 = vrot.slane %v2954, %v2958
        %v2961 = vadd.f32 %v2938, %v2959
        %v2962 = vadd.f32 %v2939, %v2959
        %v2963 = vadd.f32 %v2940, %v2959
        %v2964 = vadd.f32 %v2941, %v2959
        %v2965 = vadd.f32 %v2942, %v2959
        %v2966 = vadd.f32 %v2943, %v2959
        %v2967 = vadd.f32 %v2944, %v2959
        %v2968 = vadd.f32 %v2945, %v2959
        %v2969 = vadd.f32 %v2946, %v2959
        %v2970 = vadd.f32 %v2947, %v2959
        %v2971 = vadd.f32 %v2948, %v2959
        %v2972 = vadd.f32 %v2949, %v2959
        %v2973 = vadd.f32 %v2950, %v2959
        %v2974 = vadd.f32 %v2951, %v2959
        %v2975 = vadd.f32 %v2952, %v2959
        %v2976 = vadd.f32 %v2953, %v2959
        %2977 = vst [vmem:[%s454] sm:$0xff] %v2961
        %2978 = vst [vmem:[%s454 + $0x8] sm:$0xff] %v2962
        %2979 = vst [vmem:[%s454 + $0x10] sm:$0xff] %v2963
        %2980 = vst [vmem:[%s454 + $0x18] sm:$0xff] %v2964
        %2981 = vst [vmem:[%s454 + $0x20] sm:$0xff] %v2965
        %2982 = vst [vmem:[%s454 + $0x28] sm:$0xff] %v2966
        %2983 = vst [vmem:[%s454 + $0x30] sm:$0xff] %v2967
        %2984 = vst [vmem:[%s454 + $0x38] sm:$0xff] %v2968
        %2985 = vst [vmem:[%s454 + $0x40] sm:$0xff] %v2969
        %2986 = vst [vmem:[%s454 + $0x48] sm:$0xff] %v2970
        %2987 = vst [vmem:[%s454 + $0x50] sm:$0xff] %v2971
        %2988 = vst [vmem:[%s454 + $0x58] sm:$0xff] %v2972
        %2989 = vst [vmem:[%s454 + $0x60] sm:$0xff] %v2973
        %2990 = vst [vmem:[%s454 + $0x68] sm:$0xff] %v2974
        %2991 = vst [vmem:[%s454 + $0x70] sm:$0xff] %v2975
        %2992 = vst [vmem:[%s454 + $0x78] sm:$0xff] %v2976
        %s2993 = sand.u32 %s231, 1
        %s2994 = scalar_lea.sflag [#allocation5], %s2993
        %s2995 = sand.u32 %s231, 1
        %s2996 = smul.addr %s2995, 128
        %s2997 = scalar_lea.vmem [#allocation17], %s2996
        // Predicated region
        $region89: #{tpu_custom_call.1} parent=51 // pred_check
          %p2998 = pneg %p241
        $region90: #{tpu_custom_call.1} parent=51 // pred_check_branch
          %3000 = sbr.rel (%p2998) target = $region92
        $region91: #{tpu_custom_call.1} parent=51 // pred_region
          %s3001 = smul.u32 16, %s36
          %s3003 = ssub.s32 2048, 2048
          %3004 = vsyncadd %s2994, %s3003
          %s3005 = smul.addr %s35, 32
          %s3006 = sadd.s32 %s3001, %s3005
          %s3007 = smul.addr %s3006, 128
          %s3008 = scalar_lea.hbm %s8, %s3007
          %s3009 = sshll.u32 %s2997, 4
          %s3010 = int_to_ptr.vmem [resolvable:$true] %s3009
          %3015 = dma.vmem_to_hbm [thread:$0]  %s3010, 2048, %s3008, %s2994, 128, 128, 8
        $region92: #{tpu_custom_call.1} parent=51 // pred_fallthru
          _
      $region52: #{tpu_custom_call.1} parent=5 // pred_fallthru
        _
      %p3016 = scmp.le.s32.totalorder 2, %s26
      // Predicated region
      $region93: #{tpu_custom_call.1} parent=5 // pred_check
        %p3017 = pneg %p3016
      $region94: #{tpu_custom_call.1} parent=5 // pred_check_branch
        %3019 = sbr.rel (%p3017) target = $region96
      $region95: #{tpu_custom_call.1} parent=5 // pred_region
        %s3020 = ssub.s32 %s26, 2
        // Predicated region
        $region97: #{tpu_custom_call.1} parent=95 // pred_check
          %p3021 = pneg %p247
        $region98: #{tpu_custom_call.1} parent=95 // pred_check_branch
          %3023 = sbr.rel (%p3021) target = $region100
        $region99: #{tpu_custom_call.1} parent=95 // pred_region
          %s3024 = sand.u32 %s232, 1
          %s3025 = scalar_lea.sflag [#allocation5], %s3024
          %s3026 = sand.u32 %s232, 1
          %s3027 = smul.addr %s3026, 128
          %s3028 = scalar_lea.vmem [#allocation17], %s3027
          %3029 = dma.done %s3025, 2048
        $region100: #{tpu_custom_call.1} parent=95 // pred_fallthru
          _
      $region96: #{tpu_custom_call.1} parent=5 // pred_fallthru
        _
    $region6: #{tpu_custom_call.1} parent=1 // loop_footer
      %s30 = sadd.s32 1, %s26
    $region7: #{tpu_custom_call.1} parent=1 // loop_footer_branch
      %25 = sbr.rel target = $region3
    $region8: #{tpu_custom_call.1} parent=1 // loop_exit
      _
    %3030 = vsyncpa [#allocation4], 1
    %s3031 = scalar_lea.sflag [#allocation4], 1
    %3032 = vsyncpa %s3031, 1
    %3033 = vsyncpa [#allocation7], 1
    %s3034 = scalar_lea.sflag [#allocation7], 1
    %3035 = vsyncpa %s3034, 1
    %3036 = vsyncpa [#allocation10], 1
    %3037 = vsyncpa [#allocation13], 1
    %3038 = vsyncpa [#allocation16], 1
    %3039 = vsyncpa [#allocation5], 1
    %s3040 = scalar_lea.sflag [#allocation5], 1
    %3041 = vsyncpa %s3040, 1

</llo_original>
